<compile_context>
chip_gen: v7x
topology: tpu7x:2x2x1
jax: 0.10.0
libtpu: 0.0.40
codegen_flags: <defaults>
</compile_context>

<pallas_src>
import functools

import jax
import jax.numpy as jnp
from jax.experimental import pallas as pl
from jax.experimental.pallas import tpu as pltpu

PATCH = 4
PDIM = 3 * PATCH * PATCH        # 48 patch features (channels-first per patch)
EMBED_DIM = 768                 # swin_s final feature dim
OUT_DIM = 512                   # dim=512 replacement head
B_TILE = 8                      # batch rows per grid step (8-aligned f32 output stores)
MAX_TOKEN_TILE = 2048           # lane-axis token tile (multiple of 128 when tiled)


def _round_up(x, m):
    return ((x + m - 1) // m) * m


def make_params(key, in_dim=PDIM):
    ks = jax.random.split(key, 3)
    scale_emb = 1.0 / jnp.sqrt(jnp.float32(in_dim))
    scale_head = 1.0 / jnp.sqrt(jnp.float32(EMBED_DIM))
    w_emb = jax.random.normal(ks[0], (in_dim, EMBED_DIM), jnp.float32) * scale_emb
    w_head = jax.random.normal(ks[1], (EMBED_DIM, OUT_DIM), jnp.float32) * scale_head
    return {
        "w_emb": w_emb.astype(jnp.bfloat16),            # (48, 768) bf16, no HBM pad
        "b_emb": jnp.zeros((1, EMBED_DIM), jnp.float32),
        "gamma": jnp.ones((1, EMBED_DIM), jnp.float32),
        "beta": jnp.zeros((1, EMBED_DIM), jnp.float32),
        "w_head": w_head.astype(jnp.bfloat16),          # (768, 512) bf16
        "b_head": jax.random.normal(ks[2], (1, OUT_DIM), jnp.float32) * 0.01,
    }


def _extract_patch_features(x):
    """NCHW (B,3,H,W) f32 -> (B, 48, nP) bf16.

    Feature index f = c*16 + dy*4 + dx (channels-first per 4x4 patch, matching the
    reference), token index = hp*wp. bf16 cast happens BEFORE the transpose so the XLA
    rearrangement moves half the bytes; tokens sit on the minor (lane) axis so the kernel
    loads are lane-dense and VMEM blocks are not lane-padded.
    """
    B, C, H, W = x.shape
    hp, wp = H // PATCH, W // PATCH
    xb = x.astype(jnp.bfloat16).reshape(B, C, hp, PATCH, wp, PATCH)
    xb = jnp.transpose(xb, (0, 1, 3, 5, 2, 4))            # (B, C, dy, dx, hp, wp)
    return xb.reshape(B, C * PATCH * PATCH, hp * wp)


def _backbone_kernel(inv_np,
                     p1_ref, p2_ref, p3_ref,
                     w_emb_ref, b_emb_ref, gamma_ref, beta_ref,
                     w_head_ref, b_head_ref,
                     o1_ref, o2_ref, o3_ref,
                     a1_ref, a2_ref, a3_ref):
    # p*_ref : (B_TILE, 48, tok_tile) bf16      w_emb_ref : (48, 768) bf16
    # b_emb/gamma/beta : (1, 768) f32           w_head_ref: (768, 512) bf16, b_head (1,512)
    # o*_ref : (B_TILE, 512) f32                a*_ref    : (B_TILE, 48) f32 accumulators
    k = pl.program_id(1)
    patch_refs = (p1_ref, p2_ref, p3_ref)
    acc_refs = (a1_ref, a2_ref, a3_ref)
    out_refs = (o1_ref, o2_ref, o3_ref)

    @pl.when(k == 0)
    def _():
        for acc in acc_refs:
            acc[...] = jnp.zeros_like(acc)

    # Pool-first: the patch embedding is affine, so mean-then-embed == embed-then-mean.
    # Accumulate the token (lane-axis) sum in f32; zero-padded tokens add nothing.
    for p, acc in zip(patch_refs, acc_refs):
        acc[...] += jnp.sum(p[...].astype(jnp.float32), axis=-1)

    @pl.when(k == pl.num_programs(1) - 1)
    def _():
        for acc, out in zip(acc_refs, out_refs):
            pooled = acc[...] * inv_np                                       # (B_TILE, 48) f32

            # Patch embedding: tiny MXU GEMM (bf16 in, f32 acc).
            emb = jnp.dot(pooled.astype(jnp.bfloat16), w_emb_ref[...],
                          preferred_element_type=jnp.float32) + b_emb_ref[...]  # (B_TILE,768)

            # LayerNorm over the feature dim (f32).
            mu = jnp.mean(emb, axis=-1, keepdims=True)
            var = jnp.mean((emb - mu) ** 2, axis=-1, keepdims=True)
            normed = (emb - mu) * jax.lax.rsqrt(var + 1e-5)
            normed = normed * gamma_ref[...] + beta_ref[...]

            # Head: Linear(768 -> 512) on the MXU.
            out[...] = jnp.dot(normed.astype(jnp.bfloat16), w_head_ref[...],
                               preferred_element_type=jnp.float32) + b_head_ref[...]


def comparison_models_no_concat_forward(x1, x2, x3, params):
    """Shared backbone applied to all three inputs in one fused pallas_call."""
    B, C, H, W = x1.shape
    assert H % PATCH == 0 and W % PATCH == 0, "spatial dims must be multiples of 4"
    pdim = C * PATCH * PATCH
    nP = (H // PATCH) * (W // PATCH)

    # Per-input patch features; the three inputs stay separate (no concat HBM pass).
    feats = [_extract_patch_features(x) for x in (x1, x2, x3)]

    BP = _round_up(B, B_TILE)
    if nP <= MAX_TOKEN_TILE:
        tok_tile = nP                       # full-extent minor dim (exempt from the 128 rule)
        nP_pad = nP
    else:
        tok_tile = MAX_TOKEN_TILE           # multiple of 128
        nP_pad = _round_up(nP, tok_tile)

    if BP != B or nP_pad != nP:
        feats = [jnp.pad(f, ((0, BP - B), (0, 0), (0, nP_pad - nP))) for f in feats]

    grid = (BP // B_TILE, nP_pad // tok_tile)
    patch_spec = pl.BlockSpec((B_TILE, pdim, tok_tile), lambda b, k: (b, 0, k))
    resident = lambda shape: pl.BlockSpec(shape, lambda b, k: (0, 0))   # stays in VMEM
    out_spec = pl.BlockSpec((B_TILE, OUT_DIM), lambda b, k: (b, 0))
    out_sds = jax.ShapeDtypeStruct((BP, OUT_DIM), jnp.float32)

    o1, o2, o3 = pl.pallas_call(
        functools.partial(_backbone_kernel, 1.0 / float(nP)),
        out_shape=(out_sds, out_sds, out_sds),
        grid_spec=pltpu.PrefetchScalarGridSpec(
            num_scalar_prefetch=0,
            grid=grid,
            in_specs=[patch_spec, patch_spec, patch_spec,
                      resident((pdim, EMBED_DIM)),
                      resident((1, EMBED_DIM)),
                      resident((1, EMBED_DIM)),
                      resident((1, EMBED_DIM)),
                      resident((EMBED_DIM, OUT_DIM)),
                      resident((1, OUT_DIM))],
            out_specs=[out_spec, out_spec, out_spec],
            scratch_shapes=[pltpu.VMEM((B_TILE, pdim), jnp.float32)] * 3,
        ),
        compiler_params=pltpu.CompilerParams(
            dimension_semantics=("parallel", "arbitrary")),   # batch parallel, tokens reduce
    )(feats[0], feats[1], feats[2],
      params["w_emb"], params["b_emb"], params["gamma"], params["beta"],
      params["w_head"], params["b_head"])

    view = lambda o: o[:B].reshape(-1, OUT_DIM, 1, 1)         # .view(-1, 512, 1, 1)
    return view(o1), view(o2), view(o3)


def _reference(x1, x2, x3, params):
    """Pure-JAX f32 reference of the same forward (bf16-rounded weights)."""
    w_emb = params["w_emb"].astype(jnp.float32)
    w_head = params["w_head"].astype(jnp.float32)

    def backbone(x):
        B, C, H, W = x.shape
        xr = x.reshape(B, C, H // PATCH, PATCH, W // PATCH, PATCH)
        pooled = xr.mean(axis=(2, 4)).reshape(B, C * PATCH * PATCH)   # order c*16+dy*4+dx
        emb = pooled @ w_emb + params["b_emb"]
        mu = emb.mean(-1, keepdims=True)
        var = ((emb - mu) ** 2).mean(-1, keepdims=True)
        normed = (emb - mu) / jnp.sqrt(var + 1e-5)
        normed = normed * params["gamma"] + params["beta"]
        out = normed @ w_head + params["b_head"]
        return out.reshape(-1, OUT_DIM, 1, 1)

    return backbone(x1), backbone(x2), backbone(x3)


if __name__ == "__main__":
    key = jax.random.PRNGKey(0)
    k_x1, k_x2, k_x3, k_p = jax.random.split(key, 4)

    B, C, H, W = 2, 3, 16, 16                 # small NCHW images
    x1 = jax.random.normal(k_x1, (B, C, H, W), jnp.float32)
    x2 = jax.random.normal(k_x2, (B, C, H, W), jnp.float32)
    x3 = jax.random.normal(k_x3, (B, C, H, W), jnp.float32)

    params = make_params(k_p, in_dim=C * PATCH * PATCH)

    fwd = jax.jit(lambda a, b, c: comparison_models_no_concat_forward(a, b, c, params))
    f1, f2, f3 = fwd(x1, x2, x3)
    jax.block_until_ready((f1, f2, f3))

    assert f1.shape == (B, OUT_DIM, 1, 1)
    assert f2.shape == (B, OUT_DIM, 1, 1)
    assert f3.shape == (B, OUT_DIM, 1, 1)

    r1, r2, r3 = _reference(x1, x2, x3, params)
    for got, ref in ((f1, r1), (f2, r2), (f3, r3)):
        assert bool(jnp.all(jnp.isfinite(got))), "non-finite output"
        err = float(jnp.max(jnp.abs(got - ref)))
        assert jnp.allclose(got, ref, atol=1e-1, rtol=1e-1), f"max abs err {err}"

    print("KERNEL_OK")
</pallas_src>

<mosaic_0001>
module attributes {stable_mosaic.version = 11 : i64} {
  func.func @_backbone_kernel(%arg0: i32, %arg1: i32, %arg2: memref<8x48x16xbf16, #tpu.memory_space<vmem>>, %arg3: memref<8x48x16xbf16, #tpu.memory_space<vmem>>, %arg4: memref<8x48x16xbf16, #tpu.memory_space<vmem>>, %arg5: memref<48x768xbf16, #tpu.memory_space<vmem>>, %arg6: memref<1x768xf32, #tpu.memory_space<vmem>>, %arg7: memref<1x768xf32, #tpu.memory_space<vmem>>, %arg8: memref<1x768xf32, #tpu.memory_space<vmem>>, %arg9: memref<768x512xbf16, #tpu.memory_space<vmem>>, %arg10: memref<1x512xf32, #tpu.memory_space<vmem>>, %arg11: memref<8x512xf32, #tpu.memory_space<vmem>>, %arg12: memref<8x512xf32, #tpu.memory_space<vmem>>, %arg13: memref<8x512xf32, #tpu.memory_space<vmem>>, %arg14: memref<8x48xf32, #tpu.memory_space<vmem>>, %arg15: memref<8x48xf32, #tpu.memory_space<vmem>>, %arg16: memref<8x48xf32, #tpu.memory_space<vmem>>) attributes {dimension_semantics = [#tpu.dimension_semantics<parallel>, #tpu.dimension_semantics<arbitrary>], iteration_bounds = array<i64: 1, 1>, scalar_prefetch = 0 : i64, scratch_operands = 3 : i64, tpu.core_type = #tpu.core_type<tc>, window_params = [{transform_indices = @transform_0, window_bounds = array<i64: 8, 48, 16>}, {transform_indices = @transform_1, window_bounds = array<i64: 8, 48, 16>}, {transform_indices = @transform_2, window_bounds = array<i64: 8, 48, 16>}, {pipeline_mode = #tpu.pipeline_mode<synchronous>, transform_indices = @transform_3, window_bounds = array<i64: 48, 768>}, {pipeline_mode = #tpu.pipeline_mode<synchronous>, transform_indices = @transform_4, window_bounds = array<i64: 1, 768>}, {pipeline_mode = #tpu.pipeline_mode<synchronous>, transform_indices = @transform_5, window_bounds = array<i64: 1, 768>}, {pipeline_mode = #tpu.pipeline_mode<synchronous>, transform_indices = @transform_6, window_bounds = array<i64: 1, 768>}, {pipeline_mode = #tpu.pipeline_mode<synchronous>, transform_indices = @transform_7, window_bounds = array<i64: 768, 512>}, {pipeline_mode = #tpu.pipeline_mode<synchronous>, transform_indices = @transform_8, window_bounds = array<i64: 1, 512>}, {transform_indices = @transform_9, window_bounds = array<i64: 8, 512>}, {transform_indices = @transform_10, window_bounds = array<i64: 8, 512>}, {transform_indices = @transform_11, window_bounds = array<i64: 8, 512>}]} {
    %c0_i32 = arith.constant 0 : i32
    %0 = arith.cmpi eq, %arg1, %c0_i32 : i32
    %1 = arith.extui %0 : i1 to i32
    %c0_i32_0 = arith.constant 0 : i32
    %2 = arith.cmpi ne, %1, %c0_i32_0 : i32
    scf.if %2 {
      %cst_25 = arith.constant 0.000000e+00 : f32
      %24 = vector.broadcast %cst_25 : f32 to vector<8x48xf32>
      %c0_26 = arith.constant 0 : index
      %c0_27 = arith.constant 0 : index
      %25 = vector.load %arg14[%c0_26, %c0_27] : memref<8x48xf32, #tpu.memory_space<vmem>>, vector<8x48xf32>
      tpu.vector_store %arg14[%c0_26, %c0_27], %24 {strides = array<i32>} : memref<8x48xf32, #tpu.memory_space<vmem>>, vector<8x48xf32>,
      %cst_28 = arith.constant 0.000000e+00 : f32
      %26 = vector.broadcast %cst_28 : f32 to vector<8x48xf32>
      %c0_29 = arith.constant 0 : index
      %c0_30 = arith.constant 0 : index
      %27 = vector.load %arg15[%c0_29, %c0_30] : memref<8x48xf32, #tpu.memory_space<vmem>>, vector<8x48xf32>
      tpu.vector_store %arg15[%c0_29, %c0_30], %26 {strides = array<i32>} : memref<8x48xf32, #tpu.memory_space<vmem>>, vector<8x48xf32>,
      %cst_31 = arith.constant 0.000000e+00 : f32
      %28 = vector.broadcast %cst_31 : f32 to vector<8x48xf32>
      %c0_32 = arith.constant 0 : index
      %c0_33 = arith.constant 0 : index
      %29 = vector.load %arg16[%c0_32, %c0_33] : memref<8x48xf32, #tpu.memory_space<vmem>>, vector<8x48xf32>
      tpu.vector_store %arg16[%c0_32, %c0_33], %28 {strides = array<i32>} : memref<8x48xf32, #tpu.memory_space<vmem>>, vector<8x48xf32>,
    } else {
    }
    %c0 = arith.constant 0 : index
    %c0_1 = arith.constant 0 : index
    %3 = vector.load %arg14[%c0, %c0_1] : memref<8x48xf32, #tpu.memory_space<vmem>>, vector<8x48xf32>
    %c0_2 = arith.constant 0 : index
    %c0_3 = arith.constant 0 : index
    %c0_4 = arith.constant 0 : index
    %4 = vector.load %arg2[%c0_2, %c0_3, %c0_4] : memref<8x48x16xbf16, #tpu.memory_space<vmem>>, vector<8x48x16xbf16>
    %5 = arith.extf %4 : vector<8x48x16xbf16> to vector<8x48x16xf32>
    %cst = arith.constant dense<0.000000e+00> : vector<8x48xf32>
    %6 = vector.multi_reduction <add>, %5, %cst [2] : vector<8x48x16xf32> to vector<8x48xf32>
    %7 = arith.addf %3, %6 : vector<8x48xf32>
    %c0_5 = arith.constant 0 : index
    %c0_6 = arith.constant 0 : index
    %8 = vector.load %arg14[%c0_5, %c0_6] : memref<8x48xf32, #tpu.memory_space<vmem>>, vector<8x48xf32>
    tpu.vector_store %arg14[%c0_5, %c0_6], %7 {strides = array<i32>} : memref<8x48xf32, #tpu.memory_space<vmem>>, vector<8x48xf32>,
    %c0_7 = arith.constant 0 : index
    %c0_8 = arith.constant 0 : index
    %9 = vector.load %arg15[%c0_7, %c0_8] : memref<8x48xf32, #tpu.memory_space<vmem>>, vector<8x48xf32>
    %c0_9 = arith.constant 0 : index
    %c0_10 = arith.constant 0 : index
    %c0_11 = arith.constant 0 : index
    %10 = vector.load %arg3[%c0_9, %c0_10, %c0_11] : memref<8x48x16xbf16, #tpu.memory_space<vmem>>, vector<8x48x16xbf16>
    %11 = arith.extf %10 : vector<8x48x16xbf16> to vector<8x48x16xf32>
    %cst_12 = arith.constant dense<0.000000e+00> : vector<8x48xf32>
    %12 = vector.multi_reduction <add>, %11, %cst_12 [2] : vector<8x48x16xf32> to vector<8x48xf32>
    %13 = arith.addf %9, %12 : vector<8x48xf32>
    %c0_13 = arith.constant 0 : index
    %c0_14 = arith.constant 0 : index
    %14 = vector.load %arg15[%c0_13, %c0_14] : memref<8x48xf32, #tpu.memory_space<vmem>>, vector<8x48xf32>
    tpu.vector_store %arg15[%c0_13, %c0_14], %13 {strides = array<i32>} : memref<8x48xf32, #tpu.memory_space<vmem>>, vector<8x48xf32>,
    %c0_15 = arith.constant 0 : index
    %c0_16 = arith.constant 0 : index
    %15 = vector.load %arg16[%c0_15, %c0_16] : memref<8x48xf32, #tpu.memory_space<vmem>>, vector<8x48xf32>
    %c0_17 = arith.constant 0 : index
    %c0_18 = arith.constant 0 : index
    %c0_19 = arith.constant 0 : index
    %16 = vector.load %arg4[%c0_17, %c0_18, %c0_19] : memref<8x48x16xbf16, #tpu.memory_space<vmem>>, vector<8x48x16xbf16>
    %17 = arith.extf %16 : vector<8x48x16xbf16> to vector<8x48x16xf32>
    %cst_20 = arith.constant dense<0.000000e+00> : vector<8x48xf32>
    %18 = vector.multi_reduction <add>, %17, %cst_20 [2] : vector<8x48x16xf32> to vector<8x48xf32>
    %19 = arith.addf %15, %18 : vector<8x48xf32>
    %c0_21 = arith.constant 0 : index
    %c0_22 = arith.constant 0 : index
    %20 = vector.load %arg16[%c0_21, %c0_22] : memref<8x48xf32, #tpu.memory_space<vmem>>, vector<8x48xf32>
    tpu.vector_store %arg16[%c0_21, %c0_22], %19 {strides = array<i32>} : memref<8x48xf32, #tpu.memory_space<vmem>>, vector<8x48xf32>,
    %c0_i32_23 = arith.constant 0 : i32
    %21 = arith.cmpi eq, %arg1, %c0_i32_23 : i32
    %22 = arith.extui %21 : i1 to i32
    %c0_i32_24 = arith.constant 0 : i32
    %23 = arith.cmpi ne, %22, %c0_i32_24 : i32
    scf.if %23 {
      %c0_25 = arith.constant 0 : index
      %c0_26 = arith.constant 0 : index
      %24 = vector.load %arg14[%c0_25, %c0_26] : memref<8x48xf32, #tpu.memory_space<vmem>>, vector<8x48xf32>
      %cst_27 = arith.constant 6.250000e-02 : f32
      %25 = vector.broadcast %cst_27 : f32 to vector<8x48xf32>
      %26 = arith.mulf %24, %25 : vector<8x48xf32>
      %27 = arith.truncf %26 : vector<8x48xf32> to vector<8x48xbf16>
      %c0_28 = arith.constant 0 : index
      %c0_29 = arith.constant 0 : index
      %28 = vector.load %arg5[%c0_28, %c0_29] : memref<48x768xbf16, #tpu.memory_space<vmem>>, vector<48x768xbf16>
      %cst_30 = arith.constant dense<0.000000e+00> : vector<8x768xf32>
      %29 = tpu.matmul %27, %28, %cst_30 {dimension_numbers = #tpu.dot_dimension_numbers<[1], [0], [0], [1], [0, 0, 1, 1], [], []>} : vector<8x48xbf16>, vector<48x768xbf16>, vector<8x768xf32> -> vector<8x768xf32>
      %c0_31 = arith.constant 0 : index
      %c0_32 = arith.constant 0 : index
      %30 = vector.load %arg6[%c0_31, %c0_32] : memref<1x768xf32, #tpu.memory_space<vmem>>, vector<1x768xf32>
      %31 = vector.broadcast %30 : vector<1x768xf32> to vector<8x768xf32>
      %32 = arith.addf %29, %31 : vector<8x768xf32>
      %cst_33 = arith.constant dense<0.000000e+00> : vector<8xf32>
      %33 = vector.multi_reduction <add>, %32, %cst_33 [1] : vector<8x768xf32> to vector<8xf32>
      %34 = vector.shape_cast %33 : vector<8xf32> to vector<8x1xf32>
      %cst_34 = arith.constant 7.680000e+02 : f32
      %35 = vector.broadcast %cst_34 : f32 to vector<8x1xf32>
      %36 = arith.divf %34, %35 : vector<8x1xf32>
      %37 = vector.broadcast %36 : vector<8x1xf32> to vector<8x768xf32>
      %38 = arith.subf %32, %37 : vector<8x768xf32>
      %39 = arith.mulf %38, %38 : vector<8x768xf32>
      %cst_35 = arith.constant dense<0.000000e+00> : vector<8xf32>
      %40 = vector.multi_reduction <add>, %39, %cst_35 [1] : vector<8x768xf32> to vector<8xf32>
      %41 = vector.shape_cast %40 : vector<8xf32> to vector<8x1xf32>
      %cst_36 = arith.constant 7.680000e+02 : f32
      %42 = vector.broadcast %cst_36 : f32 to vector<8x1xf32>
      %43 = arith.divf %41, %42 : vector<8x1xf32>
      %44 = vector.broadcast %36 : vector<8x1xf32> to vector<8x768xf32>
      %45 = arith.subf %32, %44 : vector<8x768xf32>
      %cst_37 = arith.constant 9.99999974E-6 : f32
      %46 = vector.broadcast %cst_37 : f32 to vector<8x1xf32>
      %47 = arith.addf %43, %46 : vector<8x1xf32>
      %48 = math.rsqrt %47 : vector<8x1xf32>
      %49 = vector.broadcast %48 : vector<8x1xf32> to vector<8x768xf32>
      %50 = arith.mulf %45, %49 : vector<8x768xf32>
      %c0_38 = arith.constant 0 : index
      %c0_39 = arith.constant 0 : index
      %51 = vector.load %arg7[%c0_38, %c0_39] : memref<1x768xf32, #tpu.memory_space<vmem>>, vector<1x768xf32>
      %52 = vector.broadcast %51 : vector<1x768xf32> to vector<8x768xf32>
      %53 = arith.mulf %50, %52 : vector<8x768xf32>
      %c0_40 = arith.constant 0 : index
      %c0_41 = arith.constant 0 : index
      %54 = vector.load %arg8[%c0_40, %c0_41] : memref<1x768xf32, #tpu.memory_space<vmem>>, vector<1x768xf32>
      %55 = vector.broadcast %54 : vector<1x768xf32> to vector<8x768xf32>
      %56 = arith.addf %53, %55 : vector<8x768xf32>
      %57 = arith.truncf %56 : vector<8x768xf32> to vector<8x768xbf16>
      %c0_42 = arith.constant 0 : index
      %c0_43 = arith.constant 0 : index
      %58 = vector.load %arg9[%c0_42, %c0_43] : memref<768x512xbf16, #tpu.memory_space<vmem>>, vector<768x512xbf16>
      %cst_44 = arith.constant dense<0.000000e+00> : vector<8x512xf32>
      %59 = tpu.matmul %57, %58, %cst_44 {dimension_numbers = #tpu.dot_dimension_numbers<[1], [0], [0], [1], [0, 0, 1, 1], [], []>} : vector<8x768xbf16>, vector<768x512xbf16>, vector<8x512xf32> -> vector<8x512xf32>
      %c0_45 = arith.constant 0 : index
      %c0_46 = arith.constant 0 : index
      %60 = vector.load %arg10[%c0_45, %c0_46] : memref<1x512xf32, #tpu.memory_space<vmem>>, vector<1x512xf32>
      %61 = vector.broadcast %60 : vector<1x512xf32> to vector<8x512xf32>
      %62 = arith.addf %59, %61 : vector<8x512xf32>
      %c0_47 = arith.constant 0 : index
      %c0_48 = arith.constant 0 : index
      %63 = vector.load %arg11[%c0_47, %c0_48] : memref<8x512xf32, #tpu.memory_space<vmem>>, vector<8x512xf32>
      tpu.vector_store %arg11[%c0_47, %c0_48], %62 {strides = array<i32>} : memref<8x512xf32, #tpu.memory_space<vmem>>, vector<8x512xf32>,
      %c0_49 = arith.constant 0 : index
      %c0_50 = arith.constant 0 : index
      %64 = vector.load %arg15[%c0_49, %c0_50] : memref<8x48xf32, #tpu.memory_space<vmem>>, vector<8x48xf32>
      %cst_51 = arith.constant 6.250000e-02 : f32
      %65 = vector.broadcast %cst_51 : f32 to vector<8x48xf32>
      %66 = arith.mulf %64, %65 : vector<8x48xf32>
      %67 = arith.truncf %66 : vector<8x48xf32> to vector<8x48xbf16>
      %c0_52 = arith.constant 0 : index
      %c0_53 = arith.constant 0 : index
      %68 = vector.load %arg5[%c0_52, %c0_53] : memref<48x768xbf16, #tpu.memory_space<vmem>>, vector<48x768xbf16>
      %cst_54 = arith.constant dense<0.000000e+00> : vector<8x768xf32>
      %69 = tpu.matmul %67, %68, %cst_54 {dimension_numbers = #tpu.dot_dimension_numbers<[1], [0], [0], [1], [0, 0, 1, 1], [], []>} : vector<8x48xbf16>, vector<48x768xbf16>, vector<8x768xf32> -> vector<8x768xf32>
      %c0_55 = arith.constant 0 : index
      %c0_56 = arith.constant 0 : index
      %70 = vector.load %arg6[%c0_55, %c0_56] : memref<1x768xf32, #tpu.memory_space<vmem>>, vector<1x768xf32>
      %71 = vector.broadcast %70 : vector<1x768xf32> to vector<8x768xf32>
      %72 = arith.addf %69, %71 : vector<8x768xf32>
      %cst_57 = arith.constant dense<0.000000e+00> : vector<8xf32>
      %73 = vector.multi_reduction <add>, %72, %cst_57 [1] : vector<8x768xf32> to vector<8xf32>
      %74 = vector.shape_cast %73 : vector<8xf32> to vector<8x1xf32>
      %cst_58 = arith.constant 7.680000e+02 : f32
      %75 = vector.broadcast %cst_58 : f32 to vector<8x1xf32>
      %76 = arith.divf %74, %75 : vector<8x1xf32>
      %77 = vector.broadcast %76 : vector<8x1xf32> to vector<8x768xf32>
      %78 = arith.subf %72, %77 : vector<8x768xf32>
      %79 = arith.mulf %78, %78 : vector<8x768xf32>
      %cst_59 = arith.constant dense<0.000000e+00> : vector<8xf32>
      %80 = vector.multi_reduction <add>, %79, %cst_59 [1] : vector<8x768xf32> to vector<8xf32>
      %81 = vector.shape_cast %80 : vector<8xf32> to vector<8x1xf32>
      %cst_60 = arith.constant 7.680000e+02 : f32
      %82 = vector.broadcast %cst_60 : f32 to vector<8x1xf32>
      %83 = arith.divf %81, %82 : vector<8x1xf32>
      %84 = vector.broadcast %76 : vector<8x1xf32> to vector<8x768xf32>
      %85 = arith.subf %72, %84 : vector<8x768xf32>
      %cst_61 = arith.constant 9.99999974E-6 : f32
      %86 = vector.broadcast %cst_61 : f32 to vector<8x1xf32>
      %87 = arith.addf %83, %86 : vector<8x1xf32>
      %88 = math.rsqrt %87 : vector<8x1xf32>
      %89 = vector.broadcast %88 : vector<8x1xf32> to vector<8x768xf32>
      %90 = arith.mulf %85, %89 : vector<8x768xf32>
      %c0_62 = arith.constant 0 : index
      %c0_63 = arith.constant 0 : index
      %91 = vector.load %arg7[%c0_62, %c0_63] : memref<1x768xf32, #tpu.memory_space<vmem>>, vector<1x768xf32>
      %92 = vector.broadcast %91 : vector<1x768xf32> to vector<8x768xf32>
      %93 = arith.mulf %90, %92 : vector<8x768xf32>
      %c0_64 = arith.constant 0 : index
      %c0_65 = arith.constant 0 : index
      %94 = vector.load %arg8[%c0_64, %c0_65] : memref<1x768xf32, #tpu.memory_space<vmem>>, vector<1x768xf32>
      %95 = vector.broadcast %94 : vector<1x768xf32> to vector<8x768xf32>
      %96 = arith.addf %93, %95 : vector<8x768xf32>
      %97 = arith.truncf %96 : vector<8x768xf32> to vector<8x768xbf16>
      %c0_66 = arith.constant 0 : index
      %c0_67 = arith.constant 0 : index
      %98 = vector.load %arg9[%c0_66, %c0_67] : memref<768x512xbf16, #tpu.memory_space<vmem>>, vector<768x512xbf16>
      %cst_68 = arith.constant dense<0.000000e+00> : vector<8x512xf32>
      %99 = tpu.matmul %97, %98, %cst_68 {dimension_numbers = #tpu.dot_dimension_numbers<[1], [0], [0], [1], [0, 0, 1, 1], [], []>} : vector<8x768xbf16>, vector<768x512xbf16>, vector<8x512xf32> -> vector<8x512xf32>
      %c0_69 = arith.constant 0 : index
      %c0_70 = arith.constant 0 : index
      %100 = vector.load %arg10[%c0_69, %c0_70] : memref<1x512xf32, #tpu.memory_space<vmem>>, vector<1x512xf32>
      %101 = vector.broadcast %100 : vector<1x512xf32> to vector<8x512xf32>
      %102 = arith.addf %99, %101 : vector<8x512xf32>
      %c0_71 = arith.constant 0 : index
      %c0_72 = arith.constant 0 : index
      %103 = vector.load %arg12[%c0_71, %c0_72] : memref<8x512xf32, #tpu.memory_space<vmem>>, vector<8x512xf32>
      tpu.vector_store %arg12[%c0_71, %c0_72], %102 {strides = array<i32>} : memref<8x512xf32, #tpu.memory_space<vmem>>, vector<8x512xf32>,
      %c0_73 = arith.constant 0 : index
      %c0_74 = arith.constant 0 : index
      %104 = vector.load %arg16[%c0_73, %c0_74] : memref<8x48xf32, #tpu.memory_space<vmem>>, vector<8x48xf32>
      %cst_75 = arith.constant 6.250000e-02 : f32
      %105 = vector.broadcast %cst_75 : f32 to vector<8x48xf32>
      %106 = arith.mulf %104, %105 : vector<8x48xf32>
      %107 = arith.truncf %106 : vector<8x48xf32> to vector<8x48xbf16>
      %c0_76 = arith.constant 0 : index
      %c0_77 = arith.constant 0 : index
      %108 = vector.load %arg5[%c0_76, %c0_77] : memref<48x768xbf16, #tpu.memory_space<vmem>>, vector<48x768xbf16>
      %cst_78 = arith.constant dense<0.000000e+00> : vector<8x768xf32>
      %109 = tpu.matmul %107, %108, %cst_78 {dimension_numbers = #tpu.dot_dimension_numbers<[1], [0], [0], [1], [0, 0, 1, 1], [], []>} : vector<8x48xbf16>, vector<48x768xbf16>, vector<8x768xf32> -> vector<8x768xf32>
      %c0_79 = arith.constant 0 : index
      %c0_80 = arith.constant 0 : index
      %110 = vector.load %arg6[%c0_79, %c0_80] : memref<1x768xf32, #tpu.memory_space<vmem>>, vector<1x768xf32>
      %111 = vector.broadcast %110 : vector<1x768xf32> to vector<8x768xf32>
      %112 = arith.addf %109, %111 : vector<8x768xf32>
      %cst_81 = arith.constant dense<0.000000e+00> : vector<8xf32>
      %113 = vector.multi_reduction <add>, %112, %cst_81 [1] : vector<8x768xf32> to vector<8xf32>
      %114 = vector.shape_cast %113 : vector<8xf32> to vector<8x1xf32>
      %cst_82 = arith.constant 7.680000e+02 : f32
      %115 = vector.broadcast %cst_82 : f32 to vector<8x1xf32>
      %116 = arith.divf %114, %115 : vector<8x1xf32>
      %117 = vector.broadcast %116 : vector<8x1xf32> to vector<8x768xf32>
      %118 = arith.subf %112, %117 : vector<8x768xf32>
      %119 = arith.mulf %118, %118 : vector<8x768xf32>
      %cst_83 = arith.constant dense<0.000000e+00> : vector<8xf32>
      %120 = vector.multi_reduction <add>, %119, %cst_83 [1] : vector<8x768xf32> to vector<8xf32>
      %121 = vector.shape_cast %120 : vector<8xf32> to vector<8x1xf32>
      %cst_84 = arith.constant 7.680000e+02 : f32
      %122 = vector.broadcast %cst_84 : f32 to vector<8x1xf32>
      %123 = arith.divf %121, %122 : vector<8x1xf32>
      %124 = vector.broadcast %116 : vector<8x1xf32> to vector<8x768xf32>
      %125 = arith.subf %112, %124 : vector<8x768xf32>
      %cst_85 = arith.constant 9.99999974E-6 : f32
      %126 = vector.broadcast %cst_85 : f32 to vector<8x1xf32>
      %127 = arith.addf %123, %126 : vector<8x1xf32>
      %128 = math.rsqrt %127 : vector<8x1xf32>
      %129 = vector.broadcast %128 : vector<8x1xf32> to vector<8x768xf32>
      %130 = arith.mulf %125, %129 : vector<8x768xf32>
      %c0_86 = arith.constant 0 : index
      %c0_87 = arith.constant 0 : index
      %131 = vector.load %arg7[%c0_86, %c0_87] : memref<1x768xf32, #tpu.memory_space<vmem>>, vector<1x768xf32>
      %132 = vector.broadcast %131 : vector<1x768xf32> to vector<8x768xf32>
      %133 = arith.mulf %130, %132 : vector<8x768xf32>
      %c0_88 = arith.constant 0 : index
      %c0_89 = arith.constant 0 : index
      %134 = vector.load %arg8[%c0_88, %c0_89] : memref<1x768xf32, #tpu.memory_space<vmem>>, vector<1x768xf32>
      %135 = vector.broadcast %134 : vector<1x768xf32> to vector<8x768xf32>
      %136 = arith.addf %133, %135 : vector<8x768xf32>
      %137 = arith.truncf %136 : vector<8x768xf32> to vector<8x768xbf16>
      %c0_90 = arith.constant 0 : index
      %c0_91 = arith.constant 0 : index
      %138 = vector.load %arg9[%c0_90, %c0_91] : memref<768x512xbf16, #tpu.memory_space<vmem>>, vector<768x512xbf16>
      %cst_92 = arith.constant dense<0.000000e+00> : vector<8x512xf32>
      %139 = tpu.matmul %137, %138, %cst_92 {dimension_numbers = #tpu.dot_dimension_numbers<[1], [0], [0], [1], [0, 0, 1, 1], [], []>} : vector<8x768xbf16>, vector<768x512xbf16>, vector<8x512xf32> -> vector<8x512xf32>
      %c0_93 = arith.constant 0 : index
      %c0_94 = arith.constant 0 : index
      %140 = vector.load %arg10[%c0_93, %c0_94] : memref<1x512xf32, #tpu.memory_space<vmem>>, vector<1x512xf32>
      %141 = vector.broadcast %140 : vector<1x512xf32> to vector<8x512xf32>
      %142 = arith.addf %139, %141 : vector<8x512xf32>
      %c0_95 = arith.constant 0 : index
      %c0_96 = arith.constant 0 : index
      %143 = vector.load %arg13[%c0_95, %c0_96] : memref<8x512xf32, #tpu.memory_space<vmem>>, vector<8x512xf32>
      tpu.vector_store %arg13[%c0_95, %c0_96], %142 {strides = array<i32>} : memref<8x512xf32, #tpu.memory_space<vmem>>, vector<8x512xf32>,
    } else {
    }
    return
  }
  func.func @transform_0(%arg0: i32, %arg1: i32) -> (i32, i32, i32) {
    %c0_i32 = arith.constant 0 : i32
    %c0_i32_0 = arith.constant 0 : i32
    return %arg0, %c0_i32, %arg1 : i32, i32, i32
  }
  func.func @transform_1(%arg0: i32, %arg1: i32) -> (i32, i32, i32) {
    %c0_i32 = arith.constant 0 : i32
    %c0_i32_0 = arith.constant 0 : i32
    return %arg0, %c0_i32, %arg1 : i32, i32, i32
  }
  func.func @transform_2(%arg0: i32, %arg1: i32) -> (i32, i32, i32) {
    %c0_i32 = arith.constant 0 : i32
    %c0_i32_0 = arith.constant 0 : i32
    return %arg0, %c0_i32, %arg1 : i32, i32, i32
  }
  func.func @transform_3(%arg0: i32, %arg1: i32) -> (i32, i32) {
    %c0_i32 = arith.constant 0 : i32
    %c0_i32_0 = arith.constant 0 : i32
    %c0_i32_1 = arith.constant 0 : i32
    return %c0_i32, %c0_i32_0 : i32, i32
  }
  func.func @transform_4(%arg0: i32, %arg1: i32) -> (i32, i32) {
    %c0_i32 = arith.constant 0 : i32
    %c0_i32_0 = arith.constant 0 : i32
    %c0_i32_1 = arith.constant 0 : i32
    return %c0_i32, %c0_i32_0 : i32, i32
  }
  func.func @transform_5(%arg0: i32, %arg1: i32) -> (i32, i32) {
    %c0_i32 = arith.constant 0 : i32
    %c0_i32_0 = arith.constant 0 : i32
    %c0_i32_1 = arith.constant 0 : i32
    return %c0_i32, %c0_i32_0 : i32, i32
  }
  func.func @transform_6(%arg0: i32, %arg1: i32) -> (i32, i32) {
    %c0_i32 = arith.constant 0 : i32
    %c0_i32_0 = arith.constant 0 : i32
    %c0_i32_1 = arith.constant 0 : i32
    return %c0_i32, %c0_i32_0 : i32, i32
  }
  func.func @transform_7(%arg0: i32, %arg1: i32) -> (i32, i32) {
    %c0_i32 = arith.constant 0 : i32
    %c0_i32_0 = arith.constant 0 : i32
    %c0_i32_1 = arith.constant 0 : i32
    return %c0_i32, %c0_i32_0 : i32, i32
  }
  func.func @transform_8(%arg0: i32, %arg1: i32) -> (i32, i32) {
    %c0_i32 = arith.constant 0 : i32
    %c0_i32_0 = arith.constant 0 : i32
    %c0_i32_1 = arith.constant 0 : i32
    return %c0_i32, %c0_i32_0 : i32, i32
  }
  func.func @transform_9(%arg0: i32, %arg1: i32) -> (i32, i32) {
    %c0_i32 = arith.constant 0 : i32
    %c0_i32_0 = arith.constant 0 : i32
    return %arg0, %c0_i32 : i32, i32
  }
  func.func @transform_10(%arg0: i32, %arg1: i32) -> (i32, i32) {
    %c0_i32 = arith.constant 0 : i32
    %c0_i32_0 = arith.constant 0 : i32
    return %arg0, %c0_i32 : i32, i32
  }
  func.func @transform_11(%arg0: i32, %arg1: i32) -> (i32, i32) {
    %c0_i32 = arith.constant 0 : i32
    %c0_i32_0 = arith.constant 0 : i32
    return %arg0, %c0_i32 : i32, i32
  }
}

</mosaic_0001>

<llo_original>
// kernel: _lambda_.1
$region0: #{_lambda_.1}
  #allocation0 [shape = 'u32[]', space=smem, size = 0x4, offset = 0x4, fixed_abs, tag = 'smem constant byte address 0x4 - core index']
  #allocation1 [shape = 'u32[144,128]{1,0:T(1,128)}', space=vmem, size = 0x12000, scoped, tag = 'internal scratch']
  #allocation2 [shape = 'f32[8,48]{1,0:T(8,128)}', space=vmem, size = 0x1000, scoped, tag = 'scratch operand']
  #allocation3 [shape = 'f32[8,48]{1,0:T(8,128)}', space=vmem, size = 0x1000, scoped, tag = 'scratch operand']
  #allocation4 [shape = 'f32[8,48]{1,0:T(8,128)}', space=vmem, size = 0x1000, scoped, tag = 'scratch operand']
  %s0 = inlined_call_operand.vmem [shape: bf16[8,48,16], index: 0, kind: input, shape index: {}]
  %s1 = inlined_call_operand.vmem [shape: bf16[8,48,16], index: 1, kind: input, shape index: {}]
  %s2 = inlined_call_operand.vmem [shape: bf16[8,48,16], index: 2, kind: input, shape index: {}]
  %s3 = inlined_call_operand.vmem [shape: bf16[48,768], index: 3, kind: input, shape index: {}]
  %s4 = inlined_call_operand.vmem [shape: f32[1,768], index: 4, kind: input, shape index: {}, may-alias: {4,6}]
  %s5 = inlined_call_operand.vmem [shape: f32[1,768], index: 5, kind: input, shape index: {}]
  %s6 = inlined_call_operand.vmem [shape: f32[1,768], index: 6, kind: input, shape index: {}, may-alias: {4,6}]
  %s7 = inlined_call_operand.vmem [shape: bf16[768,512], index: 7, kind: input, shape index: {}]
  %s8 = inlined_call_operand.vmem [shape: f32[1,512], index: 8, kind: input, shape index: {}]
  %s9 = inlined_call_operand.vmem [shape: f32[8,512], index: 9, kind: output, shape index: {0}]
  %s10 = inlined_call_operand.vmem [shape: f32[8,512], index: 10, kind: output, shape index: {1}]
  %s11 = inlined_call_operand.vmem [shape: f32[8,512], index: 11, kind: output, shape index: {2}]
  %12 = xla_tuple %s9, %s10, %s11
  %s13 = sld [smem:[#allocation0]]
  $region70: #{_lambda_.1} parent=0
    _
  %s15 = ssub.s32 1, %s13
  %s16 = scalar_select 0, %s15, %s13
  // Predicated region
  $region2: #{_lambda_.1} parent=0 // pred_check
    _
  $region3: #{_lambda_.1} parent=0 // pred_check_branch
    %18 = sbr.rel (0) target = $region5
  $region4: #{_lambda_.1} parent=0 // pred_region
    _
  $region5: #{_lambda_.1} parent=0 // pred_fallthru
    _
  // Predicated region
  $region6: #{_lambda_.1} parent=0 // pred_check
    _
  $region7: #{_lambda_.1} parent=0 // pred_check_branch
    %20 = sbr.rel (0) target = $region9
  $region8: #{_lambda_.1} parent=0 // pred_region
    _
  $region9: #{_lambda_.1} parent=0 // pred_fallthru
    _
  // Predicated region
  $region10: #{_lambda_.1} parent=0 // pred_check
    _
  $region11: #{_lambda_.1} parent=0 // pred_check_branch
    %22 = sbr.rel (0) target = $region13
  $region12: #{_lambda_.1} parent=0 // pred_region
    _
  $region13: #{_lambda_.1} parent=0 // pred_fallthru
    _
  // Predicated region
  $region14: #{_lambda_.1} parent=0 // pred_check
    _
  $region15: #{_lambda_.1} parent=0 // pred_check_branch
    %24 = sbr.rel (0) target = $region17
  $region16: #{_lambda_.1} parent=0 // pred_region
    _
  $region17: #{_lambda_.1} parent=0 // pred_fallthru
    _
  // Predicated region
  $region18: #{_lambda_.1} parent=0 // pred_check
    _
  $region19: #{_lambda_.1} parent=0 // pred_check_branch
    %26 = sbr.rel (0) target = $region21
  $region20: #{_lambda_.1} parent=0 // pred_region
    _
  $region21: #{_lambda_.1} parent=0 // pred_fallthru
    _
  // Predicated region
  $region22: #{_lambda_.1} parent=0 // pred_check
    _
  $region23: #{_lambda_.1} parent=0 // pred_check_branch
    %28 = sbr.rel (0) target = $region25
  $region24: #{_lambda_.1} parent=0 // pred_region
    _
  $region25: #{_lambda_.1} parent=0 // pred_fallthru
    _
  // Predicated region
  $region26: #{_lambda_.1} parent=0 // pred_check
    _
  $region27: #{_lambda_.1} parent=0 // pred_check_branch
    %30 = sbr.rel (0) target = $region29
  $region28: #{_lambda_.1} parent=0 // pred_region
    _
  $region29: #{_lambda_.1} parent=0 // pred_fallthru
    _
  // Predicated region
  $region30: #{_lambda_.1} parent=0 // pred_check
    _
  $region31: #{_lambda_.1} parent=0 // pred_check_branch
    %32 = sbr.rel (0) target = $region33
  $region32: #{_lambda_.1} parent=0 // pred_region
    _
  $region33: #{_lambda_.1} parent=0 // pred_fallthru
    _
  // Predicated region
  $region34: #{_lambda_.1} parent=0 // pred_check
    _
  $region35: #{_lambda_.1} parent=0 // pred_check_branch
    %34 = sbr.rel (0) target = $region37
  $region36: #{_lambda_.1} parent=0 // pred_region
    _
  $region37: #{_lambda_.1} parent=0 // pred_fallthru
    _
  %p36 = scmp.eq.s32.totalorder 0, 0
  // Predicated region
  $region38: #{_lambda_.1} parent=0 // pred_check
    %p37 = pneg %p36
  $region39: #{_lambda_.1} parent=0 // pred_check_branch
    %39 = sbr.rel (%p37) target = $region41
  $region40: #{_lambda_.1} parent=0 // pred_region
    %vm40 = vcmask 392192
    %41 = vst.msk [vmem:[#allocation2] sm:$0xff] %vm40, 0.0
    %42 = vst.msk [vmem:[#allocation3] sm:$0xff] %vm40, 0.0
    %43 = vst.msk [vmem:[#allocation4] sm:$0xff] %vm40, 0.0
  $region41: #{_lambda_.1} parent=0 // pred_fallthru
    _
  %v44 = vld [vmem:[#allocation2] sm:$0xff]
  %v45 = vld [vmem:[%s0] sm:$0xf]
  %v46 = vld [vmem:[%s0 + $0x4] sm:$0xf]
  %v47 = vld [vmem:[%s0 + $0x8] sm:$0xf]
  %v48 = vld [vmem:[%s0 + $0xc] sm:$0xf]
  %v49 = vld [vmem:[%s0 + $0x10] sm:$0xf]
  %v50 = vld [vmem:[%s0 + $0x14] sm:$0xf]
  %v51 = vld [vmem:[%s0 + $0x18] sm:$0xf]
  %v52 = vld [vmem:[%s0 + $0x1c] sm:$0xf]
  %v53 = vld [vmem:[%s0 + $0x20] sm:$0xf]
  %v54 = vld [vmem:[%s0 + $0x24] sm:$0xf]
  %v55 = vld [vmem:[%s0 + $0x28] sm:$0xf]
  %v56 = vld [vmem:[%s0 + $0x2c] sm:$0xf]
  %v57 = vld [vmem:[%s0 + $0x30] sm:$0xf]
  %v58 = vld [vmem:[%s0 + $0x34] sm:$0xf]
  %v59 = vld [vmem:[%s0 + $0x38] sm:$0xf]
  %v60 = vld [vmem:[%s0 + $0x3c] sm:$0xf]
  %v61 = vld [vmem:[%s0 + $0x40] sm:$0xf]
  %v62 = vld [vmem:[%s0 + $0x44] sm:$0xf]
  %v63 = vld [vmem:[%s0 + $0x48] sm:$0xf]
  %v64 = vld [vmem:[%s0 + $0x4c] sm:$0xf]
  %v65 = vld [vmem:[%s0 + $0x50] sm:$0xf]
  %v66 = vld [vmem:[%s0 + $0x54] sm:$0xf]
  %v67 = vld [vmem:[%s0 + $0x58] sm:$0xf]
  %v68 = vld [vmem:[%s0 + $0x5c] sm:$0xf]
  %v69 = vld [vmem:[%s0 + $0x60] sm:$0xf]
  %v70 = vld [vmem:[%s0 + $0x64] sm:$0xf]
  %v71 = vld [vmem:[%s0 + $0x68] sm:$0xf]
  %v72 = vld [vmem:[%s0 + $0x6c] sm:$0xf]
  %v73 = vld [vmem:[%s0 + $0x70] sm:$0xf]
  %v74 = vld [vmem:[%s0 + $0x74] sm:$0xf]
  %v75 = vld [vmem:[%s0 + $0x78] sm:$0xf]
  %v76 = vld [vmem:[%s0 + $0x7c] sm:$0xf]
  %v77 = vld [vmem:[%s0 + $0x80] sm:$0xf]
  %v78 = vld [vmem:[%s0 + $0x84] sm:$0xf]
  %v79 = vld [vmem:[%s0 + $0x88] sm:$0xf]
  %v80 = vld [vmem:[%s0 + $0x8c] sm:$0xf]
  %v81 = vld [vmem:[%s0 + $0x90] sm:$0xf]
  %v82 = vld [vmem:[%s0 + $0x94] sm:$0xf]
  %v83 = vld [vmem:[%s0 + $0x98] sm:$0xf]
  %v84 = vld [vmem:[%s0 + $0x9c] sm:$0xf]
  %v85 = vld [vmem:[%s0 + $0xa0] sm:$0xf]
  %v86 = vld [vmem:[%s0 + $0xa4] sm:$0xf]
  %v87 = vld [vmem:[%s0 + $0xa8] sm:$0xf]
  %v88 = vld [vmem:[%s0 + $0xac] sm:$0xf]
  %v89 = vld [vmem:[%s0 + $0xb0] sm:$0xf]
  %v90 = vld [vmem:[%s0 + $0xb4] sm:$0xf]
  %v91 = vld [vmem:[%s0 + $0xb8] sm:$0xf]
  %v92 = vld [vmem:[%s0 + $0xbc] sm:$0xf]
  %v93 = vunpack.c.l.bf16 %v45
  %v94 = vunpack.c.l.bf16 %v46
  %v95 = vunpack.c.l.bf16 %v47
  %v96 = vunpack.c.l.bf16 %v48
  %v97 = vunpack.c.l.bf16 %v49
  %v98 = vunpack.c.l.bf16 %v50
  %v99 = vunpack.c.l.bf16 %v51
  %v100 = vunpack.c.l.bf16 %v52
  %v101 = vunpack.c.l.bf16 %v53
  %v102 = vunpack.c.l.bf16 %v54
  %v103 = vunpack.c.l.bf16 %v55
  %v104 = vunpack.c.l.bf16 %v56
  %v105 = vunpack.c.l.bf16 %v57
  %v106 = vunpack.c.l.bf16 %v58
  %v107 = vunpack.c.l.bf16 %v59
  %v108 = vunpack.c.l.bf16 %v60
  %v109 = vunpack.c.l.bf16 %v61
  %v110 = vunpack.c.l.bf16 %v62
  %v111 = vunpack.c.l.bf16 %v63
  %v112 = vunpack.c.l.bf16 %v64
  %v113 = vunpack.c.l.bf16 %v65
  %v114 = vunpack.c.l.bf16 %v66
  %v115 = vunpack.c.l.bf16 %v67
  %v116 = vunpack.c.l.bf16 %v68
  %v117 = vunpack.c.l.bf16 %v69
  %v118 = vunpack.c.l.bf16 %v70
  %v119 = vunpack.c.l.bf16 %v71
  %v120 = vunpack.c.l.bf16 %v72
  %v121 = vunpack.c.l.bf16 %v73
  %v122 = vunpack.c.l.bf16 %v74
  %v123 = vunpack.c.l.bf16 %v75
  %v124 = vunpack.c.l.bf16 %v76
  %v125 = vunpack.c.l.bf16 %v77
  %v126 = vunpack.c.l.bf16 %v78
  %v127 = vunpack.c.l.bf16 %v79
  %v128 = vunpack.c.l.bf16 %v80
  %v129 = vunpack.c.l.bf16 %v81
  %v130 = vunpack.c.l.bf16 %v82
  %v131 = vunpack.c.l.bf16 %v83
  %v132 = vunpack.c.l.bf16 %v84
  %v133 = vunpack.c.l.bf16 %v85
  %v134 = vunpack.c.l.bf16 %v86
  %v135 = vunpack.c.l.bf16 %v87
  %v136 = vunpack.c.l.bf16 %v88
  %v137 = vunpack.c.l.bf16 %v89
  %v138 = vunpack.c.l.bf16 %v90
  %v139 = vunpack.c.l.bf16 %v91
  %v140 = vunpack.c.l.bf16 %v92
  %vm141 = vcmask 130048
  %v142 = vsel %vm141, %v93, 0.0
  %143 = vadd.xlane.f32.xlu0 %v142
  %v144 = vpop.xlane.xlu0 %143
  %v145 = vsel %vm141, %v94, 0.0
  %146 = vadd.xlane.f32.xlu0 %v145
  %v147 = vpop.xlane.xlu0 %146
  %v148 = vsel %vm141, %v95, 0.0
  %149 = vadd.xlane.f32.xlu0 %v148
  %v150 = vpop.xlane.xlu0 %149
  %v151 = vsel %vm141, %v96, 0.0
  %152 = vadd.xlane.f32.xlu0 %v151
  %v153 = vpop.xlane.xlu0 %152
  %v154 = vsel %vm141, %v97, 0.0
  %155 = vadd.xlane.f32.xlu0 %v154
  %v156 = vpop.xlane.xlu0 %155
  %v157 = vsel %vm141, %v98, 0.0
  %158 = vadd.xlane.f32.xlu0 %v157
  %v159 = vpop.xlane.xlu0 %158
  %v160 = vsel %vm141, %v99, 0.0
  %161 = vadd.xlane.f32.xlu0 %v160
  %v162 = vpop.xlane.xlu0 %161
  %v163 = vsel %vm141, %v100, 0.0
  %164 = vadd.xlane.f32.xlu0 %v163
  %v165 = vpop.xlane.xlu0 %164
  %v166 = vsel %vm141, %v101, 0.0
  %167 = vadd.xlane.f32.xlu0 %v166
  %v168 = vpop.xlane.xlu0 %167
  %v169 = vsel %vm141, %v102, 0.0
  %170 = vadd.xlane.f32.xlu0 %v169
  %v171 = vpop.xlane.xlu0 %170
  %v172 = vsel %vm141, %v103, 0.0
  %173 = vadd.xlane.f32.xlu0 %v172
  %v174 = vpop.xlane.xlu0 %173
  %v175 = vsel %vm141, %v104, 0.0
  %176 = vadd.xlane.f32.xlu0 %v175
  %v177 = vpop.xlane.xlu0 %176
  %v178 = vsel %vm141, %v105, 0.0
  %179 = vadd.xlane.f32.xlu0 %v178
  %v180 = vpop.xlane.xlu0 %179
  %v181 = vsel %vm141, %v106, 0.0
  %182 = vadd.xlane.f32.xlu0 %v181
  %v183 = vpop.xlane.xlu0 %182
  %v184 = vsel %vm141, %v107, 0.0
  %185 = vadd.xlane.f32.xlu0 %v184
  %v186 = vpop.xlane.xlu0 %185
  %v187 = vsel %vm141, %v108, 0.0
  %188 = vadd.xlane.f32.xlu0 %v187
  %v189 = vpop.xlane.xlu0 %188
  %v190 = vsel %vm141, %v109, 0.0
  %191 = vadd.xlane.f32.xlu0 %v190
  %v192 = vpop.xlane.xlu0 %191
  %v193 = vsel %vm141, %v110, 0.0
  %194 = vadd.xlane.f32.xlu0 %v193
  %v195 = vpop.xlane.xlu0 %194
  %v196 = vsel %vm141, %v111, 0.0
  %197 = vadd.xlane.f32.xlu0 %v196
  %v198 = vpop.xlane.xlu0 %197
  %v199 = vsel %vm141, %v112, 0.0
  %200 = vadd.xlane.f32.xlu0 %v199
  %v201 = vpop.xlane.xlu0 %200
  %v202 = vsel %vm141, %v113, 0.0
  %203 = vadd.xlane.f32.xlu0 %v202
  %v204 = vpop.xlane.xlu0 %203
  %v205 = vsel %vm141, %v114, 0.0
  %206 = vadd.xlane.f32.xlu0 %v205
  %v207 = vpop.xlane.xlu0 %206
  %v208 = vsel %vm141, %v115, 0.0
  %209 = vadd.xlane.f32.xlu0 %v208
  %v210 = vpop.xlane.xlu0 %209
  %v211 = vsel %vm141, %v116, 0.0
  %212 = vadd.xlane.f32.xlu0 %v211
  %v213 = vpop.xlane.xlu0 %212
  %v214 = vsel %vm141, %v117, 0.0
  %215 = vadd.xlane.f32.xlu0 %v214
  %v216 = vpop.xlane.xlu0 %215
  %v217 = vsel %vm141, %v118, 0.0
  %218 = vadd.xlane.f32.xlu0 %v217
  %v219 = vpop.xlane.xlu0 %218
  %v220 = vsel %vm141, %v119, 0.0
  %221 = vadd.xlane.f32.xlu0 %v220
  %v222 = vpop.xlane.xlu0 %221
  %v223 = vsel %vm141, %v120, 0.0
  %224 = vadd.xlane.f32.xlu0 %v223
  %v225 = vpop.xlane.xlu0 %224
  %v226 = vsel %vm141, %v121, 0.0
  %227 = vadd.xlane.f32.xlu0 %v226
  %v228 = vpop.xlane.xlu0 %227
  %v229 = vsel %vm141, %v122, 0.0
  %230 = vadd.xlane.f32.xlu0 %v229
  %v231 = vpop.xlane.xlu0 %230
  %v232 = vsel %vm141, %v123, 0.0
  %233 = vadd.xlane.f32.xlu0 %v232
  %v234 = vpop.xlane.xlu0 %233
  %v235 = vsel %vm141, %v124, 0.0
  %236 = vadd.xlane.f32.xlu0 %v235
  %v237 = vpop.xlane.xlu0 %236
  %v238 = vsel %vm141, %v125, 0.0
  %239 = vadd.xlane.f32.xlu0 %v238
  %v240 = vpop.xlane.xlu0 %239
  %v241 = vsel %vm141, %v126, 0.0
  %242 = vadd.xlane.f32.xlu0 %v241
  %v243 = vpop.xlane.xlu0 %242
  %v244 = vsel %vm141, %v127, 0.0
  %245 = vadd.xlane.f32.xlu0 %v244
  %v246 = vpop.xlane.xlu0 %245
  %v247 = vsel %vm141, %v128, 0.0
  %248 = vadd.xlane.f32.xlu0 %v247
  %v249 = vpop.xlane.xlu0 %248
  %v250 = vsel %vm141, %v129, 0.0
  %251 = vadd.xlane.f32.xlu0 %v250
  %v252 = vpop.xlane.xlu0 %251
  %v253 = vsel %vm141, %v130, 0.0
  %254 = vadd.xlane.f32.xlu0 %v253
  %v255 = vpop.xlane.xlu0 %254
  %v256 = vsel %vm141, %v131, 0.0
  %257 = vadd.xlane.f32.xlu0 %v256
  %v258 = vpop.xlane.xlu0 %257
  %v259 = vsel %vm141, %v132, 0.0
  %260 = vadd.xlane.f32.xlu0 %v259
  %v261 = vpop.xlane.xlu0 %260
  %v262 = vsel %vm141, %v133, 0.0
  %263 = vadd.xlane.f32.xlu0 %v262
  %v264 = vpop.xlane.xlu0 %263
  %v265 = vsel %vm141, %v134, 0.0
  %266 = vadd.xlane.f32.xlu0 %v265
  %v267 = vpop.xlane.xlu0 %266
  %v268 = vsel %vm141, %v135, 0.0
  %269 = vadd.xlane.f32.xlu0 %v268
  %v270 = vpop.xlane.xlu0 %269
  %v271 = vsel %vm141, %v136, 0.0
  %272 = vadd.xlane.f32.xlu0 %v271
  %v273 = vpop.xlane.xlu0 %272
  %v274 = vsel %vm141, %v137, 0.0
  %275 = vadd.xlane.f32.xlu0 %v274
  %v276 = vpop.xlane.xlu0 %275
  %v277 = vsel %vm141, %v138, 0.0
  %278 = vadd.xlane.f32.xlu0 %v277
  %v279 = vpop.xlane.xlu0 %278
  %v280 = vsel %vm141, %v139, 0.0
  %281 = vadd.xlane.f32.xlu0 %v280
  %v282 = vpop.xlane.xlu0 %281
  %v283 = vsel %vm141, %v140, 0.0
  %284 = vadd.xlane.f32.xlu0 %v283
  %v285 = vpop.xlane.xlu0 %284
  %v334 = vlaneseq
  %v335 = vand.u32 %v334, 127
  %v336 = vlaneseq
  %v337 = vshrl.u32 %v336, 7
  %v338 = vsub.s32 %v335, %v337
  %v339 = vrot.slane %v144, %v338
  %v340 = vadd.s32 %v335, 4294967288
  %v341 = vlaneseq
  %v342 = vshrl.u32 %v341, 7
  %v343 = vsub.s32 %v340, %v342
  %v344 = vrot.slane %v147, %v343
  %vm345 = vcmask 130112
  %v346 = vsel %vm345, %v344, %v339
  %v347 = vadd.s32 %v335, 4294967280
  %v348 = vlaneseq
  %v349 = vshrl.u32 %v348, 7
  %v350 = vsub.s32 %v347, %v349
  %v351 = vrot.slane %v150, %v350
  %vm352 = vcmask 195712
  %v353 = vsel %vm352, %v351, %v346
  %v354 = vadd.s32 %v335, 4294967272
  %v355 = vlaneseq
  %v356 = vshrl.u32 %v355, 7
  %v357 = vsub.s32 %v354, %v356
  %v358 = vrot.slane %v153, %v357
  %vm359 = vcmask 261312
  %v360 = vsel %vm359, %v358, %v353
  %v361 = vadd.s32 %v335, 4294967264
  %v362 = vlaneseq
  %v363 = vshrl.u32 %v362, 7
  %v364 = vsub.s32 %v361, %v363
  %v365 = vrot.slane %v156, %v364
  %vm366 = vcmask 326912
  %v367 = vsel %vm366, %v365, %v360
  %v368 = vadd.s32 %v335, 4294967256
  %v369 = vlaneseq
  %v370 = vshrl.u32 %v369, 7
  %v371 = vsub.s32 %v368, %v370
  %v372 = vrot.slane %v159, %v371
  %vm373 = vcmask 392512
  %v374 = vsel %vm373, %v372, %v367
  %v375 = vlaneseq
  %v376 = vshrl.u32 %v375, 7
  %v377 = vsub.s32 %v335, %v376
  %v378 = vrot.slane %v162, %v377
  %v379 = vlaneseq
  %v380 = vshrl.u32 %v379, 7
  %v381 = vsub.s32 %v340, %v380
  %v382 = vrot.slane %v165, %v381
  %v383 = vsel %vm345, %v382, %v378
  %v384 = vlaneseq
  %v385 = vshrl.u32 %v384, 7
  %v386 = vsub.s32 %v347, %v385
  %v387 = vrot.slane %v168, %v386
  %v388 = vsel %vm352, %v387, %v383
  %v389 = vlaneseq
  %v390 = vshrl.u32 %v389, 7
  %v391 = vsub.s32 %v354, %v390
  %v392 = vrot.slane %v171, %v391
  %v393 = vsel %vm359, %v392, %v388
  %v394 = vlaneseq
  %v395 = vshrl.u32 %v394, 7
  %v396 = vsub.s32 %v361, %v395
  %v397 = vrot.slane %v174, %v396
  %v398 = vsel %vm366, %v397, %v393
  %v399 = vlaneseq
  %v400 = vshrl.u32 %v399, 7
  %v401 = vsub.s32 %v368, %v400
  %v402 = vrot.slane %v177, %v401
  %v403 = vsel %vm373, %v402, %v398
  %v404 = vlaneseq
  %v405 = vshrl.u32 %v404, 7
  %v406 = vsub.s32 %v335, %v405
  %v407 = vrot.slane %v180, %v406
  %v408 = vlaneseq
  %v409 = vshrl.u32 %v408, 7
  %v410 = vsub.s32 %v340, %v409
  %v411 = vrot.slane %v183, %v410
  %v412 = vsel %vm345, %v411, %v407
  %v413 = vlaneseq
  %v414 = vshrl.u32 %v413, 7
  %v415 = vsub.s32 %v347, %v414
  %v416 = vrot.slane %v186, %v415
  %v417 = vsel %vm352, %v416, %v412
  %v418 = vlaneseq
  %v419 = vshrl.u32 %v418, 7
  %v420 = vsub.s32 %v354, %v419
  %v421 = vrot.slane %v189, %v420
  %v422 = vsel %vm359, %v421, %v417
  %v423 = vlaneseq
  %v424 = vshrl.u32 %v423, 7
  %v425 = vsub.s32 %v361, %v424
  %v426 = vrot.slane %v192, %v425
  %v427 = vsel %vm366, %v426, %v422
  %v428 = vlaneseq
  %v429 = vshrl.u32 %v428, 7
  %v430 = vsub.s32 %v368, %v429
  %v431 = vrot.slane %v195, %v430
  %v432 = vsel %vm373, %v431, %v427
  %v433 = vlaneseq
  %v434 = vshrl.u32 %v433, 7
  %v435 = vsub.s32 %v335, %v434
  %v436 = vrot.slane %v198, %v435
  %v437 = vlaneseq
  %v438 = vshrl.u32 %v437, 7
  %v439 = vsub.s32 %v340, %v438
  %v440 = vrot.slane %v201, %v439
  %v441 = vsel %vm345, %v440, %v436
  %v442 = vlaneseq
  %v443 = vshrl.u32 %v442, 7
  %v444 = vsub.s32 %v347, %v443
  %v445 = vrot.slane %v204, %v444
  %v446 = vsel %vm352, %v445, %v441
  %v447 = vlaneseq
  %v448 = vshrl.u32 %v447, 7
  %v449 = vsub.s32 %v354, %v448
  %v450 = vrot.slane %v207, %v449
  %v451 = vsel %vm359, %v450, %v446
  %v452 = vlaneseq
  %v453 = vshrl.u32 %v452, 7
  %v454 = vsub.s32 %v361, %v453
  %v455 = vrot.slane %v210, %v454
  %v456 = vsel %vm366, %v455, %v451
  %v457 = vlaneseq
  %v458 = vshrl.u32 %v457, 7
  %v459 = vsub.s32 %v368, %v458
  %v460 = vrot.slane %v213, %v459
  %v461 = vsel %vm373, %v460, %v456
  %v462 = vlaneseq
  %v463 = vshrl.u32 %v462, 7
  %v464 = vsub.s32 %v335, %v463
  %v465 = vrot.slane %v216, %v464
  %v466 = vlaneseq
  %v467 = vshrl.u32 %v466, 7
  %v468 = vsub.s32 %v340, %v467
  %v469 = vrot.slane %v219, %v468
  %v470 = vsel %vm345, %v469, %v465
  %v471 = vlaneseq
  %v472 = vshrl.u32 %v471, 7
  %v473 = vsub.s32 %v347, %v472
  %v474 = vrot.slane %v222, %v473
  %v475 = vsel %vm352, %v474, %v470
  %v476 = vlaneseq
  %v477 = vshrl.u32 %v476, 7
  %v478 = vsub.s32 %v354, %v477
  %v479 = vrot.slane %v225, %v478
  %v480 = vsel %vm359, %v479, %v475
  %v481 = vlaneseq
  %v482 = vshrl.u32 %v481, 7
  %v483 = vsub.s32 %v361, %v482
  %v484 = vrot.slane %v228, %v483
  %v485 = vsel %vm366, %v484, %v480
  %v486 = vlaneseq
  %v487 = vshrl.u32 %v486, 7
  %v488 = vsub.s32 %v368, %v487
  %v489 = vrot.slane %v231, %v488
  %v490 = vsel %vm373, %v489, %v485
  %v491 = vlaneseq
  %v492 = vshrl.u32 %v491, 7
  %v493 = vsub.s32 %v335, %v492
  %v494 = vrot.slane %v234, %v493
  %v495 = vlaneseq
  %v496 = vshrl.u32 %v495, 7
  %v497 = vsub.s32 %v340, %v496
  %v498 = vrot.slane %v237, %v497
  %v499 = vsel %vm345, %v498, %v494
  %v500 = vlaneseq
  %v501 = vshrl.u32 %v500, 7
  %v502 = vsub.s32 %v347, %v501
  %v503 = vrot.slane %v240, %v502
  %v504 = vsel %vm352, %v503, %v499
  %v505 = vlaneseq
  %v506 = vshrl.u32 %v505, 7
  %v507 = vsub.s32 %v354, %v506
  %v508 = vrot.slane %v243, %v507
  %v509 = vsel %vm359, %v508, %v504
  %v510 = vlaneseq
  %v511 = vshrl.u32 %v510, 7
  %v512 = vsub.s32 %v361, %v511
  %v513 = vrot.slane %v246, %v512
  %v514 = vsel %vm366, %v513, %v509
  %v515 = vlaneseq
  %v516 = vshrl.u32 %v515, 7
  %v517 = vsub.s32 %v368, %v516
  %v518 = vrot.slane %v249, %v517
  %v519 = vsel %vm373, %v518, %v514
  %v520 = vlaneseq
  %v521 = vshrl.u32 %v520, 7
  %v522 = vsub.s32 %v335, %v521
  %v523 = vrot.slane %v252, %v522
  %v524 = vlaneseq
  %v525 = vshrl.u32 %v524, 7
  %v526 = vsub.s32 %v340, %v525
  %v527 = vrot.slane %v255, %v526
  %v528 = vsel %vm345, %v527, %v523
  %v529 = vlaneseq
  %v530 = vshrl.u32 %v529, 7
  %v531 = vsub.s32 %v347, %v530
  %v532 = vrot.slane %v258, %v531
  %v533 = vsel %vm352, %v532, %v528
  %v534 = vlaneseq
  %v535 = vshrl.u32 %v534, 7
  %v536 = vsub.s32 %v354, %v535
  %v537 = vrot.slane %v261, %v536
  %v538 = vsel %vm359, %v537, %v533
  %v539 = vlaneseq
  %v540 = vshrl.u32 %v539, 7
  %v541 = vsub.s32 %v361, %v540
  %v542 = vrot.slane %v264, %v541
  %v543 = vsel %vm366, %v542, %v538
  %v544 = vlaneseq
  %v545 = vshrl.u32 %v544, 7
  %v546 = vsub.s32 %v368, %v545
  %v547 = vrot.slane %v267, %v546
  %v548 = vsel %vm373, %v547, %v543
  %v549 = vlaneseq
  %v550 = vshrl.u32 %v549, 7
  %v551 = vsub.s32 %v335, %v550
  %v552 = vrot.slane %v270, %v551
  %v553 = vlaneseq
  %v554 = vshrl.u32 %v553, 7
  %v555 = vsub.s32 %v340, %v554
  %v556 = vrot.slane %v273, %v555
  %v557 = vsel %vm345, %v556, %v552
  %v558 = vlaneseq
  %v559 = vshrl.u32 %v558, 7
  %v560 = vsub.s32 %v347, %v559
  %v561 = vrot.slane %v276, %v560
  %v562 = vsel %vm352, %v561, %v557
  %v563 = vlaneseq
  %v564 = vshrl.u32 %v563, 7
  %v565 = vsub.s32 %v354, %v564
  %v566 = vrot.slane %v279, %v565
  %v567 = vsel %vm359, %v566, %v562
  %v568 = vlaneseq
  %v569 = vshrl.u32 %v568, 7
  %v570 = vsub.s32 %v361, %v569
  %v571 = vrot.slane %v282, %v570
  %v572 = vsel %vm366, %v571, %v567
  %v573 = vlaneseq
  %v574 = vshrl.u32 %v573, 7
  %v575 = vsub.s32 %v368, %v574
  %v576 = vrot.slane %v285, %v575
  %v577 = vsel %vm373, %v576, %v572
  %vm578 = vcmask 1041409
  %v579 = vsel %vm578, %v403, %v374
  %vm580 = vcmask 1042434
  %v581 = vsel %vm580, %v432, %v579
  %vm582 = vcmask 1043459
  %v583 = vsel %vm582, %v461, %v581
  %vm584 = vcmask 1044484
  %v585 = vsel %vm584, %v490, %v583
  %vm586 = vcmask 1045509
  %v587 = vsel %vm586, %v519, %v585
  %vm588 = vcmask 1046534
  %v589 = vsel %vm588, %v548, %v587
  %vm590 = vcmask 1047559
  %v591 = vsel %vm590, %v577, %v589
  %v593 = vadd.f32 %v44, %v591
  %vm594 = vcmask 392192
  %595 = vst.msk [vmem:[#allocation2] sm:$0xff] %vm594, %v593
  %v596 = vld [vmem:[#allocation3] sm:$0xff]
  %v597 = vld [vmem:[%s1] sm:$0xf]
  %v598 = vld [vmem:[%s1 + $0x4] sm:$0xf]
  %v599 = vld [vmem:[%s1 + $0x8] sm:$0xf]
  %v600 = vld [vmem:[%s1 + $0xc] sm:$0xf]
  %v601 = vld [vmem:[%s1 + $0x10] sm:$0xf]
  %v602 = vld [vmem:[%s1 + $0x14] sm:$0xf]
  %v603 = vld [vmem:[%s1 + $0x18] sm:$0xf]
  %v604 = vld [vmem:[%s1 + $0x1c] sm:$0xf]
  %v605 = vld [vmem:[%s1 + $0x20] sm:$0xf]
  %v606 = vld [vmem:[%s1 + $0x24] sm:$0xf]
  %v607 = vld [vmem:[%s1 + $0x28] sm:$0xf]
  %v608 = vld [vmem:[%s1 + $0x2c] sm:$0xf]
  %v609 = vld [vmem:[%s1 + $0x30] sm:$0xf]
  %v610 = vld [vmem:[%s1 + $0x34] sm:$0xf]
  %v611 = vld [vmem:[%s1 + $0x38] sm:$0xf]
  %v612 = vld [vmem:[%s1 + $0x3c] sm:$0xf]
  %v613 = vld [vmem:[%s1 + $0x40] sm:$0xf]
  %v614 = vld [vmem:[%s1 + $0x44] sm:$0xf]
  %v615 = vld [vmem:[%s1 + $0x48] sm:$0xf]
  %v616 = vld [vmem:[%s1 + $0x4c] sm:$0xf]
  %v617 = vld [vmem:[%s1 + $0x50] sm:$0xf]
  %v618 = vld [vmem:[%s1 + $0x54] sm:$0xf]
  %v619 = vld [vmem:[%s1 + $0x58] sm:$0xf]
  %v620 = vld [vmem:[%s1 + $0x5c] sm:$0xf]
  %v621 = vld [vmem:[%s1 + $0x60] sm:$0xf]
  %v622 = vld [vmem:[%s1 + $0x64] sm:$0xf]
  %v623 = vld [vmem:[%s1 + $0x68] sm:$0xf]
  %v624 = vld [vmem:[%s1 + $0x6c] sm:$0xf]
  %v625 = vld [vmem:[%s1 + $0x70] sm:$0xf]
  %v626 = vld [vmem:[%s1 + $0x74] sm:$0xf]
  %v627 = vld [vmem:[%s1 + $0x78] sm:$0xf]
  %v628 = vld [vmem:[%s1 + $0x7c] sm:$0xf]
  %v629 = vld [vmem:[%s1 + $0x80] sm:$0xf]
  %v630 = vld [vmem:[%s1 + $0x84] sm:$0xf]
  %v631 = vld [vmem:[%s1 + $0x88] sm:$0xf]
  %v632 = vld [vmem:[%s1 + $0x8c] sm:$0xf]
  %v633 = vld [vmem:[%s1 + $0x90] sm:$0xf]
  %v634 = vld [vmem:[%s1 + $0x94] sm:$0xf]
  %v635 = vld [vmem:[%s1 + $0x98] sm:$0xf]
  %v636 = vld [vmem:[%s1 + $0x9c] sm:$0xf]
  %v637 = vld [vmem:[%s1 + $0xa0] sm:$0xf]
  %v638 = vld [vmem:[%s1 + $0xa4] sm:$0xf]
  %v639 = vld [vmem:[%s1 + $0xa8] sm:$0xf]
  %v640 = vld [vmem:[%s1 + $0xac] sm:$0xf]
  %v641 = vld [vmem:[%s1 + $0xb0] sm:$0xf]
  %v642 = vld [vmem:[%s1 + $0xb4] sm:$0xf]
  %v643 = vld [vmem:[%s1 + $0xb8] sm:$0xf]
  %v644 = vld [vmem:[%s1 + $0xbc] sm:$0xf]
  %v645 = vunpack.c.l.bf16 %v597
  %v646 = vunpack.c.l.bf16 %v598
  %v647 = vunpack.c.l.bf16 %v599
  %v648 = vunpack.c.l.bf16 %v600
  %v649 = vunpack.c.l.bf16 %v601
  %v650 = vunpack.c.l.bf16 %v602
  %v651 = vunpack.c.l.bf16 %v603
  %v652 = vunpack.c.l.bf16 %v604
  %v653 = vunpack.c.l.bf16 %v605
  %v654 = vunpack.c.l.bf16 %v606
  %v655 = vunpack.c.l.bf16 %v607
  %v656 = vunpack.c.l.bf16 %v608
  %v657 = vunpack.c.l.bf16 %v609
  %v658 = vunpack.c.l.bf16 %v610
  %v659 = vunpack.c.l.bf16 %v611
  %v660 = vunpack.c.l.bf16 %v612
  %v661 = vunpack.c.l.bf16 %v613
  %v662 = vunpack.c.l.bf16 %v614
  %v663 = vunpack.c.l.bf16 %v615
  %v664 = vunpack.c.l.bf16 %v616
  %v665 = vunpack.c.l.bf16 %v617
  %v666 = vunpack.c.l.bf16 %v618
  %v667 = vunpack.c.l.bf16 %v619
  %v668 = vunpack.c.l.bf16 %v620
  %v669 = vunpack.c.l.bf16 %v621
  %v670 = vunpack.c.l.bf16 %v622
  %v671 = vunpack.c.l.bf16 %v623
  %v672 = vunpack.c.l.bf16 %v624
  %v673 = vunpack.c.l.bf16 %v625
  %v674 = vunpack.c.l.bf16 %v626
  %v675 = vunpack.c.l.bf16 %v627
  %v676 = vunpack.c.l.bf16 %v628
  %v677 = vunpack.c.l.bf16 %v629
  %v678 = vunpack.c.l.bf16 %v630
  %v679 = vunpack.c.l.bf16 %v631
  %v680 = vunpack.c.l.bf16 %v632
  %v681 = vunpack.c.l.bf16 %v633
  %v682 = vunpack.c.l.bf16 %v634
  %v683 = vunpack.c.l.bf16 %v635
  %v684 = vunpack.c.l.bf16 %v636
  %v685 = vunpack.c.l.bf16 %v637
  %v686 = vunpack.c.l.bf16 %v638
  %v687 = vunpack.c.l.bf16 %v639
  %v688 = vunpack.c.l.bf16 %v640
  %v689 = vunpack.c.l.bf16 %v641
  %v690 = vunpack.c.l.bf16 %v642
  %v691 = vunpack.c.l.bf16 %v643
  %v692 = vunpack.c.l.bf16 %v644
  %v693 = vsel %vm141, %v645, 0.0
  %694 = vadd.xlane.f32.xlu0 %v693
  %v695 = vpop.xlane.xlu0 %694
  %v696 = vsel %vm141, %v646, 0.0
  %697 = vadd.xlane.f32.xlu0 %v696
  %v698 = vpop.xlane.xlu0 %697
  %v699 = vsel %vm141, %v647, 0.0
  %700 = vadd.xlane.f32.xlu0 %v699
  %v701 = vpop.xlane.xlu0 %700
  %v702 = vsel %vm141, %v648, 0.0
  %703 = vadd.xlane.f32.xlu0 %v702
  %v704 = vpop.xlane.xlu0 %703
  %v705 = vsel %vm141, %v649, 0.0
  %706 = vadd.xlane.f32.xlu0 %v705
  %v707 = vpop.xlane.xlu0 %706
  %v708 = vsel %vm141, %v650, 0.0
  %709 = vadd.xlane.f32.xlu0 %v708
  %v710 = vpop.xlane.xlu0 %709
  %v711 = vsel %vm141, %v651, 0.0
  %712 = vadd.xlane.f32.xlu0 %v711
  %v713 = vpop.xlane.xlu0 %712
  %v714 = vsel %vm141, %v652, 0.0
  %715 = vadd.xlane.f32.xlu0 %v714
  %v716 = vpop.xlane.xlu0 %715
  %v717 = vsel %vm141, %v653, 0.0
  %718 = vadd.xlane.f32.xlu0 %v717
  %v719 = vpop.xlane.xlu0 %718
  %v720 = vsel %vm141, %v654, 0.0
  %721 = vadd.xlane.f32.xlu0 %v720
  %v722 = vpop.xlane.xlu0 %721
  %v723 = vsel %vm141, %v655, 0.0
  %724 = vadd.xlane.f32.xlu0 %v723
  %v725 = vpop.xlane.xlu0 %724
  %v726 = vsel %vm141, %v656, 0.0
  %727 = vadd.xlane.f32.xlu0 %v726
  %v728 = vpop.xlane.xlu0 %727
  %v729 = vsel %vm141, %v657, 0.0
  %730 = vadd.xlane.f32.xlu0 %v729
  %v731 = vpop.xlane.xlu0 %730
  %v732 = vsel %vm141, %v658, 0.0
  %733 = vadd.xlane.f32.xlu0 %v732
  %v734 = vpop.xlane.xlu0 %733
  %v735 = vsel %vm141, %v659, 0.0
  %736 = vadd.xlane.f32.xlu0 %v735
  %v737 = vpop.xlane.xlu0 %736
  %v738 = vsel %vm141, %v660, 0.0
  %739 = vadd.xlane.f32.xlu0 %v738
  %v740 = vpop.xlane.xlu0 %739
  %v741 = vsel %vm141, %v661, 0.0
  %742 = vadd.xlane.f32.xlu0 %v741
  %v743 = vpop.xlane.xlu0 %742
  %v744 = vsel %vm141, %v662, 0.0
  %745 = vadd.xlane.f32.xlu0 %v744
  %v746 = vpop.xlane.xlu0 %745
  %v747 = vsel %vm141, %v663, 0.0
  %748 = vadd.xlane.f32.xlu0 %v747
  %v749 = vpop.xlane.xlu0 %748
  %v750 = vsel %vm141, %v664, 0.0
  %751 = vadd.xlane.f32.xlu0 %v750
  %v752 = vpop.xlane.xlu0 %751
  %v753 = vsel %vm141, %v665, 0.0
  %754 = vadd.xlane.f32.xlu0 %v753
  %v755 = vpop.xlane.xlu0 %754
  %v756 = vsel %vm141, %v666, 0.0
  %757 = vadd.xlane.f32.xlu0 %v756
  %v758 = vpop.xlane.xlu0 %757
  %v759 = vsel %vm141, %v667, 0.0
  %760 = vadd.xlane.f32.xlu0 %v759
  %v761 = vpop.xlane.xlu0 %760
  %v762 = vsel %vm141, %v668, 0.0
  %763 = vadd.xlane.f32.xlu0 %v762
  %v764 = vpop.xlane.xlu0 %763
  %v765 = vsel %vm141, %v669, 0.0
  %766 = vadd.xlane.f32.xlu0 %v765
  %v767 = vpop.xlane.xlu0 %766
  %v768 = vsel %vm141, %v670, 0.0
  %769 = vadd.xlane.f32.xlu0 %v768
  %v770 = vpop.xlane.xlu0 %769
  %v771 = vsel %vm141, %v671, 0.0
  %772 = vadd.xlane.f32.xlu0 %v771
  %v773 = vpop.xlane.xlu0 %772
  %v774 = vsel %vm141, %v672, 0.0
  %775 = vadd.xlane.f32.xlu0 %v774
  %v776 = vpop.xlane.xlu0 %775
  %v777 = vsel %vm141, %v673, 0.0
  %778 = vadd.xlane.f32.xlu0 %v777
  %v779 = vpop.xlane.xlu0 %778
  %v780 = vsel %vm141, %v674, 0.0
  %781 = vadd.xlane.f32.xlu0 %v780
  %v782 = vpop.xlane.xlu0 %781
  %v783 = vsel %vm141, %v675, 0.0
  %784 = vadd.xlane.f32.xlu0 %v783
  %v785 = vpop.xlane.xlu0 %784
  %v786 = vsel %vm141, %v676, 0.0
  %787 = vadd.xlane.f32.xlu0 %v786
  %v788 = vpop.xlane.xlu0 %787
  %v789 = vsel %vm141, %v677, 0.0
  %790 = vadd.xlane.f32.xlu0 %v789
  %v791 = vpop.xlane.xlu0 %790
  %v792 = vsel %vm141, %v678, 0.0
  %793 = vadd.xlane.f32.xlu0 %v792
  %v794 = vpop.xlane.xlu0 %793
  %v795 = vsel %vm141, %v679, 0.0
  %796 = vadd.xlane.f32.xlu0 %v795
  %v797 = vpop.xlane.xlu0 %796
  %v798 = vsel %vm141, %v680, 0.0
  %799 = vadd.xlane.f32.xlu0 %v798
  %v800 = vpop.xlane.xlu0 %799
  %v801 = vsel %vm141, %v681, 0.0
  %802 = vadd.xlane.f32.xlu0 %v801
  %v803 = vpop.xlane.xlu0 %802
  %v804 = vsel %vm141, %v682, 0.0
  %805 = vadd.xlane.f32.xlu0 %v804
  %v806 = vpop.xlane.xlu0 %805
  %v807 = vsel %vm141, %v683, 0.0
  %808 = vadd.xlane.f32.xlu0 %v807
  %v809 = vpop.xlane.xlu0 %808
  %v810 = vsel %vm141, %v684, 0.0
  %811 = vadd.xlane.f32.xlu0 %v810
  %v812 = vpop.xlane.xlu0 %811
  %v813 = vsel %vm141, %v685, 0.0
  %814 = vadd.xlane.f32.xlu0 %v813
  %v815 = vpop.xlane.xlu0 %814
  %v816 = vsel %vm141, %v686, 0.0
  %817 = vadd.xlane.f32.xlu0 %v816
  %v818 = vpop.xlane.xlu0 %817
  %v819 = vsel %vm141, %v687, 0.0
  %820 = vadd.xlane.f32.xlu0 %v819
  %v821 = vpop.xlane.xlu0 %820
  %v822 = vsel %vm141, %v688, 0.0
  %823 = vadd.xlane.f32.xlu0 %v822
  %v824 = vpop.xlane.xlu0 %823
  %v825 = vsel %vm141, %v689, 0.0
  %826 = vadd.xlane.f32.xlu0 %v825
  %v827 = vpop.xlane.xlu0 %826
  %v828 = vsel %vm141, %v690, 0.0
  %829 = vadd.xlane.f32.xlu0 %v828
  %v830 = vpop.xlane.xlu0 %829
  %v831 = vsel %vm141, %v691, 0.0
  %832 = vadd.xlane.f32.xlu0 %v831
  %v833 = vpop.xlane.xlu0 %832
  %v834 = vsel %vm141, %v692, 0.0
  %835 = vadd.xlane.f32.xlu0 %v834
  %v836 = vpop.xlane.xlu0 %835
  %v885 = vlaneseq
  %v886 = vshrl.u32 %v885, 7
  %v887 = vsub.s32 %v335, %v886
  %v888 = vrot.slane %v695, %v887
  %v889 = vlaneseq
  %v890 = vshrl.u32 %v889, 7
  %v891 = vsub.s32 %v340, %v890
  %v892 = vrot.slane %v698, %v891
  %v893 = vsel %vm345, %v892, %v888
  %v894 = vlaneseq
  %v895 = vshrl.u32 %v894, 7
  %v896 = vsub.s32 %v347, %v895
  %v897 = vrot.slane %v701, %v896
  %v898 = vsel %vm352, %v897, %v893
  %v899 = vlaneseq
  %v900 = vshrl.u32 %v899, 7
  %v901 = vsub.s32 %v354, %v900
  %v902 = vrot.slane %v704, %v901
  %v903 = vsel %vm359, %v902, %v898
  %v904 = vlaneseq
  %v905 = vshrl.u32 %v904, 7
  %v906 = vsub.s32 %v361, %v905
  %v907 = vrot.slane %v707, %v906
  %v908 = vsel %vm366, %v907, %v903
  %v909 = vlaneseq
  %v910 = vshrl.u32 %v909, 7
  %v911 = vsub.s32 %v368, %v910
  %v912 = vrot.slane %v710, %v911
  %v913 = vsel %vm373, %v912, %v908
  %v914 = vlaneseq
  %v915 = vshrl.u32 %v914, 7
  %v916 = vsub.s32 %v335, %v915
  %v917 = vrot.slane %v713, %v916
  %v918 = vlaneseq
  %v919 = vshrl.u32 %v918, 7
  %v920 = vsub.s32 %v340, %v919
  %v921 = vrot.slane %v716, %v920
  %v922 = vsel %vm345, %v921, %v917
  %v923 = vlaneseq
  %v924 = vshrl.u32 %v923, 7
  %v925 = vsub.s32 %v347, %v924
  %v926 = vrot.slane %v719, %v925
  %v927 = vsel %vm352, %v926, %v922
  %v928 = vlaneseq
  %v929 = vshrl.u32 %v928, 7
  %v930 = vsub.s32 %v354, %v929
  %v931 = vrot.slane %v722, %v930
  %v932 = vsel %vm359, %v931, %v927
  %v933 = vlaneseq
  %v934 = vshrl.u32 %v933, 7
  %v935 = vsub.s32 %v361, %v934
  %v936 = vrot.slane %v725, %v935
  %v937 = vsel %vm366, %v936, %v932
  %v938 = vlaneseq
  %v939 = vshrl.u32 %v938, 7
  %v940 = vsub.s32 %v368, %v939
  %v941 = vrot.slane %v728, %v940
  %v942 = vsel %vm373, %v941, %v937
  %v943 = vlaneseq
  %v944 = vshrl.u32 %v943, 7
  %v945 = vsub.s32 %v335, %v944
  %v946 = vrot.slane %v731, %v945
  %v947 = vlaneseq
  %v948 = vshrl.u32 %v947, 7
  %v949 = vsub.s32 %v340, %v948
  %v950 = vrot.slane %v734, %v949
  %v951 = vsel %vm345, %v950, %v946
  %v952 = vlaneseq
  %v953 = vshrl.u32 %v952, 7
  %v954 = vsub.s32 %v347, %v953
  %v955 = vrot.slane %v737, %v954
  %v956 = vsel %vm352, %v955, %v951
  %v957 = vlaneseq
  %v958 = vshrl.u32 %v957, 7
  %v959 = vsub.s32 %v354, %v958
  %v960 = vrot.slane %v740, %v959
  %v961 = vsel %vm359, %v960, %v956
  %v962 = vlaneseq
  %v963 = vshrl.u32 %v962, 7
  %v964 = vsub.s32 %v361, %v963
  %v965 = vrot.slane %v743, %v964
  %v966 = vsel %vm366, %v965, %v961
  %v967 = vlaneseq
  %v968 = vshrl.u32 %v967, 7
  %v969 = vsub.s32 %v368, %v968
  %v970 = vrot.slane %v746, %v969
  %v971 = vsel %vm373, %v970, %v966
  %v972 = vlaneseq
  %v973 = vshrl.u32 %v972, 7
  %v974 = vsub.s32 %v335, %v973
  %v975 = vrot.slane %v749, %v974
  %v976 = vlaneseq
  %v977 = vshrl.u32 %v976, 7
  %v978 = vsub.s32 %v340, %v977
  %v979 = vrot.slane %v752, %v978
  %v980 = vsel %vm345, %v979, %v975
  %v981 = vlaneseq
  %v982 = vshrl.u32 %v981, 7
  %v983 = vsub.s32 %v347, %v982
  %v984 = vrot.slane %v755, %v983
  %v985 = vsel %vm352, %v984, %v980
  %v986 = vlaneseq
  %v987 = vshrl.u32 %v986, 7
  %v988 = vsub.s32 %v354, %v987
  %v989 = vrot.slane %v758, %v988
  %v990 = vsel %vm359, %v989, %v985
  %v991 = vlaneseq
  %v992 = vshrl.u32 %v991, 7
  %v993 = vsub.s32 %v361, %v992
  %v994 = vrot.slane %v761, %v993
  %v995 = vsel %vm366, %v994, %v990
  %v996 = vlaneseq
  %v997 = vshrl.u32 %v996, 7
  %v998 = vsub.s32 %v368, %v997
  %v999 = vrot.slane %v764, %v998
  %v1000 = vsel %vm373, %v999, %v995
  %v1001 = vlaneseq
  %v1002 = vshrl.u32 %v1001, 7
  %v1003 = vsub.s32 %v335, %v1002
  %v1004 = vrot.slane %v767, %v1003
  %v1005 = vlaneseq
  %v1006 = vshrl.u32 %v1005, 7
  %v1007 = vsub.s32 %v340, %v1006
  %v1008 = vrot.slane %v770, %v1007
  %v1009 = vsel %vm345, %v1008, %v1004
  %v1010 = vlaneseq
  %v1011 = vshrl.u32 %v1010, 7
  %v1012 = vsub.s32 %v347, %v1011
  %v1013 = vrot.slane %v773, %v1012
  %v1014 = vsel %vm352, %v1013, %v1009
  %v1015 = vlaneseq
  %v1016 = vshrl.u32 %v1015, 7
  %v1017 = vsub.s32 %v354, %v1016
  %v1018 = vrot.slane %v776, %v1017
  %v1019 = vsel %vm359, %v1018, %v1014
  %v1020 = vlaneseq
  %v1021 = vshrl.u32 %v1020, 7
  %v1022 = vsub.s32 %v361, %v1021
  %v1023 = vrot.slane %v779, %v1022
  %v1024 = vsel %vm366, %v1023, %v1019
  %v1025 = vlaneseq
  %v1026 = vshrl.u32 %v1025, 7
  %v1027 = vsub.s32 %v368, %v1026
  %v1028 = vrot.slane %v782, %v1027
  %v1029 = vsel %vm373, %v1028, %v1024
  %v1030 = vlaneseq
  %v1031 = vshrl.u32 %v1030, 7
  %v1032 = vsub.s32 %v335, %v1031
  %v1033 = vrot.slane %v785, %v1032
  %v1034 = vlaneseq
  %v1035 = vshrl.u32 %v1034, 7
  %v1036 = vsub.s32 %v340, %v1035
  %v1037 = vrot.slane %v788, %v1036
  %v1038 = vsel %vm345, %v1037, %v1033
  %v1039 = vlaneseq
  %v1040 = vshrl.u32 %v1039, 7
  %v1041 = vsub.s32 %v347, %v1040
  %v1042 = vrot.slane %v791, %v1041
  %v1043 = vsel %vm352, %v1042, %v1038
  %v1044 = vlaneseq
  %v1045 = vshrl.u32 %v1044, 7
  %v1046 = vsub.s32 %v354, %v1045
  %v1047 = vrot.slane %v794, %v1046
  %v1048 = vsel %vm359, %v1047, %v1043
  %v1049 = vlaneseq
  %v1050 = vshrl.u32 %v1049, 7
  %v1051 = vsub.s32 %v361, %v1050
  %v1052 = vrot.slane %v797, %v1051
  %v1053 = vsel %vm366, %v1052, %v1048
  %v1054 = vlaneseq
  %v1055 = vshrl.u32 %v1054, 7
  %v1056 = vsub.s32 %v368, %v1055
  %v1057 = vrot.slane %v800, %v1056
  %v1058 = vsel %vm373, %v1057, %v1053
  %v1059 = vlaneseq
  %v1060 = vshrl.u32 %v1059, 7
  %v1061 = vsub.s32 %v335, %v1060
  %v1062 = vrot.slane %v803, %v1061
  %v1063 = vlaneseq
  %v1064 = vshrl.u32 %v1063, 7
  %v1065 = vsub.s32 %v340, %v1064
  %v1066 = vrot.slane %v806, %v1065
  %v1067 = vsel %vm345, %v1066, %v1062
  %v1068 = vlaneseq
  %v1069 = vshrl.u32 %v1068, 7
  %v1070 = vsub.s32 %v347, %v1069
  %v1071 = vrot.slane %v809, %v1070
  %v1072 = vsel %vm352, %v1071, %v1067
  %v1073 = vlaneseq
  %v1074 = vshrl.u32 %v1073, 7
  %v1075 = vsub.s32 %v354, %v1074
  %v1076 = vrot.slane %v812, %v1075
  %v1077 = vsel %vm359, %v1076, %v1072
  %v1078 = vlaneseq
  %v1079 = vshrl.u32 %v1078, 7
  %v1080 = vsub.s32 %v361, %v1079
  %v1081 = vrot.slane %v815, %v1080
  %v1082 = vsel %vm366, %v1081, %v1077
  %v1083 = vlaneseq
  %v1084 = vshrl.u32 %v1083, 7
  %v1085 = vsub.s32 %v368, %v1084
  %v1086 = vrot.slane %v818, %v1085
  %v1087 = vsel %vm373, %v1086, %v1082
  %v1088 = vlaneseq
  %v1089 = vshrl.u32 %v1088, 7
  %v1090 = vsub.s32 %v335, %v1089
  %v1091 = vrot.slane %v821, %v1090
  %v1092 = vlaneseq
  %v1093 = vshrl.u32 %v1092, 7
  %v1094 = vsub.s32 %v340, %v1093
  %v1095 = vrot.slane %v824, %v1094
  %v1096 = vsel %vm345, %v1095, %v1091
  %v1097 = vlaneseq
  %v1098 = vshrl.u32 %v1097, 7
  %v1099 = vsub.s32 %v347, %v1098
  %v1100 = vrot.slane %v827, %v1099
  %v1101 = vsel %vm352, %v1100, %v1096
  %v1102 = vlaneseq
  %v1103 = vshrl.u32 %v1102, 7
  %v1104 = vsub.s32 %v354, %v1103
  %v1105 = vrot.slane %v830, %v1104
  %v1106 = vsel %vm359, %v1105, %v1101
  %v1107 = vlaneseq
  %v1108 = vshrl.u32 %v1107, 7
  %v1109 = vsub.s32 %v361, %v1108
  %v1110 = vrot.slane %v833, %v1109
  %v1111 = vsel %vm366, %v1110, %v1106
  %v1112 = vlaneseq
  %v1113 = vshrl.u32 %v1112, 7
  %v1114 = vsub.s32 %v368, %v1113
  %v1115 = vrot.slane %v836, %v1114
  %v1116 = vsel %vm373, %v1115, %v1111
  %v1117 = vsel %vm578, %v942, %v913
  %v1118 = vsel %vm580, %v971, %v1117
  %v1119 = vsel %vm582, %v1000, %v1118
  %v1120 = vsel %vm584, %v1029, %v1119
  %v1121 = vsel %vm586, %v1058, %v1120
  %v1122 = vsel %vm588, %v1087, %v1121
  %v1123 = vsel %vm590, %v1116, %v1122
  %v1125 = vadd.f32 %v596, %v1123
  %1126 = vst.msk [vmem:[#allocation3] sm:$0xff] %vm594, %v1125
  %v1127 = vld [vmem:[#allocation4] sm:$0xff]
  %v1128 = vld [vmem:[%s2] sm:$0xf]
  %v1129 = vld [vmem:[%s2 + $0x4] sm:$0xf]
  %v1130 = vld [vmem:[%s2 + $0x8] sm:$0xf]
  %v1131 = vld [vmem:[%s2 + $0xc] sm:$0xf]
  %v1132 = vld [vmem:[%s2 + $0x10] sm:$0xf]
  %v1133 = vld [vmem:[%s2 + $0x14] sm:$0xf]
  %v1134 = vld [vmem:[%s2 + $0x18] sm:$0xf]
  %v1135 = vld [vmem:[%s2 + $0x1c] sm:$0xf]
  %v1136 = vld [vmem:[%s2 + $0x20] sm:$0xf]
  %v1137 = vld [vmem:[%s2 + $0x24] sm:$0xf]
  %v1138 = vld [vmem:[%s2 + $0x28] sm:$0xf]
  %v1139 = vld [vmem:[%s2 + $0x2c] sm:$0xf]
  %v1140 = vld [vmem:[%s2 + $0x30] sm:$0xf]
  %v1141 = vld [vmem:[%s2 + $0x34] sm:$0xf]
  %v1142 = vld [vmem:[%s2 + $0x38] sm:$0xf]
  %v1143 = vld [vmem:[%s2 + $0x3c] sm:$0xf]
  %v1144 = vld [vmem:[%s2 + $0x40] sm:$0xf]
  %v1145 = vld [vmem:[%s2 + $0x44] sm:$0xf]
  %v1146 = vld [vmem:[%s2 + $0x48] sm:$0xf]
  %v1147 = vld [vmem:[%s2 + $0x4c] sm:$0xf]
  %v1148 = vld [vmem:[%s2 + $0x50] sm:$0xf]
  %v1149 = vld [vmem:[%s2 + $0x54] sm:$0xf]
  %v1150 = vld [vmem:[%s2 + $0x58] sm:$0xf]
  %v1151 = vld [vmem:[%s2 + $0x5c] sm:$0xf]
  %v1152 = vld [vmem:[%s2 + $0x60] sm:$0xf]
  %v1153 = vld [vmem:[%s2 + $0x64] sm:$0xf]
  %v1154 = vld [vmem:[%s2 + $0x68] sm:$0xf]
  %v1155 = vld [vmem:[%s2 + $0x6c] sm:$0xf]
  %v1156 = vld [vmem:[%s2 + $0x70] sm:$0xf]
  %v1157 = vld [vmem:[%s2 + $0x74] sm:$0xf]
  %v1158 = vld [vmem:[%s2 + $0x78] sm:$0xf]
  %v1159 = vld [vmem:[%s2 + $0x7c] sm:$0xf]
  %v1160 = vld [vmem:[%s2 + $0x80] sm:$0xf]
  %v1161 = vld [vmem:[%s2 + $0x84] sm:$0xf]
  %v1162 = vld [vmem:[%s2 + $0x88] sm:$0xf]
  %v1163 = vld [vmem:[%s2 + $0x8c] sm:$0xf]
  %v1164 = vld [vmem:[%s2 + $0x90] sm:$0xf]
  %v1165 = vld [vmem:[%s2 + $0x94] sm:$0xf]
  %v1166 = vld [vmem:[%s2 + $0x98] sm:$0xf]
  %v1167 = vld [vmem:[%s2 + $0x9c] sm:$0xf]
  %v1168 = vld [vmem:[%s2 + $0xa0] sm:$0xf]
  %v1169 = vld [vmem:[%s2 + $0xa4] sm:$0xf]
  %v1170 = vld [vmem:[%s2 + $0xa8] sm:$0xf]
  %v1171 = vld [vmem:[%s2 + $0xac] sm:$0xf]
  %v1172 = vld [vmem:[%s2 + $0xb0] sm:$0xf]
  %v1173 = vld [vmem:[%s2 + $0xb4] sm:$0xf]
  %v1174 = vld [vmem:[%s2 + $0xb8] sm:$0xf]
  %v1175 = vld [vmem:[%s2 + $0xbc] sm:$0xf]
  %v1176 = vunpack.c.l.bf16 %v1128
  %v1177 = vunpack.c.l.bf16 %v1129
  %v1178 = vunpack.c.l.bf16 %v1130
  %v1179 = vunpack.c.l.bf16 %v1131
  %v1180 = vunpack.c.l.bf16 %v1132
  %v1181 = vunpack.c.l.bf16 %v1133
  %v1182 = vunpack.c.l.bf16 %v1134
  %v1183 = vunpack.c.l.bf16 %v1135
  %v1184 = vunpack.c.l.bf16 %v1136
  %v1185 = vunpack.c.l.bf16 %v1137
  %v1186 = vunpack.c.l.bf16 %v1138
  %v1187 = vunpack.c.l.bf16 %v1139
  %v1188 = vunpack.c.l.bf16 %v1140
  %v1189 = vunpack.c.l.bf16 %v1141
  %v1190 = vunpack.c.l.bf16 %v1142
  %v1191 = vunpack.c.l.bf16 %v1143
  %v1192 = vunpack.c.l.bf16 %v1144
  %v1193 = vunpack.c.l.bf16 %v1145
  %v1194 = vunpack.c.l.bf16 %v1146
  %v1195 = vunpack.c.l.bf16 %v1147
  %v1196 = vunpack.c.l.bf16 %v1148
  %v1197 = vunpack.c.l.bf16 %v1149
  %v1198 = vunpack.c.l.bf16 %v1150
  %v1199 = vunpack.c.l.bf16 %v1151
  %v1200 = vunpack.c.l.bf16 %v1152
  %v1201 = vunpack.c.l.bf16 %v1153
  %v1202 = vunpack.c.l.bf16 %v1154
  %v1203 = vunpack.c.l.bf16 %v1155
  %v1204 = vunpack.c.l.bf16 %v1156
  %v1205 = vunpack.c.l.bf16 %v1157
  %v1206 = vunpack.c.l.bf16 %v1158
  %v1207 = vunpack.c.l.bf16 %v1159
  %v1208 = vunpack.c.l.bf16 %v1160
  %v1209 = vunpack.c.l.bf16 %v1161
  %v1210 = vunpack.c.l.bf16 %v1162
  %v1211 = vunpack.c.l.bf16 %v1163
  %v1212 = vunpack.c.l.bf16 %v1164
  %v1213 = vunpack.c.l.bf16 %v1165
  %v1214 = vunpack.c.l.bf16 %v1166
  %v1215 = vunpack.c.l.bf16 %v1167
  %v1216 = vunpack.c.l.bf16 %v1168
  %v1217 = vunpack.c.l.bf16 %v1169
  %v1218 = vunpack.c.l.bf16 %v1170
  %v1219 = vunpack.c.l.bf16 %v1171
  %v1220 = vunpack.c.l.bf16 %v1172
  %v1221 = vunpack.c.l.bf16 %v1173
  %v1222 = vunpack.c.l.bf16 %v1174
  %v1223 = vunpack.c.l.bf16 %v1175
  %v1224 = vsel %vm141, %v1176, 0.0
  %1225 = vadd.xlane.f32.xlu0 %v1224
  %v1226 = vpop.xlane.xlu0 %1225
  %v1227 = vsel %vm141, %v1177, 0.0
  %1228 = vadd.xlane.f32.xlu0 %v1227
  %v1229 = vpop.xlane.xlu0 %1228
  %v1230 = vsel %vm141, %v1178, 0.0
  %1231 = vadd.xlane.f32.xlu0 %v1230
  %v1232 = vpop.xlane.xlu0 %1231
  %v1233 = vsel %vm141, %v1179, 0.0
  %1234 = vadd.xlane.f32.xlu0 %v1233
  %v1235 = vpop.xlane.xlu0 %1234
  %v1236 = vsel %vm141, %v1180, 0.0
  %1237 = vadd.xlane.f32.xlu0 %v1236
  %v1238 = vpop.xlane.xlu0 %1237
  %v1239 = vsel %vm141, %v1181, 0.0
  %1240 = vadd.xlane.f32.xlu0 %v1239
  %v1241 = vpop.xlane.xlu0 %1240
  %v1242 = vsel %vm141, %v1182, 0.0
  %1243 = vadd.xlane.f32.xlu0 %v1242
  %v1244 = vpop.xlane.xlu0 %1243
  %v1245 = vsel %vm141, %v1183, 0.0
  %1246 = vadd.xlane.f32.xlu0 %v1245
  %v1247 = vpop.xlane.xlu0 %1246
  %v1248 = vsel %vm141, %v1184, 0.0
  %1249 = vadd.xlane.f32.xlu0 %v1248
  %v1250 = vpop.xlane.xlu0 %1249
  %v1251 = vsel %vm141, %v1185, 0.0
  %1252 = vadd.xlane.f32.xlu0 %v1251
  %v1253 = vpop.xlane.xlu0 %1252
  %v1254 = vsel %vm141, %v1186, 0.0
  %1255 = vadd.xlane.f32.xlu0 %v1254
  %v1256 = vpop.xlane.xlu0 %1255
  %v1257 = vsel %vm141, %v1187, 0.0
  %1258 = vadd.xlane.f32.xlu0 %v1257
  %v1259 = vpop.xlane.xlu0 %1258
  %v1260 = vsel %vm141, %v1188, 0.0
  %1261 = vadd.xlane.f32.xlu0 %v1260
  %v1262 = vpop.xlane.xlu0 %1261
  %v1263 = vsel %vm141, %v1189, 0.0
  %1264 = vadd.xlane.f32.xlu0 %v1263
  %v1265 = vpop.xlane.xlu0 %1264
  %v1266 = vsel %vm141, %v1190, 0.0
  %1267 = vadd.xlane.f32.xlu0 %v1266
  %v1268 = vpop.xlane.xlu0 %1267
  %v1269 = vsel %vm141, %v1191, 0.0
  %1270 = vadd.xlane.f32.xlu0 %v1269
  %v1271 = vpop.xlane.xlu0 %1270
  %v1272 = vsel %vm141, %v1192, 0.0
  %1273 = vadd.xlane.f32.xlu0 %v1272
  %v1274 = vpop.xlane.xlu0 %1273
  %v1275 = vsel %vm141, %v1193, 0.0
  %1276 = vadd.xlane.f32.xlu0 %v1275
  %v1277 = vpop.xlane.xlu0 %1276
  %v1278 = vsel %vm141, %v1194, 0.0
  %1279 = vadd.xlane.f32.xlu0 %v1278
  %v1280 = vpop.xlane.xlu0 %1279
  %v1281 = vsel %vm141, %v1195, 0.0
  %1282 = vadd.xlane.f32.xlu0 %v1281
  %v1283 = vpop.xlane.xlu0 %1282
  %v1284 = vsel %vm141, %v1196, 0.0
  %1285 = vadd.xlane.f32.xlu0 %v1284
  %v1286 = vpop.xlane.xlu0 %1285
  %v1287 = vsel %vm141, %v1197, 0.0
  %1288 = vadd.xlane.f32.xlu0 %v1287
  %v1289 = vpop.xlane.xlu0 %1288
  %v1290 = vsel %vm141, %v1198, 0.0
  %1291 = vadd.xlane.f32.xlu0 %v1290
  %v1292 = vpop.xlane.xlu0 %1291
  %v1293 = vsel %vm141, %v1199, 0.0
  %1294 = vadd.xlane.f32.xlu0 %v1293
  %v1295 = vpop.xlane.xlu0 %1294
  %v1296 = vsel %vm141, %v1200, 0.0
  %1297 = vadd.xlane.f32.xlu0 %v1296
  %v1298 = vpop.xlane.xlu0 %1297
  %v1299 = vsel %vm141, %v1201, 0.0
  %1300 = vadd.xlane.f32.xlu0 %v1299
  %v1301 = vpop.xlane.xlu0 %1300
  %v1302 = vsel %vm141, %v1202, 0.0
  %1303 = vadd.xlane.f32.xlu0 %v1302
  %v1304 = vpop.xlane.xlu0 %1303
  %v1305 = vsel %vm141, %v1203, 0.0
  %1306 = vadd.xlane.f32.xlu0 %v1305
  %v1307 = vpop.xlane.xlu0 %1306
  %v1308 = vsel %vm141, %v1204, 0.0
  %1309 = vadd.xlane.f32.xlu0 %v1308
  %v1310 = vpop.xlane.xlu0 %1309
  %v1311 = vsel %vm141, %v1205, 0.0
  %1312 = vadd.xlane.f32.xlu0 %v1311
  %v1313 = vpop.xlane.xlu0 %1312
  %v1314 = vsel %vm141, %v1206, 0.0
  %1315 = vadd.xlane.f32.xlu0 %v1314
  %v1316 = vpop.xlane.xlu0 %1315
  %v1317 = vsel %vm141, %v1207, 0.0
  %1318 = vadd.xlane.f32.xlu0 %v1317
  %v1319 = vpop.xlane.xlu0 %1318
  %v1320 = vsel %vm141, %v1208, 0.0
  %1321 = vadd.xlane.f32.xlu0 %v1320
  %v1322 = vpop.xlane.xlu0 %1321
  %v1323 = vsel %vm141, %v1209, 0.0
  %1324 = vadd.xlane.f32.xlu0 %v1323
  %v1325 = vpop.xlane.xlu0 %1324
  %v1326 = vsel %vm141, %v1210, 0.0
  %1327 = vadd.xlane.f32.xlu0 %v1326
  %v1328 = vpop.xlane.xlu0 %1327
  %v1329 = vsel %vm141, %v1211, 0.0
  %1330 = vadd.xlane.f32.xlu0 %v1329
  %v1331 = vpop.xlane.xlu0 %1330
  %v1332 = vsel %vm141, %v1212, 0.0
  %1333 = vadd.xlane.f32.xlu0 %v1332
  %v1334 = vpop.xlane.xlu0 %1333
  %v1335 = vsel %vm141, %v1213, 0.0
  %1336 = vadd.xlane.f32.xlu0 %v1335
  %v1337 = vpop.xlane.xlu0 %1336
  %v1338 = vsel %vm141, %v1214, 0.0
  %1339 = vadd.xlane.f32.xlu0 %v1338
  %v1340 = vpop.xlane.xlu0 %1339
  %v1341 = vsel %vm141, %v1215, 0.0
  %1342 = vadd.xlane.f32.xlu0 %v1341
  %v1343 = vpop.xlane.xlu0 %1342
  %v1344 = vsel %vm141, %v1216, 0.0
  %1345 = vadd.xlane.f32.xlu0 %v1344
  %v1346 = vpop.xlane.xlu0 %1345
  %v1347 = vsel %vm141, %v1217, 0.0
  %1348 = vadd.xlane.f32.xlu0 %v1347
  %v1349 = vpop.xlane.xlu0 %1348
  %v1350 = vsel %vm141, %v1218, 0.0
  %1351 = vadd.xlane.f32.xlu0 %v1350
  %v1352 = vpop.xlane.xlu0 %1351
  %v1353 = vsel %vm141, %v1219, 0.0
  %1354 = vadd.xlane.f32.xlu0 %v1353
  %v1355 = vpop.xlane.xlu0 %1354
  %v1356 = vsel %vm141, %v1220, 0.0
  %1357 = vadd.xlane.f32.xlu0 %v1356
  %v1358 = vpop.xlane.xlu0 %1357
  %v1359 = vsel %vm141, %v1221, 0.0
  %1360 = vadd.xlane.f32.xlu0 %v1359
  %v1361 = vpop.xlane.xlu0 %1360
  %v1362 = vsel %vm141, %v1222, 0.0
  %1363 = vadd.xlane.f32.xlu0 %v1362
  %v1364 = vpop.xlane.xlu0 %1363
  %v1365 = vsel %vm141, %v1223, 0.0
  %1366 = vadd.xlane.f32.xlu0 %v1365
  %v1367 = vpop.xlane.xlu0 %1366
  %v1416 = vlaneseq
  %v1417 = vshrl.u32 %v1416, 7
  %v1418 = vsub.s32 %v335, %v1417
  %v1419 = vrot.slane %v1226, %v1418
  %v1420 = vlaneseq
  %v1421 = vshrl.u32 %v1420, 7
  %v1422 = vsub.s32 %v340, %v1421
  %v1423 = vrot.slane %v1229, %v1422
  %v1424 = vsel %vm345, %v1423, %v1419
  %v1425 = vlaneseq
  %v1426 = vshrl.u32 %v1425, 7
  %v1427 = vsub.s32 %v347, %v1426
  %v1428 = vrot.slane %v1232, %v1427
  %v1429 = vsel %vm352, %v1428, %v1424
  %v1430 = vlaneseq
  %v1431 = vshrl.u32 %v1430, 7
  %v1432 = vsub.s32 %v354, %v1431
  %v1433 = vrot.slane %v1235, %v1432
  %v1434 = vsel %vm359, %v1433, %v1429
  %v1435 = vlaneseq
  %v1436 = vshrl.u32 %v1435, 7
  %v1437 = vsub.s32 %v361, %v1436
  %v1438 = vrot.slane %v1238, %v1437
  %v1439 = vsel %vm366, %v1438, %v1434
  %v1440 = vlaneseq
  %v1441 = vshrl.u32 %v1440, 7
  %v1442 = vsub.s32 %v368, %v1441
  %v1443 = vrot.slane %v1241, %v1442
  %v1444 = vsel %vm373, %v1443, %v1439
  %v1445 = vlaneseq
  %v1446 = vshrl.u32 %v1445, 7
  %v1447 = vsub.s32 %v335, %v1446
  %v1448 = vrot.slane %v1244, %v1447
  %v1449 = vlaneseq
  %v1450 = vshrl.u32 %v1449, 7
  %v1451 = vsub.s32 %v340, %v1450
  %v1452 = vrot.slane %v1247, %v1451
  %v1453 = vsel %vm345, %v1452, %v1448
  %v1454 = vlaneseq
  %v1455 = vshrl.u32 %v1454, 7
  %v1456 = vsub.s32 %v347, %v1455
  %v1457 = vrot.slane %v1250, %v1456
  %v1458 = vsel %vm352, %v1457, %v1453
  %v1459 = vlaneseq
  %v1460 = vshrl.u32 %v1459, 7
  %v1461 = vsub.s32 %v354, %v1460
  %v1462 = vrot.slane %v1253, %v1461
  %v1463 = vsel %vm359, %v1462, %v1458
  %v1464 = vlaneseq
  %v1465 = vshrl.u32 %v1464, 7
  %v1466 = vsub.s32 %v361, %v1465
  %v1467 = vrot.slane %v1256, %v1466
  %v1468 = vsel %vm366, %v1467, %v1463
  %v1469 = vlaneseq
  %v1470 = vshrl.u32 %v1469, 7
  %v1471 = vsub.s32 %v368, %v1470
  %v1472 = vrot.slane %v1259, %v1471
  %v1473 = vsel %vm373, %v1472, %v1468
  %v1474 = vlaneseq
  %v1475 = vshrl.u32 %v1474, 7
  %v1476 = vsub.s32 %v335, %v1475
  %v1477 = vrot.slane %v1262, %v1476
  %v1478 = vlaneseq
  %v1479 = vshrl.u32 %v1478, 7
  %v1480 = vsub.s32 %v340, %v1479
  %v1481 = vrot.slane %v1265, %v1480
  %v1482 = vsel %vm345, %v1481, %v1477
  %v1483 = vlaneseq
  %v1484 = vshrl.u32 %v1483, 7
  %v1485 = vsub.s32 %v347, %v1484
  %v1486 = vrot.slane %v1268, %v1485
  %v1487 = vsel %vm352, %v1486, %v1482
  %v1488 = vlaneseq
  %v1489 = vshrl.u32 %v1488, 7
  %v1490 = vsub.s32 %v354, %v1489
  %v1491 = vrot.slane %v1271, %v1490
  %v1492 = vsel %vm359, %v1491, %v1487
  %v1493 = vlaneseq
  %v1494 = vshrl.u32 %v1493, 7
  %v1495 = vsub.s32 %v361, %v1494
  %v1496 = vrot.slane %v1274, %v1495
  %v1497 = vsel %vm366, %v1496, %v1492
  %v1498 = vlaneseq
  %v1499 = vshrl.u32 %v1498, 7
  %v1500 = vsub.s32 %v368, %v1499
  %v1501 = vrot.slane %v1277, %v1500
  %v1502 = vsel %vm373, %v1501, %v1497
  %v1503 = vlaneseq
  %v1504 = vshrl.u32 %v1503, 7
  %v1505 = vsub.s32 %v335, %v1504
  %v1506 = vrot.slane %v1280, %v1505
  %v1507 = vlaneseq
  %v1508 = vshrl.u32 %v1507, 7
  %v1509 = vsub.s32 %v340, %v1508
  %v1510 = vrot.slane %v1283, %v1509
  %v1511 = vsel %vm345, %v1510, %v1506
  %v1512 = vlaneseq
  %v1513 = vshrl.u32 %v1512, 7
  %v1514 = vsub.s32 %v347, %v1513
  %v1515 = vrot.slane %v1286, %v1514
  %v1516 = vsel %vm352, %v1515, %v1511
  %v1517 = vlaneseq
  %v1518 = vshrl.u32 %v1517, 7
  %v1519 = vsub.s32 %v354, %v1518
  %v1520 = vrot.slane %v1289, %v1519
  %v1521 = vsel %vm359, %v1520, %v1516
  %v1522 = vlaneseq
  %v1523 = vshrl.u32 %v1522, 7
  %v1524 = vsub.s32 %v361, %v1523
  %v1525 = vrot.slane %v1292, %v1524
  %v1526 = vsel %vm366, %v1525, %v1521
  %v1527 = vlaneseq
  %v1528 = vshrl.u32 %v1527, 7
  %v1529 = vsub.s32 %v368, %v1528
  %v1530 = vrot.slane %v1295, %v1529
  %v1531 = vsel %vm373, %v1530, %v1526
  %v1532 = vlaneseq
  %v1533 = vshrl.u32 %v1532, 7
  %v1534 = vsub.s32 %v335, %v1533
  %v1535 = vrot.slane %v1298, %v1534
  %v1536 = vlaneseq
  %v1537 = vshrl.u32 %v1536, 7
  %v1538 = vsub.s32 %v340, %v1537
  %v1539 = vrot.slane %v1301, %v1538
  %v1540 = vsel %vm345, %v1539, %v1535
  %v1541 = vlaneseq
  %v1542 = vshrl.u32 %v1541, 7
  %v1543 = vsub.s32 %v347, %v1542
  %v1544 = vrot.slane %v1304, %v1543
  %v1545 = vsel %vm352, %v1544, %v1540
  %v1546 = vlaneseq
  %v1547 = vshrl.u32 %v1546, 7
  %v1548 = vsub.s32 %v354, %v1547
  %v1549 = vrot.slane %v1307, %v1548
  %v1550 = vsel %vm359, %v1549, %v1545
  %v1551 = vlaneseq
  %v1552 = vshrl.u32 %v1551, 7
  %v1553 = vsub.s32 %v361, %v1552
  %v1554 = vrot.slane %v1310, %v1553
  %v1555 = vsel %vm366, %v1554, %v1550
  %v1556 = vlaneseq
  %v1557 = vshrl.u32 %v1556, 7
  %v1558 = vsub.s32 %v368, %v1557
  %v1559 = vrot.slane %v1313, %v1558
  %v1560 = vsel %vm373, %v1559, %v1555
  %v1561 = vlaneseq
  %v1562 = vshrl.u32 %v1561, 7
  %v1563 = vsub.s32 %v335, %v1562
  %v1564 = vrot.slane %v1316, %v1563
  %v1565 = vlaneseq
  %v1566 = vshrl.u32 %v1565, 7
  %v1567 = vsub.s32 %v340, %v1566
  %v1568 = vrot.slane %v1319, %v1567
  %v1569 = vsel %vm345, %v1568, %v1564
  %v1570 = vlaneseq
  %v1571 = vshrl.u32 %v1570, 7
  %v1572 = vsub.s32 %v347, %v1571
  %v1573 = vrot.slane %v1322, %v1572
  %v1574 = vsel %vm352, %v1573, %v1569
  %v1575 = vlaneseq
  %v1576 = vshrl.u32 %v1575, 7
  %v1577 = vsub.s32 %v354, %v1576
  %v1578 = vrot.slane %v1325, %v1577
  %v1579 = vsel %vm359, %v1578, %v1574
  %v1580 = vlaneseq
  %v1581 = vshrl.u32 %v1580, 7
  %v1582 = vsub.s32 %v361, %v1581
  %v1583 = vrot.slane %v1328, %v1582
  %v1584 = vsel %vm366, %v1583, %v1579
  %v1585 = vlaneseq
  %v1586 = vshrl.u32 %v1585, 7
  %v1587 = vsub.s32 %v368, %v1586
  %v1588 = vrot.slane %v1331, %v1587
  %v1589 = vsel %vm373, %v1588, %v1584
  %v1590 = vlaneseq
  %v1591 = vshrl.u32 %v1590, 7
  %v1592 = vsub.s32 %v335, %v1591
  %v1593 = vrot.slane %v1334, %v1592
  %v1594 = vlaneseq
  %v1595 = vshrl.u32 %v1594, 7
  %v1596 = vsub.s32 %v340, %v1595
  %v1597 = vrot.slane %v1337, %v1596
  %v1598 = vsel %vm345, %v1597, %v1593
  %v1599 = vlaneseq
  %v1600 = vshrl.u32 %v1599, 7
  %v1601 = vsub.s32 %v347, %v1600
  %v1602 = vrot.slane %v1340, %v1601
  %v1603 = vsel %vm352, %v1602, %v1598
  %v1604 = vlaneseq
  %v1605 = vshrl.u32 %v1604, 7
  %v1606 = vsub.s32 %v354, %v1605
  %v1607 = vrot.slane %v1343, %v1606
  %v1608 = vsel %vm359, %v1607, %v1603
  %v1609 = vlaneseq
  %v1610 = vshrl.u32 %v1609, 7
  %v1611 = vsub.s32 %v361, %v1610
  %v1612 = vrot.slane %v1346, %v1611
  %v1613 = vsel %vm366, %v1612, %v1608
  %v1614 = vlaneseq
  %v1615 = vshrl.u32 %v1614, 7
  %v1616 = vsub.s32 %v368, %v1615
  %v1617 = vrot.slane %v1349, %v1616
  %v1618 = vsel %vm373, %v1617, %v1613
  %v1619 = vlaneseq
  %v1620 = vshrl.u32 %v1619, 7
  %v1621 = vsub.s32 %v335, %v1620
  %v1622 = vrot.slane %v1352, %v1621
  %v1623 = vlaneseq
  %v1624 = vshrl.u32 %v1623, 7
  %v1625 = vsub.s32 %v340, %v1624
  %v1626 = vrot.slane %v1355, %v1625
  %v1627 = vsel %vm345, %v1626, %v1622
  %v1628 = vlaneseq
  %v1629 = vshrl.u32 %v1628, 7
  %v1630 = vsub.s32 %v347, %v1629
  %v1631 = vrot.slane %v1358, %v1630
  %v1632 = vsel %vm352, %v1631, %v1627
  %v1633 = vlaneseq
  %v1634 = vshrl.u32 %v1633, 7
  %v1635 = vsub.s32 %v354, %v1634
  %v1636 = vrot.slane %v1361, %v1635
  %v1637 = vsel %vm359, %v1636, %v1632
  %v1638 = vlaneseq
  %v1639 = vshrl.u32 %v1638, 7
  %v1640 = vsub.s32 %v361, %v1639
  %v1641 = vrot.slane %v1364, %v1640
  %v1642 = vsel %vm366, %v1641, %v1637
  %v1643 = vlaneseq
  %v1644 = vshrl.u32 %v1643, 7
  %v1645 = vsub.s32 %v368, %v1644
  %v1646 = vrot.slane %v1367, %v1645
  %v1647 = vsel %vm373, %v1646, %v1642
  %v1648 = vsel %vm578, %v1473, %v1444
  %v1649 = vsel %vm580, %v1502, %v1648
  %v1650 = vsel %vm582, %v1531, %v1649
  %v1651 = vsel %vm584, %v1560, %v1650
  %v1652 = vsel %vm586, %v1589, %v1651
  %v1653 = vsel %vm588, %v1618, %v1652
  %v1654 = vsel %vm590, %v1647, %v1653
  %v1656 = vadd.f32 %v1127, %v1654
  %1657 = vst.msk [vmem:[#allocation4] sm:$0xff] %vm594, %v1656
  // Predicated region
  $region42: #{_lambda_.1} parent=0 // pred_check
    %p1658 = pneg %p36
  $region43: #{_lambda_.1} parent=0 // pred_check_branch
    %1660 = sbr.rel (%p1658) target = $region45
  $region44: #{_lambda_.1} parent=0 // pred_region
    %v1661 = vld [vmem:[#allocation2] sm:$0xff]
    %v1662 = vmul.f32 %v1661, 0.0625
    %v1663 = vpack.c.bf16 %v1662, %v1662
    %v1664 = vld [vmem:[%s3] sm:$0xff]
    %v1665 = vld [vmem:[%s3 + $0x8] sm:$0xff]
    %v1666 = vld [vmem:[%s3 + $0x10] sm:$0xff]
    %v1667 = vld [vmem:[%s3 + $0x18] sm:$0xff]
    %v1668 = vld [vmem:[%s3 + $0x20] sm:$0xff]
    %v1669 = vld [vmem:[%s3 + $0x28] sm:$0xff]
    %v1670 = vld [vmem:[%s3 + $0x30] sm:$0xff]
    %v1671 = vld [vmem:[%s3 + $0x38] sm:$0xff]
    %v1672 = vld [vmem:[%s3 + $0x40] sm:$0xff]
    %v1673 = vld [vmem:[%s3 + $0x48] sm:$0xff]
    %v1674 = vld [vmem:[%s3 + $0x50] sm:$0xff]
    %v1675 = vld [vmem:[%s3 + $0x58] sm:$0xff]
    %v1676 = vld [vmem:[%s3 + $0x60] sm:$0xff]
    %v1677 = vld [vmem:[%s3 + $0x68] sm:$0xff]
    %v1678 = vld [vmem:[%s3 + $0x70] sm:$0xff]
    %v1679 = vld [vmem:[%s3 + $0x78] sm:$0xff]
    %v1680 = vld [vmem:[%s3 + $0x80] sm:$0xff]
    %v1681 = vld [vmem:[%s3 + $0x88] sm:$0xff]
    %v1682 = vld [vmem:[%s4] sm:$0x3f]
    %v1684 = vlaneseq
    %v1685 = vshrl.u32 %v1684, 7
    %v1686 = vsub.s32 0, %v1685
    %v1687 = vrot.slane %v1682, %v1686
    %v1688 = vlaneseq
    %v1689 = vshrl.u32 %v1688, 7
    %v1690 = vsub.s32 1, %v1689
    %v1691 = vrot.slane %v1682, %v1690
    %v1692 = vlaneseq
    %v1693 = vshrl.u32 %v1692, 7
    %v1694 = vsub.s32 2, %v1693
    %v1695 = vrot.slane %v1682, %v1694
    %v1696 = vlaneseq
    %v1697 = vshrl.u32 %v1696, 7
    %v1698 = vsub.s32 3, %v1697
    %v1699 = vrot.slane %v1682, %v1698
    %v1700 = vlaneseq
    %v1701 = vshrl.u32 %v1700, 7
    %v1702 = vsub.s32 4, %v1701
    %v1703 = vrot.slane %v1682, %v1702
    %v1704 = vlaneseq
    %v1705 = vshrl.u32 %v1704, 7
    %v1706 = vsub.s32 5, %v1705
    %v1707 = vrot.slane %v1682, %v1706
    %v1732 = vunpack.c.l.b16 %v1664
    %v1733 = vunpack.c.h.b16 %v1664
    %v1734 = vunpack.c.l.b16 %v1665
    %v1735 = vunpack.c.h.b16 %v1665
    %v1736 = vunpack.c.l.b16 %v1666
    %v1737 = vunpack.c.h.b16 %v1666
    %v1738 = vunpack.c.l.b16 %v1667
    %v1739 = vunpack.c.h.b16 %v1667
    %v1740 = vunpack.c.l.b16 %v1668
    %v1741 = vunpack.c.h.b16 %v1668
    %v1742 = vunpack.c.l.b16 %v1669
    %v1743 = vunpack.c.h.b16 %v1669
    %v1744 = vunpack.c.l.b16 %v1670
    %v1745 = vunpack.c.h.b16 %v1670
    %v1746 = vunpack.c.l.b16 %v1671
    %v1747 = vunpack.c.h.b16 %v1671
    %v1748 = vunpack.c.l.b16 %v1672
    %v1749 = vunpack.c.h.b16 %v1672
    %v1750 = vunpack.c.l.b16 %v1673
    %v1751 = vunpack.c.h.b16 %v1673
    %v1752 = vunpack.c.l.b16 %v1674
    %v1753 = vunpack.c.h.b16 %v1674
    %v1754 = vunpack.c.l.b16 %v1675
    %v1755 = vunpack.c.h.b16 %v1675
    %v1756 = vunpack.c.l.b16 %v1676
    %v1757 = vunpack.c.h.b16 %v1676
    %v1758 = vunpack.c.l.b16 %v1677
    %v1759 = vunpack.c.h.b16 %v1677
    %v1760 = vunpack.c.l.b16 %v1678
    %v1761 = vunpack.c.h.b16 %v1678
    %v1762 = vunpack.c.l.b16 %v1679
    %v1763 = vunpack.c.h.b16 %v1679
    %v1764 = vunpack.c.l.b16 %v1680
    %v1765 = vunpack.c.h.b16 %v1680
    %v1766 = vunpack.c.l.b16 %v1681
    %v1767 = vunpack.c.h.b16 %v1681
    %v1768 = vpack.c.b16 %v1738, %v1732
    %v1769 = vpack.c.b16 %v1739, %v1733
    %v1770 = vpack.c.b16 %v1740, %v1734
    %v1771 = vpack.c.b16 %v1741, %v1735
    %v1772 = vpack.c.b16 %v1742, %v1736
    %v1773 = vpack.c.b16 %v1743, %v1737
    %v1774 = vpack.c.b16 %v1750, %v1744
    %v1775 = vpack.c.b16 %v1751, %v1745
    %v1776 = vpack.c.b16 %v1752, %v1746
    %v1777 = vpack.c.b16 %v1753, %v1747
    %v1778 = vpack.c.b16 %v1754, %v1748
    %v1779 = vpack.c.b16 %v1755, %v1749
    %v1780 = vpack.c.b16 %v1762, %v1756
    %v1781 = vpack.c.b16 %v1763, %v1757
    %v1782 = vpack.c.b16 %v1764, %v1758
    %v1783 = vpack.c.b16 %v1765, %v1759
    %v1784 = vpack.c.b16 %v1766, %v1760
    %v1785 = vpack.c.b16 %v1767, %v1761
    %v1805 = vsel %vm594, %v1663, 0
    %1807 = vmatprep.subr.bf16.mxu0 %v1769
    %1808 = vmatpush1.bf16.msra.mxu0 %v1768
    %1809 = vmatprep.subr.bf16.mxu0 %v1775
    %1810 = vmatpush1.bf16.msra.mxu0 %v1774
    %1811 = vmatprep.subr.bf16.mxu0 %v1781
    %1812 = vmatpush1.bf16.msra.mxu0 %v1780
    %1813 = vmatprep.subr.bf16.mxu0 0
    %1814 = vmatpush1.bf16.msra.mxu0 0
    %1815 = vmatprep.subr.bf16.mxu0 0
    %1816 = vmatpush1.bf16.msra.mxu0 0
    %1817 = vmatprep.subr.bf16.mxu0 0
    %1818 = vmatpush1.bf16.msra.mxu0 0
    %1819 = vmatprep.subr.bf16.mxu0 0
    %1820 = vmatpush1.bf16.msra.mxu0 0
    %1821 = vmatprep.subr.bf16.mxu0 0
    %1822 = vmatpush1.bf16.msra.mxu0 0
    %1823 = vmatprep.subr.bf16.mxu0 0
    %1824 = vmatpush1.bf16.msra.mxu0 0
    %1825 = vmatprep.subr.bf16.mxu0 0
    %1826 = vmatpush1.bf16.msra.mxu0 0
    %1827 = vmatprep.subr.bf16.mxu0 0
    %1828 = vmatpush1.bf16.msra.mxu0 0
    %1829 = vmatprep.subr.bf16.mxu0 0
    %1830 = vmatpush1.bf16.msra.mxu0 0
    %1831 = vmatprep.subr.bf16.mxu0 0
    %1832 = vmatpush1.bf16.msra.mxu0 0
    %1833 = vmatprep.subr.bf16.mxu0 0
    %1834 = vmatpush1.bf16.msra.mxu0 0
    %1835 = vmatprep.subr.bf16.mxu0 0
    %1836 = vmatpush1.bf16.msra.mxu0 0
    %1837 = vmatprep.subr.bf16.mxu0 0
    %1838 = vmatpush1.bf16.msra.mxu0 0
    %1839 = vmatprep.mubr.bf16.mxu0 0
    %1840 = vmatmul.mubr.bf16.gmra.mrb[0].mxu0 %v1805
    %v1841 = vpop.f32.mrb[0].mxu0
    %v1842 = vadd.f32 %v1687, %v1841
    %v1843 = vpop.f32.mrb[0].mxu0
    %v1844 = vadd.f32 %v1691, %v1843
    %v1845 = vpop.f32.mrb[0].mxu0
    %v1846 = vpop.f32.mrb[0].mxu0
    %1847 = vdwg.mxu0
    %1848 = vmatprep.subr.bf16.mxu0 %v1771
    %1849 = vmatpush1.bf16.msra.mxu0 %v1770
    %1850 = vmatprep.subr.bf16.mxu0 %v1777
    %1851 = vmatpush1.bf16.msra.mxu0 %v1776
    %1852 = vmatprep.subr.bf16.mxu0 %v1783
    %1853 = vmatpush1.bf16.msra.mxu0 %v1782
    %1854 = vmatprep.subr.bf16.mxu0 0
    %1855 = vmatpush1.bf16.msra.mxu0 0
    %1856 = vmatprep.subr.bf16.mxu0 0
    %1857 = vmatpush1.bf16.msra.mxu0 0
    %1858 = vmatprep.subr.bf16.mxu0 0
    %1859 = vmatpush1.bf16.msra.mxu0 0
    %1860 = vmatprep.subr.bf16.mxu0 0
    %1861 = vmatpush1.bf16.msra.mxu0 0
    %1862 = vmatprep.subr.bf16.mxu0 0
    %1863 = vmatpush1.bf16.msra.mxu0 0
    %1864 = vmatprep.subr.bf16.mxu0 0
    %1865 = vmatpush1.bf16.msra.mxu0 0
    %1866 = vmatprep.subr.bf16.mxu0 0
    %1867 = vmatpush1.bf16.msra.mxu0 0
    %1868 = vmatprep.subr.bf16.mxu0 0
    %1869 = vmatpush1.bf16.msra.mxu0 0
    %1870 = vmatprep.subr.bf16.mxu0 0
    %1871 = vmatpush1.bf16.msra.mxu0 0
    %1872 = vmatprep.subr.bf16.mxu0 0
    %1873 = vmatpush1.bf16.msra.mxu0 0
    %1874 = vmatprep.subr.bf16.mxu0 0
    %1875 = vmatpush1.bf16.msra.mxu0 0
    %1876 = vmatprep.subr.bf16.mxu0 0
    %1877 = vmatpush1.bf16.msra.mxu0 0
    %1878 = vmatprep.subr.bf16.mxu0 0
    %1879 = vmatpush1.bf16.msra.mxu0 0
    %1880 = vmatprep.mubr.bf16.mxu0 0
    %1881 = vmatmul.mubr.bf16.gmra.mrb[0].mxu0 %v1805
    %v1882 = vpop.f32.mrb[0].mxu0
    %v1883 = vadd.f32 %v1695, %v1882
    %v1884 = vpop.f32.mrb[0].mxu0
    %v1885 = vadd.f32 %v1699, %v1884
    %v1886 = vpop.f32.mrb[0].mxu0
    %v1887 = vpop.f32.mrb[0].mxu0
    %1888 = vdwg.mxu0
    %1889 = vmatprep.subr.bf16.mxu0 %v1773
    %1890 = vmatpush1.bf16.msra.mxu0 %v1772
    %1891 = vmatprep.subr.bf16.mxu0 %v1779
    %1892 = vmatpush1.bf16.msra.mxu0 %v1778
    %1893 = vmatprep.subr.bf16.mxu0 %v1785
    %1894 = vmatpush1.bf16.msra.mxu0 %v1784
    %1895 = vmatprep.subr.bf16.mxu0 0
    %1896 = vmatpush1.bf16.msra.mxu0 0
    %1897 = vmatprep.subr.bf16.mxu0 0
    %1898 = vmatpush1.bf16.msra.mxu0 0
    %1899 = vmatprep.subr.bf16.mxu0 0
    %1900 = vmatpush1.bf16.msra.mxu0 0
    %1901 = vmatprep.subr.bf16.mxu0 0
    %1902 = vmatpush1.bf16.msra.mxu0 0
    %1903 = vmatprep.subr.bf16.mxu0 0
    %1904 = vmatpush1.bf16.msra.mxu0 0
    %1905 = vmatprep.subr.bf16.mxu0 0
    %1906 = vmatpush1.bf16.msra.mxu0 0
    %1907 = vmatprep.subr.bf16.mxu0 0
    %1908 = vmatpush1.bf16.msra.mxu0 0
    %1909 = vmatprep.subr.bf16.mxu0 0
    %1910 = vmatpush1.bf16.msra.mxu0 0
    %1911 = vmatprep.subr.bf16.mxu0 0
    %1912 = vmatpush1.bf16.msra.mxu0 0
    %1913 = vmatprep.subr.bf16.mxu0 0
    %1914 = vmatpush1.bf16.msra.mxu0 0
    %1915 = vmatprep.subr.bf16.mxu0 0
    %1916 = vmatpush1.bf16.msra.mxu0 0
    %1917 = vmatprep.subr.bf16.mxu0 0
    %1918 = vmatpush1.bf16.msra.mxu0 0
    %1919 = vmatprep.subr.bf16.mxu0 0
    %1920 = vmatpush1.bf16.msra.mxu0 0
    %1921 = vmatprep.mubr.bf16.mxu0 0
    %1922 = vmatmul.mubr.bf16.gmra.mrb[0].mxu0 %v1805
    %v1923 = vpop.f32.mrb[0].mxu0
    %v1924 = vadd.f32 %v1703, %v1923
    %v1925 = vpop.f32.mrb[0].mxu0
    %v1926 = vadd.f32 %v1707, %v1925
    %v1927 = vpop.f32.mrb[0].mxu0
    %v1928 = vpop.f32.mrb[0].mxu0
    %1929 = vdwg.mxu0
    %v1930 = vadd.f32 %v1842, %v1844
    %v1931 = vadd.f32 %v1930, %v1883
    %v1932 = vadd.f32 %v1931, %v1885
    %v1933 = vadd.f32 %v1932, %v1924
    %v1934 = vadd.f32 %v1933, %v1926
    %1935 = vadd.xlane.f32.xlu0 %v1934
    %v1936 = vpop.xlane.xlu0 %1935
    %v1937 = vrcp.pop 768.0
    %v1938 = vmul.f32 %v1936, %v1937
    %v1939 = vsub.f32 %v1842, %v1938
    %v1940 = vsub.f32 %v1844, %v1938
    %v1941 = vsub.f32 %v1883, %v1938
    %v1942 = vsub.f32 %v1885, %v1938
    %v1943 = vsub.f32 %v1924, %v1938
    %v1944 = vsub.f32 %v1926, %v1938
    %v1945 = vmul.f32 %v1939, %v1939
    %v1946 = vmul.f32 %v1940, %v1940
    %v1947 = vmul.f32 %v1941, %v1941
    %v1948 = vmul.f32 %v1942, %v1942
    %v1949 = vmul.f32 %v1943, %v1943
    %v1950 = vmul.f32 %v1944, %v1944
    %v1951 = vadd.f32 %v1945, %v1946
    %v1952 = vadd.f32 %v1951, %v1947
    %v1953 = vadd.f32 %v1952, %v1948
    %v1954 = vadd.f32 %v1953, %v1949
    %v1955 = vadd.f32 %v1954, %v1950
    %1956 = vadd.xlane.f32.xlu0 %v1955
    %v1957 = vpop.xlane.xlu0 %1956
    %v1958 = vmul.f32 %v1957, %v1937
    %v1959 = vadd.f32 %v1958, 1e-05
    %v1960 = vrsqrt.pop %v1959
    %v1961 = vmul.f32 %v1939, %v1960
    %v1962 = vmul.f32 %v1940, %v1960
    %v1963 = vmul.f32 %v1941, %v1960
    %v1964 = vmul.f32 %v1942, %v1960
    %v1965 = vmul.f32 %v1943, %v1960
    %v1966 = vmul.f32 %v1944, %v1960
    %v1967 = vld [vmem:[%s5] sm:$0x3f]
    %v1969 = vlaneseq
    %v1970 = vshrl.u32 %v1969, 7
    %v1971 = vsub.s32 0, %v1970
    %v1972 = vrot.slane %v1967, %v1971
    %v1973 = vlaneseq
    %v1974 = vshrl.u32 %v1973, 7
    %v1975 = vsub.s32 1, %v1974
    %v1976 = vrot.slane %v1967, %v1975
    %v1977 = vlaneseq
    %v1978 = vshrl.u32 %v1977, 7
    %v1979 = vsub.s32 2, %v1978
    %v1980 = vrot.slane %v1967, %v1979
    %v1981 = vlaneseq
    %v1982 = vshrl.u32 %v1981, 7
    %v1983 = vsub.s32 3, %v1982
    %v1984 = vrot.slane %v1967, %v1983
    %v1985 = vlaneseq
    %v1986 = vshrl.u32 %v1985, 7
    %v1987 = vsub.s32 4, %v1986
    %v1988 = vrot.slane %v1967, %v1987
    %v1989 = vlaneseq
    %v1990 = vshrl.u32 %v1989, 7
    %v1991 = vsub.s32 5, %v1990
    %v1992 = vrot.slane %v1967, %v1991
    %v1999 = vmul.f32 %v1961, %v1972
    %v2000 = vmul.f32 %v1962, %v1976
    %v2001 = vmul.f32 %v1963, %v1980
    %v2002 = vmul.f32 %v1964, %v1984
    %v2003 = vmul.f32 %v1965, %v1988
    %v2004 = vmul.f32 %v1966, %v1992
    %v2005 = vld [vmem:[%s6] sm:$0x3f]
    %v2007 = vlaneseq
    %v2008 = vshrl.u32 %v2007, 7
    %v2009 = vsub.s32 0, %v2008
    %v2010 = vrot.slane %v2005, %v2009
    %v2011 = vlaneseq
    %v2012 = vshrl.u32 %v2011, 7
    %v2013 = vsub.s32 1, %v2012
    %v2014 = vrot.slane %v2005, %v2013
    %v2015 = vlaneseq
    %v2016 = vshrl.u32 %v2015, 7
    %v2017 = vsub.s32 2, %v2016
    %v2018 = vrot.slane %v2005, %v2017
    %v2019 = vlaneseq
    %v2020 = vshrl.u32 %v2019, 7
    %v2021 = vsub.s32 3, %v2020
    %v2022 = vrot.slane %v2005, %v2021
    %v2023 = vlaneseq
    %v2024 = vshrl.u32 %v2023, 7
    %v2025 = vsub.s32 4, %v2024
    %v2026 = vrot.slane %v2005, %v2025
    %v2027 = vlaneseq
    %v2028 = vshrl.u32 %v2027, 7
    %v2029 = vsub.s32 5, %v2028
    %v2030 = vrot.slane %v2005, %v2029
    %v2037 = vadd.f32 %v1999, %v2010
    %v2038 = vadd.f32 %v2000, %v2014
    %v2039 = vadd.f32 %v2001, %v2018
    %v2040 = vadd.f32 %v2002, %v2022
    %v2041 = vadd.f32 %v2003, %v2026
    %v2042 = vadd.f32 %v2004, %v2030
    %v2043 = vpack.c.bf16 %v2037, %v2037
    %v2044 = vpack.c.bf16 %v2038, %v2038
    %v2045 = vpack.c.bf16 %v2039, %v2039
    %v2046 = vpack.c.bf16 %v2040, %v2040
    %v2047 = vpack.c.bf16 %v2041, %v2041
    %v2048 = vpack.c.bf16 %v2042, %v2042
    %v2049 = vld [vmem:[%s7] sm:$0xff]
    %v2050 = vld [vmem:[%s7 + $0x8] sm:$0xff]
    %v2051 = vld [vmem:[%s7 + $0x10] sm:$0xff]
    %v2052 = vld [vmem:[%s7 + $0x18] sm:$0xff]
    %v2053 = vld [vmem:[%s7 + $0x20] sm:$0xff]
    %v2054 = vld [vmem:[%s7 + $0x28] sm:$0xff]
    %v2055 = vld [vmem:[%s7 + $0x30] sm:$0xff]
    %v2056 = vld [vmem:[%s7 + $0x38] sm:$0xff]
    %v2057 = vld [vmem:[%s7 + $0x40] sm:$0xff]
    %v2058 = vld [vmem:[%s7 + $0x48] sm:$0xff]
    %v2059 = vld [vmem:[%s7 + $0x50] sm:$0xff]
    %v2060 = vld [vmem:[%s7 + $0x58] sm:$0xff]
    %v2061 = vld [vmem:[%s7 + $0x60] sm:$0xff]
    %v2062 = vld [vmem:[%s7 + $0x68] sm:$0xff]
    %v2063 = vld [vmem:[%s7 + $0x70] sm:$0xff]
    %v2064 = vld [vmem:[%s7 + $0x78] sm:$0xff]
    %v2065 = vld [vmem:[%s7 + $0x80] sm:$0xff]
    %v2066 = vld [vmem:[%s7 + $0x88] sm:$0xff]
    %v2067 = vld [vmem:[%s7 + $0x90] sm:$0xff]
    %v2068 = vld [vmem:[%s7 + $0x98] sm:$0xff]
    %v2069 = vld [vmem:[%s7 + $0xa0] sm:$0xff]
    %v2070 = vld [vmem:[%s7 + $0xa8] sm:$0xff]
    %v2071 = vld [vmem:[%s7 + $0xb0] sm:$0xff]
    %v2072 = vld [vmem:[%s7 + $0xb8] sm:$0xff]
    %v2073 = vld [vmem:[%s7 + $0xc0] sm:$0xff]
    %v2074 = vld [vmem:[%s7 + $0xc8] sm:$0xff]
    %v2075 = vld [vmem:[%s7 + $0xd0] sm:$0xff]
    %v2076 = vld [vmem:[%s7 + $0xd8] sm:$0xff]
    %v2077 = vld [vmem:[%s7 + $0xe0] sm:$0xff]
    %v2078 = vld [vmem:[%s7 + $0xe8] sm:$0xff]
    %v2079 = vld [vmem:[%s7 + $0xf0] sm:$0xff]
    %v2080 = vld [vmem:[%s7 + $0xf8] sm:$0xff]
    %v2081 = vld [vmem:[%s7 + $0x100] sm:$0xff]
    %v2082 = vld [vmem:[%s7 + $0x108] sm:$0xff]
    %v2083 = vld [vmem:[%s7 + $0x110] sm:$0xff]
    %v2084 = vld [vmem:[%s7 + $0x118] sm:$0xff]
    %v2085 = vld [vmem:[%s7 + $0x120] sm:$0xff]
    %v2086 = vld [vmem:[%s7 + $0x128] sm:$0xff]
    %v2087 = vld [vmem:[%s7 + $0x130] sm:$0xff]
    %v2088 = vld [vmem:[%s7 + $0x138] sm:$0xff]
    %v2089 = vld [vmem:[%s7 + $0x140] sm:$0xff]
    %v2090 = vld [vmem:[%s7 + $0x148] sm:$0xff]
    %v2091 = vld [vmem:[%s7 + $0x150] sm:$0xff]
    %v2092 = vld [vmem:[%s7 + $0x158] sm:$0xff]
    %v2093 = vld [vmem:[%s7 + $0x160] sm:$0xff]
    %v2094 = vld [vmem:[%s7 + $0x168] sm:$0xff]
    %v2095 = vld [vmem:[%s7 + $0x170] sm:$0xff]
    %v2096 = vld [vmem:[%s7 + $0x178] sm:$0xff]
    %v2097 = vld [vmem:[%s7 + $0x180] sm:$0xff]
    %v2098 = vld [vmem:[%s7 + $0x188] sm:$0xff]
    %v2099 = vld [vmem:[%s7 + $0x190] sm:$0xff]
    %v2100 = vld [vmem:[%s7 + $0x198] sm:$0xff]
    %v2101 = vld [vmem:[%s7 + $0x1a0] sm:$0xff]
    %v2102 = vld [vmem:[%s7 + $0x1a8] sm:$0xff]
    %v2103 = vld [vmem:[%s7 + $0x1b0] sm:$0xff]
    %v2104 = vld [vmem:[%s7 + $0x1b8] sm:$0xff]
    %v2105 = vld [vmem:[%s7 + $0x1c0] sm:$0xff]
    %v2106 = vld [vmem:[%s7 + $0x1c8] sm:$0xff]
    %v2107 = vld [vmem:[%s7 + $0x1d0] sm:$0xff]
    %v2108 = vld [vmem:[%s7 + $0x1d8] sm:$0xff]
    %v2109 = vld [vmem:[%s7 + $0x1e0] sm:$0xff]
    %v2110 = vld [vmem:[%s7 + $0x1e8] sm:$0xff]
    %v2111 = vld [vmem:[%s7 + $0x1f0] sm:$0xff]
    %v2112 = vld [vmem:[%s7 + $0x1f8] sm:$0xff]
    %v2113 = vld [vmem:[%s7 + $0x200] sm:$0xff]
    %v2114 = vld [vmem:[%s7 + $0x208] sm:$0xff]
    %v2115 = vld [vmem:[%s7 + $0x210] sm:$0xff]
    %v2116 = vld [vmem:[%s7 + $0x218] sm:$0xff]
    %v2117 = vld [vmem:[%s7 + $0x220] sm:$0xff]
    %v2118 = vld [vmem:[%s7 + $0x228] sm:$0xff]
    %v2119 = vld [vmem:[%s7 + $0x230] sm:$0xff]
    %v2120 = vld [vmem:[%s7 + $0x238] sm:$0xff]
    %v2121 = vld [vmem:[%s7 + $0x240] sm:$0xff]
    %v2122 = vld [vmem:[%s7 + $0x248] sm:$0xff]
    %v2123 = vld [vmem:[%s7 + $0x250] sm:$0xff]
    %v2124 = vld [vmem:[%s7 + $0x258] sm:$0xff]
    %v2125 = vld [vmem:[%s7 + $0x260] sm:$0xff]
    %v2126 = vld [vmem:[%s7 + $0x268] sm:$0xff]
    %v2127 = vld [vmem:[%s7 + $0x270] sm:$0xff]
    %v2128 = vld [vmem:[%s7 + $0x278] sm:$0xff]
    %v2129 = vld [vmem:[%s7 + $0x280] sm:$0xff]
    %v2130 = vld [vmem:[%s7 + $0x288] sm:$0xff]
    %v2131 = vld [vmem:[%s7 + $0x290] sm:$0xff]
    %v2132 = vld [vmem:[%s7 + $0x298] sm:$0xff]
    %v2133 = vld [vmem:[%s7 + $0x2a0] sm:$0xff]
    %v2134 = vld [vmem:[%s7 + $0x2a8] sm:$0xff]
    %v2135 = vld [vmem:[%s7 + $0x2b0] sm:$0xff]
    %v2136 = vld [vmem:[%s7 + $0x2b8] sm:$0xff]
    %v2137 = vld [vmem:[%s7 + $0x2c0] sm:$0xff]
    %v2138 = vld [vmem:[%s7 + $0x2c8] sm:$0xff]
    %v2139 = vld [vmem:[%s7 + $0x2d0] sm:$0xff]
    %v2140 = vld [vmem:[%s7 + $0x2d8] sm:$0xff]
    %v2141 = vld [vmem:[%s7 + $0x2e0] sm:$0xff]
    %v2142 = vld [vmem:[%s7 + $0x2e8] sm:$0xff]
    %v2143 = vld [vmem:[%s7 + $0x2f0] sm:$0xff]
    %v2144 = vld [vmem:[%s7 + $0x2f8] sm:$0xff]
    %v2145 = vld [vmem:[%s7 + $0x300] sm:$0xff]
    %v2146 = vld [vmem:[%s7 + $0x308] sm:$0xff]
    %v2147 = vld [vmem:[%s7 + $0x310] sm:$0xff]
    %v2148 = vld [vmem:[%s7 + $0x318] sm:$0xff]
    %v2149 = vld [vmem:[%s7 + $0x320] sm:$0xff]
    %v2150 = vld [vmem:[%s7 + $0x328] sm:$0xff]
    %v2151 = vld [vmem:[%s7 + $0x330] sm:$0xff]
    %v2152 = vld [vmem:[%s7 + $0x338] sm:$0xff]
    %v2153 = vld [vmem:[%s7 + $0x340] sm:$0xff]
    %v2154 = vld [vmem:[%s7 + $0x348] sm:$0xff]
    %v2155 = vld [vmem:[%s7 + $0x350] sm:$0xff]
    %v2156 = vld [vmem:[%s7 + $0x358] sm:$0xff]
    %v2157 = vld [vmem:[%s7 + $0x360] sm:$0xff]
    %v2158 = vld [vmem:[%s7 + $0x368] sm:$0xff]
    %v2159 = vld [vmem:[%s7 + $0x370] sm:$0xff]
    %v2160 = vld [vmem:[%s7 + $0x378] sm:$0xff]
    %v2161 = vld [vmem:[%s7 + $0x380] sm:$0xff]
    %v2162 = vld [vmem:[%s7 + $0x388] sm:$0xff]
    %v2163 = vld [vmem:[%s7 + $0x390] sm:$0xff]
    %v2164 = vld [vmem:[%s7 + $0x398] sm:$0xff]
    %v2165 = vld [vmem:[%s7 + $0x3a0] sm:$0xff]
    %v2166 = vld [vmem:[%s7 + $0x3a8] sm:$0xff]
    %v2167 = vld [vmem:[%s7 + $0x3b0] sm:$0xff]
    %v2168 = vld [vmem:[%s7 + $0x3b8] sm:$0xff]
    %v2169 = vld [vmem:[%s7 + $0x3c0] sm:$0xff]
    %v2170 = vld [vmem:[%s7 + $0x3c8] sm:$0xff]
    %v2171 = vld [vmem:[%s7 + $0x3d0] sm:$0xff]
    %v2172 = vld [vmem:[%s7 + $0x3d8] sm:$0xff]
    %v2173 = vld [vmem:[%s7 + $0x3e0] sm:$0xff]
    %v2174 = vld [vmem:[%s7 + $0x3e8] sm:$0xff]
    %v2175 = vld [vmem:[%s7 + $0x3f0] sm:$0xff]
    %v2176 = vld [vmem:[%s7 + $0x3f8] sm:$0xff]
    %v2177 = vld [vmem:[%s7 + $0x400] sm:$0xff]
    %v2178 = vld [vmem:[%s7 + $0x408] sm:$0xff]
    %v2179 = vld [vmem:[%s7 + $0x410] sm:$0xff]
    %v2180 = vld [vmem:[%s7 + $0x418] sm:$0xff]
    %v2181 = vld [vmem:[%s7 + $0x420] sm:$0xff]
    %v2182 = vld [vmem:[%s7 + $0x428] sm:$0xff]
    %v2183 = vld [vmem:[%s7 + $0x430] sm:$0xff]
    %v2184 = vld [vmem:[%s7 + $0x438] sm:$0xff]
    %v2185 = vld [vmem:[%s7 + $0x440] sm:$0xff]
    %v2186 = vld [vmem:[%s7 + $0x448] sm:$0xff]
    %v2187 = vld [vmem:[%s7 + $0x450] sm:$0xff]
    %v2188 = vld [vmem:[%s7 + $0x458] sm:$0xff]
    %v2189 = vld [vmem:[%s7 + $0x460] sm:$0xff]
    %v2190 = vld [vmem:[%s7 + $0x468] sm:$0xff]
    %v2191 = vld [vmem:[%s7 + $0x470] sm:$0xff]
    %v2192 = vld [vmem:[%s7 + $0x478] sm:$0xff]
    %v2193 = vld [vmem:[%s7 + $0x480] sm:$0xff]
    %v2194 = vld [vmem:[%s7 + $0x488] sm:$0xff]
    %v2195 = vld [vmem:[%s7 + $0x490] sm:$0xff]
    %v2196 = vld [vmem:[%s7 + $0x498] sm:$0xff]
    %v2197 = vld [vmem:[%s7 + $0x4a0] sm:$0xff]
    %v2198 = vld [vmem:[%s7 + $0x4a8] sm:$0xff]
    %v2199 = vld [vmem:[%s7 + $0x4b0] sm:$0xff]
    %v2200 = vld [vmem:[%s7 + $0x4b8] sm:$0xff]
    %v2201 = vld [vmem:[%s7 + $0x4c0] sm:$0xff]
    %v2202 = vld [vmem:[%s7 + $0x4c8] sm:$0xff]
    %v2203 = vld [vmem:[%s7 + $0x4d0] sm:$0xff]
    %v2204 = vld [vmem:[%s7 + $0x4d8] sm:$0xff]
    %v2205 = vld [vmem:[%s7 + $0x4e0] sm:$0xff]
    %v2206 = vld [vmem:[%s7 + $0x4e8] sm:$0xff]
    %v2207 = vld [vmem:[%s7 + $0x4f0] sm:$0xff]
    %v2208 = vld [vmem:[%s7 + $0x4f8] sm:$0xff]
    %v2209 = vld [vmem:[%s7 + $0x500] sm:$0xff]
    %v2210 = vld [vmem:[%s7 + $0x508] sm:$0xff]
    %v2211 = vld [vmem:[%s7 + $0x510] sm:$0xff]
    %v2212 = vld [vmem:[%s7 + $0x518] sm:$0xff]
    %v2213 = vld [vmem:[%s7 + $0x520] sm:$0xff]
    %v2214 = vld [vmem:[%s7 + $0x528] sm:$0xff]
    %v2215 = vld [vmem:[%s7 + $0x530] sm:$0xff]
    %v2216 = vld [vmem:[%s7 + $0x538] sm:$0xff]
    %v2217 = vld [vmem:[%s7 + $0x540] sm:$0xff]
    %v2218 = vld [vmem:[%s7 + $0x548] sm:$0xff]
    %v2219 = vld [vmem:[%s7 + $0x550] sm:$0xff]
    %v2220 = vld [vmem:[%s7 + $0x558] sm:$0xff]
    %v2221 = vld [vmem:[%s7 + $0x560] sm:$0xff]
    %v2222 = vld [vmem:[%s7 + $0x568] sm:$0xff]
    %v2223 = vld [vmem:[%s7 + $0x570] sm:$0xff]
    %v2224 = vld [vmem:[%s7 + $0x578] sm:$0xff]
    %v2225 = vld [vmem:[%s7 + $0x580] sm:$0xff]
    %v2226 = vld [vmem:[%s7 + $0x588] sm:$0xff]
    %v2227 = vld [vmem:[%s7 + $0x590] sm:$0xff]
    %v2228 = vld [vmem:[%s7 + $0x598] sm:$0xff]
    %v2229 = vld [vmem:[%s7 + $0x5a0] sm:$0xff]
    %v2230 = vld [vmem:[%s7 + $0x5a8] sm:$0xff]
    %v2231 = vld [vmem:[%s7 + $0x5b0] sm:$0xff]
    %v2232 = vld [vmem:[%s7 + $0x5b8] sm:$0xff]
    %v2233 = vld [vmem:[%s7 + $0x5c0] sm:$0xff]
    %v2234 = vld [vmem:[%s7 + $0x5c8] sm:$0xff]
    %v2235 = vld [vmem:[%s7 + $0x5d0] sm:$0xff]
    %v2236 = vld [vmem:[%s7 + $0x5d8] sm:$0xff]
    %v2237 = vld [vmem:[%s7 + $0x5e0] sm:$0xff]
    %v2238 = vld [vmem:[%s7 + $0x5e8] sm:$0xff]
    %v2239 = vld [vmem:[%s7 + $0x5f0] sm:$0xff]
    %v2240 = vld [vmem:[%s7 + $0x5f8] sm:$0xff]
    %v2241 = vld [vmem:[%s8] sm:$0xf]
    %v2243 = vlaneseq
    %v2244 = vshrl.u32 %v2243, 7
    %v2245 = vsub.s32 0, %v2244
    %v2246 = vrot.slane %v2241, %v2245
    %v2247 = vlaneseq
    %v2248 = vshrl.u32 %v2247, 7
    %v2249 = vsub.s32 1, %v2248
    %v2250 = vrot.slane %v2241, %v2249
    %v2251 = vlaneseq
    %v2252 = vshrl.u32 %v2251, 7
    %v2253 = vsub.s32 2, %v2252
    %v2254 = vrot.slane %v2241, %v2253
    %v2255 = vlaneseq
    %v2256 = vshrl.u32 %v2255, 7
    %v2257 = vsub.s32 3, %v2256
    %v2258 = vrot.slane %v2241, %v2257
    %v2455 = vunpack.c.l.b16 %v2049
    %v2456 = vunpack.c.h.b16 %v2049
    %v2457 = vunpack.c.l.b16 %v2050
    %v2458 = vunpack.c.h.b16 %v2050
    %v2459 = vunpack.c.l.b16 %v2051
    %v2460 = vunpack.c.h.b16 %v2051
    %v2461 = vunpack.c.l.b16 %v2052
    %v2462 = vunpack.c.h.b16 %v2052
    %v2463 = vunpack.c.l.b16 %v2053
    %v2464 = vunpack.c.h.b16 %v2053
    %v2465 = vunpack.c.l.b16 %v2054
    %v2466 = vunpack.c.h.b16 %v2054
    %v2467 = vunpack.c.l.b16 %v2055
    %v2468 = vunpack.c.h.b16 %v2055
    %v2469 = vunpack.c.l.b16 %v2056
    %v2470 = vunpack.c.h.b16 %v2056
    %v2471 = vunpack.c.l.b16 %v2057
    %v2472 = vunpack.c.h.b16 %v2057
    %v2473 = vunpack.c.l.b16 %v2058
    %v2474 = vunpack.c.h.b16 %v2058
    %v2475 = vunpack.c.l.b16 %v2059
    %v2476 = vunpack.c.h.b16 %v2059
    %v2477 = vunpack.c.l.b16 %v2060
    %v2478 = vunpack.c.h.b16 %v2060
    %v2479 = vunpack.c.l.b16 %v2061
    %v2480 = vunpack.c.h.b16 %v2061
    %v2481 = vunpack.c.l.b16 %v2062
    %v2482 = vunpack.c.h.b16 %v2062
    %v2483 = vunpack.c.l.b16 %v2063
    %v2484 = vunpack.c.h.b16 %v2063
    %v2485 = vunpack.c.l.b16 %v2064
    %v2486 = vunpack.c.h.b16 %v2064
    %v2487 = vunpack.c.l.b16 %v2065
    %v2488 = vunpack.c.h.b16 %v2065
    %v2489 = vunpack.c.l.b16 %v2066
    %v2490 = vunpack.c.h.b16 %v2066
    %v2491 = vunpack.c.l.b16 %v2067
    %v2492 = vunpack.c.h.b16 %v2067
    %v2493 = vunpack.c.l.b16 %v2068
    %v2494 = vunpack.c.h.b16 %v2068
    %v2495 = vunpack.c.l.b16 %v2069
    %v2496 = vunpack.c.h.b16 %v2069
    %v2497 = vunpack.c.l.b16 %v2070
    %v2498 = vunpack.c.h.b16 %v2070
    %v2499 = vunpack.c.l.b16 %v2071
    %v2500 = vunpack.c.h.b16 %v2071
    %v2501 = vunpack.c.l.b16 %v2072
    %v2502 = vunpack.c.h.b16 %v2072
    %v2503 = vunpack.c.l.b16 %v2073
    %v2504 = vunpack.c.h.b16 %v2073
    %v2505 = vunpack.c.l.b16 %v2074
    %v2506 = vunpack.c.h.b16 %v2074
    %v2507 = vunpack.c.l.b16 %v2075
    %v2508 = vunpack.c.h.b16 %v2075
    %v2509 = vunpack.c.l.b16 %v2076
    %v2510 = vunpack.c.h.b16 %v2076
    %v2511 = vunpack.c.l.b16 %v2077
    %v2512 = vunpack.c.h.b16 %v2077
    %v2513 = vunpack.c.l.b16 %v2078
    %v2514 = vunpack.c.h.b16 %v2078
    %v2515 = vunpack.c.l.b16 %v2079
    %v2516 = vunpack.c.h.b16 %v2079
    %v2517 = vunpack.c.l.b16 %v2080
    %v2518 = vunpack.c.h.b16 %v2080
    %v2519 = vunpack.c.l.b16 %v2081
    %v2520 = vunpack.c.h.b16 %v2081
    %v2521 = vunpack.c.l.b16 %v2082
    %v2522 = vunpack.c.h.b16 %v2082
    %v2523 = vunpack.c.l.b16 %v2083
    %v2524 = vunpack.c.h.b16 %v2083
    %v2525 = vunpack.c.l.b16 %v2084
    %v2526 = vunpack.c.h.b16 %v2084
    %v2527 = vunpack.c.l.b16 %v2085
    %v2528 = vunpack.c.h.b16 %v2085
    %v2529 = vunpack.c.l.b16 %v2086
    %v2530 = vunpack.c.h.b16 %v2086
    %v2531 = vunpack.c.l.b16 %v2087
    %v2532 = vunpack.c.h.b16 %v2087
    %v2533 = vunpack.c.l.b16 %v2088
    %v2534 = vunpack.c.h.b16 %v2088
    %v2535 = vunpack.c.l.b16 %v2089
    %v2536 = vunpack.c.h.b16 %v2089
    %v2537 = vunpack.c.l.b16 %v2090
    %v2538 = vunpack.c.h.b16 %v2090
    %v2539 = vunpack.c.l.b16 %v2091
    %v2540 = vunpack.c.h.b16 %v2091
    %v2541 = vunpack.c.l.b16 %v2092
    %v2542 = vunpack.c.h.b16 %v2092
    %v2543 = vunpack.c.l.b16 %v2093
    %v2544 = vunpack.c.h.b16 %v2093
    %v2545 = vunpack.c.l.b16 %v2094
    %v2546 = vunpack.c.h.b16 %v2094
    %v2547 = vunpack.c.l.b16 %v2095
    %v2548 = vunpack.c.h.b16 %v2095
    %v2549 = vunpack.c.l.b16 %v2096
    %v2550 = vunpack.c.h.b16 %v2096
    %v2551 = vunpack.c.l.b16 %v2097
    %v2552 = vunpack.c.h.b16 %v2097
    %v2553 = vunpack.c.l.b16 %v2098
    %v2554 = vunpack.c.h.b16 %v2098
    %v2555 = vunpack.c.l.b16 %v2099
    %v2556 = vunpack.c.h.b16 %v2099
    %v2557 = vunpack.c.l.b16 %v2100
    %v2558 = vunpack.c.h.b16 %v2100
    %v2559 = vunpack.c.l.b16 %v2101
    %v2560 = vunpack.c.h.b16 %v2101
    %v2561 = vunpack.c.l.b16 %v2102
    %v2562 = vunpack.c.h.b16 %v2102
    %v2563 = vunpack.c.l.b16 %v2103
    %v2564 = vunpack.c.h.b16 %v2103
    %v2565 = vunpack.c.l.b16 %v2104
    %v2566 = vunpack.c.h.b16 %v2104
    %v2567 = vunpack.c.l.b16 %v2105
    %v2568 = vunpack.c.h.b16 %v2105
    %v2569 = vunpack.c.l.b16 %v2106
    %v2570 = vunpack.c.h.b16 %v2106
    %v2571 = vunpack.c.l.b16 %v2107
    %v2572 = vunpack.c.h.b16 %v2107
    %v2573 = vunpack.c.l.b16 %v2108
    %v2574 = vunpack.c.h.b16 %v2108
    %v2575 = vunpack.c.l.b16 %v2109
    %v2576 = vunpack.c.h.b16 %v2109
    %v2577 = vunpack.c.l.b16 %v2110
    %v2578 = vunpack.c.h.b16 %v2110
    %v2579 = vunpack.c.l.b16 %v2111
    %v2580 = vunpack.c.h.b16 %v2111
    %v2581 = vunpack.c.l.b16 %v2112
    %v2582 = vunpack.c.h.b16 %v2112
    %v2583 = vunpack.c.l.b16 %v2113
    %v2584 = vunpack.c.h.b16 %v2113
    %v2585 = vunpack.c.l.b16 %v2114
    %v2586 = vunpack.c.h.b16 %v2114
    %v2587 = vunpack.c.l.b16 %v2115
    %v2588 = vunpack.c.h.b16 %v2115
    %v2589 = vunpack.c.l.b16 %v2116
    %v2590 = vunpack.c.h.b16 %v2116
    %v2591 = vunpack.c.l.b16 %v2117
    %v2592 = vunpack.c.h.b16 %v2117
    %v2593 = vunpack.c.l.b16 %v2118
    %v2594 = vunpack.c.h.b16 %v2118
    %v2595 = vunpack.c.l.b16 %v2119
    %v2596 = vunpack.c.h.b16 %v2119
    %v2597 = vunpack.c.l.b16 %v2120
    %v2598 = vunpack.c.h.b16 %v2120
    %v2599 = vunpack.c.l.b16 %v2121
    %v2600 = vunpack.c.h.b16 %v2121
    %v2601 = vunpack.c.l.b16 %v2122
    %v2602 = vunpack.c.h.b16 %v2122
    %v2603 = vunpack.c.l.b16 %v2123
    %v2604 = vunpack.c.h.b16 %v2123
    %v2605 = vunpack.c.l.b16 %v2124
    %v2606 = vunpack.c.h.b16 %v2124
    %v2607 = vunpack.c.l.b16 %v2125
    %v2608 = vunpack.c.h.b16 %v2125
    %v2609 = vunpack.c.l.b16 %v2126
    %v2610 = vunpack.c.h.b16 %v2126
    %v2611 = vunpack.c.l.b16 %v2127
    %v2612 = vunpack.c.h.b16 %v2127
    %v2613 = vunpack.c.l.b16 %v2128
    %v2614 = vunpack.c.h.b16 %v2128
    %v2615 = vunpack.c.l.b16 %v2129
    %v2616 = vunpack.c.h.b16 %v2129
    %v2617 = vunpack.c.l.b16 %v2130
    %v2618 = vunpack.c.h.b16 %v2130
    %v2619 = vunpack.c.l.b16 %v2131
    %v2620 = vunpack.c.h.b16 %v2131
    %v2621 = vunpack.c.l.b16 %v2132
    %v2622 = vunpack.c.h.b16 %v2132
    %v2623 = vunpack.c.l.b16 %v2133
    %v2624 = vunpack.c.h.b16 %v2133
    %v2625 = vunpack.c.l.b16 %v2134
    %v2626 = vunpack.c.h.b16 %v2134
    %v2627 = vunpack.c.l.b16 %v2135
    %v2628 = vunpack.c.h.b16 %v2135
    %v2629 = vunpack.c.l.b16 %v2136
    %v2630 = vunpack.c.h.b16 %v2136
    %v2631 = vunpack.c.l.b16 %v2137
    %v2632 = vunpack.c.h.b16 %v2137
    %v2633 = vunpack.c.l.b16 %v2138
    %v2634 = vunpack.c.h.b16 %v2138
    %v2635 = vunpack.c.l.b16 %v2139
    %v2636 = vunpack.c.h.b16 %v2139
    %v2637 = vunpack.c.l.b16 %v2140
    %v2638 = vunpack.c.h.b16 %v2140
    %v2639 = vunpack.c.l.b16 %v2141
    %v2640 = vunpack.c.h.b16 %v2141
    %v2641 = vunpack.c.l.b16 %v2142
    %v2642 = vunpack.c.h.b16 %v2142
    %v2643 = vunpack.c.l.b16 %v2143
    %v2644 = vunpack.c.h.b16 %v2143
    %v2645 = vunpack.c.l.b16 %v2144
    %v2646 = vunpack.c.h.b16 %v2144
    %v2647 = vunpack.c.l.b16 %v2145
    %v2648 = vunpack.c.h.b16 %v2145
    %v2649 = vunpack.c.l.b16 %v2146
    %v2650 = vunpack.c.h.b16 %v2146
    %v2651 = vunpack.c.l.b16 %v2147
    %v2652 = vunpack.c.h.b16 %v2147
    %v2653 = vunpack.c.l.b16 %v2148
    %v2654 = vunpack.c.h.b16 %v2148
    %v2655 = vunpack.c.l.b16 %v2149
    %v2656 = vunpack.c.h.b16 %v2149
    %v2657 = vunpack.c.l.b16 %v2150
    %v2658 = vunpack.c.h.b16 %v2150
    %v2659 = vunpack.c.l.b16 %v2151
    %v2660 = vunpack.c.h.b16 %v2151
    %v2661 = vunpack.c.l.b16 %v2152
    %v2662 = vunpack.c.h.b16 %v2152
    %v2663 = vunpack.c.l.b16 %v2153
    %v2664 = vunpack.c.h.b16 %v2153
    %v2665 = vunpack.c.l.b16 %v2154
    %v2666 = vunpack.c.h.b16 %v2154
    %v2667 = vunpack.c.l.b16 %v2155
    %v2668 = vunpack.c.h.b16 %v2155
    %v2669 = vunpack.c.l.b16 %v2156
    %v2670 = vunpack.c.h.b16 %v2156
    %v2671 = vunpack.c.l.b16 %v2157
    %v2672 = vunpack.c.h.b16 %v2157
    %v2673 = vunpack.c.l.b16 %v2158
    %v2674 = vunpack.c.h.b16 %v2158
    %v2675 = vunpack.c.l.b16 %v2159
    %v2676 = vunpack.c.h.b16 %v2159
    %v2677 = vunpack.c.l.b16 %v2160
    %v2678 = vunpack.c.h.b16 %v2160
    %v2679 = vunpack.c.l.b16 %v2161
    %v2680 = vunpack.c.h.b16 %v2161
    %v2681 = vunpack.c.l.b16 %v2162
    %v2682 = vunpack.c.h.b16 %v2162
    %v2683 = vunpack.c.l.b16 %v2163
    %v2684 = vunpack.c.h.b16 %v2163
    %v2685 = vunpack.c.l.b16 %v2164
    %v2686 = vunpack.c.h.b16 %v2164
    %v2687 = vunpack.c.l.b16 %v2165
    %v2688 = vunpack.c.h.b16 %v2165
    %v2689 = vunpack.c.l.b16 %v2166
    %v2690 = vunpack.c.h.b16 %v2166
    %v2691 = vunpack.c.l.b16 %v2167
    %v2692 = vunpack.c.h.b16 %v2167
    %v2693 = vunpack.c.l.b16 %v2168
    %v2694 = vunpack.c.h.b16 %v2168
    %v2695 = vunpack.c.l.b16 %v2169
    %v2696 = vunpack.c.h.b16 %v2169
    %v2697 = vunpack.c.l.b16 %v2170
    %v2698 = vunpack.c.h.b16 %v2170
    %v2699 = vunpack.c.l.b16 %v2171
    %v2700 = vunpack.c.h.b16 %v2171
    %v2701 = vunpack.c.l.b16 %v2172
    %v2702 = vunpack.c.h.b16 %v2172
    %v2703 = vunpack.c.l.b16 %v2173
    %v2704 = vunpack.c.h.b16 %v2173
    %v2705 = vunpack.c.l.b16 %v2174
    %v2706 = vunpack.c.h.b16 %v2174
    %v2707 = vunpack.c.l.b16 %v2175
    %v2708 = vunpack.c.h.b16 %v2175
    %v2709 = vunpack.c.l.b16 %v2176
    %v2710 = vunpack.c.h.b16 %v2176
    %v2711 = vunpack.c.l.b16 %v2177
    %v2712 = vunpack.c.h.b16 %v2177
    %v2713 = vunpack.c.l.b16 %v2178
    %v2714 = vunpack.c.h.b16 %v2178
    %v2715 = vunpack.c.l.b16 %v2179
    %v2716 = vunpack.c.h.b16 %v2179
    %v2717 = vunpack.c.l.b16 %v2180
    %v2718 = vunpack.c.h.b16 %v2180
    %v2719 = vunpack.c.l.b16 %v2181
    %v2720 = vunpack.c.h.b16 %v2181
    %v2721 = vunpack.c.l.b16 %v2182
    %v2722 = vunpack.c.h.b16 %v2182
    %v2723 = vunpack.c.l.b16 %v2183
    %v2724 = vunpack.c.h.b16 %v2183
    %v2725 = vunpack.c.l.b16 %v2184
    %v2726 = vunpack.c.h.b16 %v2184
    %v2727 = vunpack.c.l.b16 %v2185
    %v2728 = vunpack.c.h.b16 %v2185
    %v2729 = vunpack.c.l.b16 %v2186
    %v2730 = vunpack.c.h.b16 %v2186
    %v2731 = vunpack.c.l.b16 %v2187
    %v2732 = vunpack.c.h.b16 %v2187
    %v2733 = vunpack.c.l.b16 %v2188
    %v2734 = vunpack.c.h.b16 %v2188
    %v2735 = vunpack.c.l.b16 %v2189
    %v2736 = vunpack.c.h.b16 %v2189
    %v2737 = vunpack.c.l.b16 %v2190
    %v2738 = vunpack.c.h.b16 %v2190
    %v2739 = vunpack.c.l.b16 %v2191
    %v2740 = vunpack.c.h.b16 %v2191
    %v2741 = vunpack.c.l.b16 %v2192
    %v2742 = vunpack.c.h.b16 %v2192
    %v2743 = vunpack.c.l.b16 %v2193
    %v2744 = vunpack.c.h.b16 %v2193
    %v2745 = vunpack.c.l.b16 %v2194
    %v2746 = vunpack.c.h.b16 %v2194
    %v2747 = vunpack.c.l.b16 %v2195
    %v2748 = vunpack.c.h.b16 %v2195
    %v2749 = vunpack.c.l.b16 %v2196
    %v2750 = vunpack.c.h.b16 %v2196
    %v2751 = vunpack.c.l.b16 %v2197
    %v2752 = vunpack.c.h.b16 %v2197
    %v2753 = vunpack.c.l.b16 %v2198
    %v2754 = vunpack.c.h.b16 %v2198
    %v2755 = vunpack.c.l.b16 %v2199
    %v2756 = vunpack.c.h.b16 %v2199
    %v2757 = vunpack.c.l.b16 %v2200
    %v2758 = vunpack.c.h.b16 %v2200
    %v2759 = vunpack.c.l.b16 %v2201
    %v2760 = vunpack.c.h.b16 %v2201
    %v2761 = vunpack.c.l.b16 %v2202
    %v2762 = vunpack.c.h.b16 %v2202
    %v2763 = vunpack.c.l.b16 %v2203
    %v2764 = vunpack.c.h.b16 %v2203
    %v2765 = vunpack.c.l.b16 %v2204
    %v2766 = vunpack.c.h.b16 %v2204
    %v2767 = vunpack.c.l.b16 %v2205
    %v2768 = vunpack.c.h.b16 %v2205
    %v2769 = vunpack.c.l.b16 %v2206
    %v2770 = vunpack.c.h.b16 %v2206
    %v2771 = vunpack.c.l.b16 %v2207
    %v2772 = vunpack.c.h.b16 %v2207
    %v2773 = vunpack.c.l.b16 %v2208
    %v2774 = vunpack.c.h.b16 %v2208
    %v2775 = vunpack.c.l.b16 %v2209
    %v2776 = vunpack.c.h.b16 %v2209
    %v2777 = vunpack.c.l.b16 %v2210
    %v2778 = vunpack.c.h.b16 %v2210
    %v2779 = vunpack.c.l.b16 %v2211
    %v2780 = vunpack.c.h.b16 %v2211
    %v2781 = vunpack.c.l.b16 %v2212
    %v2782 = vunpack.c.h.b16 %v2212
    %v2783 = vunpack.c.l.b16 %v2213
    %v2784 = vunpack.c.h.b16 %v2213
    %v2785 = vunpack.c.l.b16 %v2214
    %v2786 = vunpack.c.h.b16 %v2214
    %v2787 = vunpack.c.l.b16 %v2215
    %v2788 = vunpack.c.h.b16 %v2215
    %v2789 = vunpack.c.l.b16 %v2216
    %v2790 = vunpack.c.h.b16 %v2216
    %v2791 = vunpack.c.l.b16 %v2217
    %v2792 = vunpack.c.h.b16 %v2217
    %v2793 = vunpack.c.l.b16 %v2218
    %v2794 = vunpack.c.h.b16 %v2218
    %v2795 = vunpack.c.l.b16 %v2219
    %v2796 = vunpack.c.h.b16 %v2219
    %v2797 = vunpack.c.l.b16 %v2220
    %v2798 = vunpack.c.h.b16 %v2220
    %v2799 = vunpack.c.l.b16 %v2221
    %v2800 = vunpack.c.h.b16 %v2221
    %v2801 = vunpack.c.l.b16 %v2222
    %v2802 = vunpack.c.h.b16 %v2222
    %v2803 = vunpack.c.l.b16 %v2223
    %v2804 = vunpack.c.h.b16 %v2223
    %v2805 = vunpack.c.l.b16 %v2224
    %v2806 = vunpack.c.h.b16 %v2224
    %v2807 = vunpack.c.l.b16 %v2225
    %v2808 = vunpack.c.h.b16 %v2225
    %v2809 = vunpack.c.l.b16 %v2226
    %v2810 = vunpack.c.h.b16 %v2226
    %v2811 = vunpack.c.l.b16 %v2227
    %v2812 = vunpack.c.h.b16 %v2227
    %v2813 = vunpack.c.l.b16 %v2228
    %v2814 = vunpack.c.h.b16 %v2228
    %v2815 = vunpack.c.l.b16 %v2229
    %v2816 = vunpack.c.h.b16 %v2229
    %v2817 = vunpack.c.l.b16 %v2230
    %v2818 = vunpack.c.h.b16 %v2230
    %v2819 = vunpack.c.l.b16 %v2231
    %v2820 = vunpack.c.h.b16 %v2231
    %v2821 = vunpack.c.l.b16 %v2232
    %v2822 = vunpack.c.h.b16 %v2232
    %v2823 = vunpack.c.l.b16 %v2233
    %v2824 = vunpack.c.h.b16 %v2233
    %v2825 = vunpack.c.l.b16 %v2234
    %v2826 = vunpack.c.h.b16 %v2234
    %v2827 = vunpack.c.l.b16 %v2235
    %v2828 = vunpack.c.h.b16 %v2235
    %v2829 = vunpack.c.l.b16 %v2236
    %v2830 = vunpack.c.h.b16 %v2236
    %v2831 = vunpack.c.l.b16 %v2237
    %v2832 = vunpack.c.h.b16 %v2237
    %v2833 = vunpack.c.l.b16 %v2238
    %v2834 = vunpack.c.h.b16 %v2238
    %v2835 = vunpack.c.l.b16 %v2239
    %v2836 = vunpack.c.h.b16 %v2239
    %v2837 = vunpack.c.l.b16 %v2240
    %v2838 = vunpack.c.h.b16 %v2240
    %v2839 = vpack.c.b16 %v2459, %v2455
    %v2840 = vpack.c.b16 %v2460, %v2456
    %v2841 = vpack.c.b16 %v2461, %v2457
    %v2842 = vpack.c.b16 %v2462, %v2458
    %v2843 = vpack.c.b16 %v2467, %v2463
    %v2844 = vpack.c.b16 %v2468, %v2464
    %v2845 = vpack.c.b16 %v2469, %v2465
    %v2846 = vpack.c.b16 %v2470, %v2466
    %v2847 = vpack.c.b16 %v2475, %v2471
    %v2848 = vpack.c.b16 %v2476, %v2472
    %v2849 = vpack.c.b16 %v2477, %v2473
    %v2850 = vpack.c.b16 %v2478, %v2474
    %v2851 = vpack.c.b16 %v2483, %v2479
    %v2852 = vpack.c.b16 %v2484, %v2480
    %v2853 = vpack.c.b16 %v2485, %v2481
    %v2854 = vpack.c.b16 %v2486, %v2482
    %v2855 = vpack.c.b16 %v2491, %v2487
    %v2856 = vpack.c.b16 %v2492, %v2488
    %v2857 = vpack.c.b16 %v2493, %v2489
    %v2858 = vpack.c.b16 %v2494, %v2490
    %v2859 = vpack.c.b16 %v2499, %v2495
    %v2860 = vpack.c.b16 %v2500, %v2496
    %v2861 = vpack.c.b16 %v2501, %v2497
    %v2862 = vpack.c.b16 %v2502, %v2498
    %v2863 = vpack.c.b16 %v2507, %v2503
    %v2864 = vpack.c.b16 %v2508, %v2504
    %v2865 = vpack.c.b16 %v2509, %v2505
    %v2866 = vpack.c.b16 %v2510, %v2506
    %v2867 = vpack.c.b16 %v2515, %v2511
    %v2868 = vpack.c.b16 %v2516, %v2512
    %v2869 = vpack.c.b16 %v2517, %v2513
    %v2870 = vpack.c.b16 %v2518, %v2514
    %v2871 = vpack.c.b16 %v2523, %v2519
    %v2872 = vpack.c.b16 %v2524, %v2520
    %v2873 = vpack.c.b16 %v2525, %v2521
    %v2874 = vpack.c.b16 %v2526, %v2522
    %v2875 = vpack.c.b16 %v2531, %v2527
    %v2876 = vpack.c.b16 %v2532, %v2528
    %v2877 = vpack.c.b16 %v2533, %v2529
    %v2878 = vpack.c.b16 %v2534, %v2530
    %v2879 = vpack.c.b16 %v2539, %v2535
    %v2880 = vpack.c.b16 %v2540, %v2536
    %v2881 = vpack.c.b16 %v2541, %v2537
    %v2882 = vpack.c.b16 %v2542, %v2538
    %v2883 = vpack.c.b16 %v2547, %v2543
    %v2884 = vpack.c.b16 %v2548, %v2544
    %v2885 = vpack.c.b16 %v2549, %v2545
    %v2886 = vpack.c.b16 %v2550, %v2546
    %v2887 = vpack.c.b16 %v2555, %v2551
    %v2888 = vpack.c.b16 %v2556, %v2552
    %v2889 = vpack.c.b16 %v2557, %v2553
    %v2890 = vpack.c.b16 %v2558, %v2554
    %v2891 = vpack.c.b16 %v2563, %v2559
    %v2892 = vpack.c.b16 %v2564, %v2560
    %v2893 = vpack.c.b16 %v2565, %v2561
    %v2894 = vpack.c.b16 %v2566, %v2562
    %v2895 = vpack.c.b16 %v2571, %v2567
    %v2896 = vpack.c.b16 %v2572, %v2568
    %v2897 = vpack.c.b16 %v2573, %v2569
    %v2898 = vpack.c.b16 %v2574, %v2570
    %v2899 = vpack.c.b16 %v2579, %v2575
    %v2900 = vpack.c.b16 %v2580, %v2576
    %v2901 = vpack.c.b16 %v2581, %v2577
    %v2902 = vpack.c.b16 %v2582, %v2578
    %v2903 = vpack.c.b16 %v2587, %v2583
    %v2904 = vpack.c.b16 %v2588, %v2584
    %v2905 = vpack.c.b16 %v2589, %v2585
    %v2906 = vpack.c.b16 %v2590, %v2586
    %v2907 = vpack.c.b16 %v2595, %v2591
    %v2908 = vpack.c.b16 %v2596, %v2592
    %v2909 = vpack.c.b16 %v2597, %v2593
    %v2910 = vpack.c.b16 %v2598, %v2594
    %v2911 = vpack.c.b16 %v2603, %v2599
    %v2912 = vpack.c.b16 %v2604, %v2600
    %v2913 = vpack.c.b16 %v2605, %v2601
    %v2914 = vpack.c.b16 %v2606, %v2602
    %v2915 = vpack.c.b16 %v2611, %v2607
    %v2916 = vpack.c.b16 %v2612, %v2608
    %v2917 = vpack.c.b16 %v2613, %v2609
    %v2918 = vpack.c.b16 %v2614, %v2610
    %v2919 = vpack.c.b16 %v2619, %v2615
    %v2920 = vpack.c.b16 %v2620, %v2616
    %v2921 = vpack.c.b16 %v2621, %v2617
    %v2922 = vpack.c.b16 %v2622, %v2618
    %v2923 = vpack.c.b16 %v2627, %v2623
    %v2924 = vpack.c.b16 %v2628, %v2624
    %v2925 = vpack.c.b16 %v2629, %v2625
    %v2926 = vpack.c.b16 %v2630, %v2626
    %v2927 = vpack.c.b16 %v2635, %v2631
    %v2928 = vpack.c.b16 %v2636, %v2632
    %v2929 = vpack.c.b16 %v2637, %v2633
    %v2930 = vpack.c.b16 %v2638, %v2634
    %v2931 = vpack.c.b16 %v2643, %v2639
    %v2932 = vpack.c.b16 %v2644, %v2640
    %v2933 = vpack.c.b16 %v2645, %v2641
    %v2934 = vpack.c.b16 %v2646, %v2642
    %v2935 = vpack.c.b16 %v2651, %v2647
    %v2936 = vpack.c.b16 %v2652, %v2648
    %v2937 = vpack.c.b16 %v2653, %v2649
    %v2938 = vpack.c.b16 %v2654, %v2650
    %v2939 = vpack.c.b16 %v2659, %v2655
    %v2940 = vpack.c.b16 %v2660, %v2656
    %v2941 = vpack.c.b16 %v2661, %v2657
    %v2942 = vpack.c.b16 %v2662, %v2658
    %v2943 = vpack.c.b16 %v2667, %v2663
    %v2944 = vpack.c.b16 %v2668, %v2664
    %v2945 = vpack.c.b16 %v2669, %v2665
    %v2946 = vpack.c.b16 %v2670, %v2666
    %v2947 = vpack.c.b16 %v2675, %v2671
    %v2948 = vpack.c.b16 %v2676, %v2672
    %v2949 = vpack.c.b16 %v2677, %v2673
    %v2950 = vpack.c.b16 %v2678, %v2674
    %v2951 = vpack.c.b16 %v2683, %v2679
    %v2952 = vpack.c.b16 %v2684, %v2680
    %v2953 = vpack.c.b16 %v2685, %v2681
    %v2954 = vpack.c.b16 %v2686, %v2682
    %v2955 = vpack.c.b16 %v2691, %v2687
    %v2956 = vpack.c.b16 %v2692, %v2688
    %v2957 = vpack.c.b16 %v2693, %v2689
    %v2958 = vpack.c.b16 %v2694, %v2690
    %v2959 = vpack.c.b16 %v2699, %v2695
    %v2960 = vpack.c.b16 %v2700, %v2696
    %v2961 = vpack.c.b16 %v2701, %v2697
    %v2962 = vpack.c.b16 %v2702, %v2698
    %v2963 = vpack.c.b16 %v2707, %v2703
    %v2964 = vpack.c.b16 %v2708, %v2704
    %v2965 = vpack.c.b16 %v2709, %v2705
    %v2966 = vpack.c.b16 %v2710, %v2706
    %v2967 = vpack.c.b16 %v2715, %v2711
    %v2968 = vpack.c.b16 %v2716, %v2712
    %v2969 = vpack.c.b16 %v2717, %v2713
    %v2970 = vpack.c.b16 %v2718, %v2714
    %v2971 = vpack.c.b16 %v2723, %v2719
    %v2972 = vpack.c.b16 %v2724, %v2720
    %v2973 = vpack.c.b16 %v2725, %v2721
    %v2974 = vpack.c.b16 %v2726, %v2722
    %v2975 = vpack.c.b16 %v2731, %v2727
    %v2976 = vpack.c.b16 %v2732, %v2728
    %v2977 = vpack.c.b16 %v2733, %v2729
    %v2978 = vpack.c.b16 %v2734, %v2730
    %v2979 = vpack.c.b16 %v2739, %v2735
    %v2980 = vpack.c.b16 %v2740, %v2736
    %v2981 = vpack.c.b16 %v2741, %v2737
    %v2982 = vpack.c.b16 %v2742, %v2738
    %v2983 = vpack.c.b16 %v2747, %v2743
    %v2984 = vpack.c.b16 %v2748, %v2744
    %v2985 = vpack.c.b16 %v2749, %v2745
    %v2986 = vpack.c.b16 %v2750, %v2746
    %v2987 = vpack.c.b16 %v2755, %v2751
    %v2988 = vpack.c.b16 %v2756, %v2752
    %v2989 = vpack.c.b16 %v2757, %v2753
    %v2990 = vpack.c.b16 %v2758, %v2754
    %v2991 = vpack.c.b16 %v2763, %v2759
    %v2992 = vpack.c.b16 %v2764, %v2760
    %v2993 = vpack.c.b16 %v2765, %v2761
    %v2994 = vpack.c.b16 %v2766, %v2762
    %v2995 = vpack.c.b16 %v2771, %v2767
    %v2996 = vpack.c.b16 %v2772, %v2768
    %v2997 = vpack.c.b16 %v2773, %v2769
    %v2998 = vpack.c.b16 %v2774, %v2770
    %v2999 = vpack.c.b16 %v2779, %v2775
    %v3000 = vpack.c.b16 %v2780, %v2776
    %v3001 = vpack.c.b16 %v2781, %v2777
    %v3002 = vpack.c.b16 %v2782, %v2778
    %v3003 = vpack.c.b16 %v2787, %v2783
    %v3004 = vpack.c.b16 %v2788, %v2784
    %v3005 = vpack.c.b16 %v2789, %v2785
    %v3006 = vpack.c.b16 %v2790, %v2786
    %v3007 = vpack.c.b16 %v2795, %v2791
    %v3008 = vpack.c.b16 %v2796, %v2792
    %v3009 = vpack.c.b16 %v2797, %v2793
    %v3010 = vpack.c.b16 %v2798, %v2794
    %v3011 = vpack.c.b16 %v2803, %v2799
    %v3012 = vpack.c.b16 %v2804, %v2800
    %v3013 = vpack.c.b16 %v2805, %v2801
    %v3014 = vpack.c.b16 %v2806, %v2802
    %v3015 = vpack.c.b16 %v2811, %v2807
    %v3016 = vpack.c.b16 %v2812, %v2808
    %v3017 = vpack.c.b16 %v2813, %v2809
    %v3018 = vpack.c.b16 %v2814, %v2810
    %v3019 = vpack.c.b16 %v2819, %v2815
    %v3020 = vpack.c.b16 %v2820, %v2816
    %v3021 = vpack.c.b16 %v2821, %v2817
    %v3022 = vpack.c.b16 %v2822, %v2818
    %v3023 = vpack.c.b16 %v2827, %v2823
    %v3024 = vpack.c.b16 %v2828, %v2824
    %v3025 = vpack.c.b16 %v2829, %v2825
    %v3026 = vpack.c.b16 %v2830, %v2826
    %v3027 = vpack.c.b16 %v2835, %v2831
    %v3028 = vpack.c.b16 %v2836, %v2832
    %v3029 = vpack.c.b16 %v2837, %v2833
    %v3030 = vpack.c.b16 %v2838, %v2834
    %3223 = vmatprep.subr.bf16.mxu0 %v2840
    %3224 = vmatpush1.bf16.msra.mxu0 %v2839
    %3225 = vmatprep.subr.bf16.mxu0 %v2844
    %3226 = vmatpush1.bf16.msra.mxu0 %v2843
    %3227 = vmatprep.subr.bf16.mxu0 %v2848
    %3228 = vmatpush1.bf16.msra.mxu0 %v2847
    %3229 = vmatprep.subr.bf16.mxu0 %v2852
    %3230 = vmatpush1.bf16.msra.mxu0 %v2851
    %3231 = vmatprep.subr.bf16.mxu0 %v2856
    %3232 = vmatpush1.bf16.msra.mxu0 %v2855
    %3233 = vmatprep.subr.bf16.mxu0 %v2860
    %3234 = vmatpush1.bf16.msra.mxu0 %v2859
    %3235 = vmatprep.subr.bf16.mxu0 %v2864
    %3236 = vmatpush1.bf16.msra.mxu0 %v2863
    %3237 = vmatprep.subr.bf16.mxu0 %v2868
    %3238 = vmatpush1.bf16.msra.mxu0 %v2867
    %3239 = vmatprep.subr.bf16.mxu0 %v2872
    %3240 = vmatpush1.bf16.msra.mxu0 %v2871
    %3241 = vmatprep.subr.bf16.mxu0 %v2876
    %3242 = vmatpush1.bf16.msra.mxu0 %v2875
    %3243 = vmatprep.subr.bf16.mxu0 %v2880
    %3244 = vmatpush1.bf16.msra.mxu0 %v2879
    %3245 = vmatprep.subr.bf16.mxu0 %v2884
    %3246 = vmatpush1.bf16.msra.mxu0 %v2883
    %3247 = vmatprep.subr.bf16.mxu0 %v2888
    %3248 = vmatpush1.bf16.msra.mxu0 %v2887
    %3249 = vmatprep.subr.bf16.mxu0 %v2892
    %3250 = vmatpush1.bf16.msra.mxu0 %v2891
    %3251 = vmatprep.subr.bf16.mxu0 %v2896
    %3252 = vmatpush1.bf16.msra.mxu0 %v2895
    %3253 = vmatprep.subr.bf16.mxu0 %v2900
    %3254 = vmatpush1.bf16.msra.mxu0 %v2899
    %3255 = vmatprep.mubr.bf16.mxu0 %v2044
    %3256 = vmatmul.mubr.bf16.gmra.mrb[0].mxu0 %v2043
    %v3257 = vpop.f32.mrb[0].mxu0
    %v3258 = vadd.f32 %v2246, %v3257
    %v3259 = vpop.f32.mrb[0].mxu0
    %v3260 = vadd.f32 %v2250, %v3259
    %v3261 = vpop.f32.mrb[0].mxu0
    %v3262 = vpop.f32.mrb[0].mxu0
    %3263 = vdwg.mxu0
    %3264 = vmatprep.subr.bf16.mxu0 %v2904
    %3265 = vmatpush1.bf16.msra.mxu0 %v2903
    %3266 = vmatprep.subr.bf16.mxu0 %v2908
    %3267 = vmatpush1.bf16.msra.mxu0 %v2907
    %3268 = vmatprep.subr.bf16.mxu0 %v2912
    %3269 = vmatpush1.bf16.msra.mxu0 %v2911
    %3270 = vmatprep.subr.bf16.mxu0 %v2916
    %3271 = vmatpush1.bf16.msra.mxu0 %v2915
    %3272 = vmatprep.subr.bf16.mxu0 %v2920
    %3273 = vmatpush1.bf16.msra.mxu0 %v2919
    %3274 = vmatprep.subr.bf16.mxu0 %v2924
    %3275 = vmatpush1.bf16.msra.mxu0 %v2923
    %3276 = vmatprep.subr.bf16.mxu0 %v2928
    %3277 = vmatpush1.bf16.msra.mxu0 %v2927
    %3278 = vmatprep.subr.bf16.mxu0 %v2932
    %3279 = vmatpush1.bf16.msra.mxu0 %v2931
    %3280 = vmatprep.subr.bf16.mxu0 %v2936
    %3281 = vmatpush1.bf16.msra.mxu0 %v2935
    %3282 = vmatprep.subr.bf16.mxu0 %v2940
    %3283 = vmatpush1.bf16.msra.mxu0 %v2939
    %3284 = vmatprep.subr.bf16.mxu0 %v2944
    %3285 = vmatpush1.bf16.msra.mxu0 %v2943
    %3286 = vmatprep.subr.bf16.mxu0 %v2948
    %3287 = vmatpush1.bf16.msra.mxu0 %v2947
    %3288 = vmatprep.subr.bf16.mxu0 %v2952
    %3289 = vmatpush1.bf16.msra.mxu0 %v2951
    %3290 = vmatprep.subr.bf16.mxu0 %v2956
    %3291 = vmatpush1.bf16.msra.mxu0 %v2955
    %3292 = vmatprep.subr.bf16.mxu0 %v2960
    %3293 = vmatpush1.bf16.msra.mxu0 %v2959
    %3294 = vmatprep.subr.bf16.mxu0 %v2964
    %3295 = vmatpush1.bf16.msra.mxu0 %v2963
    %3296 = vmatprep.mubr.bf16.mxu0 %v2046
    %3297 = vmatmul.mubr.bf16.gmra.mrb[0].mxu0 %v2045
    %v3298 = vpop.f32.mrb[0].mxu0
    %v3299 = vadd.f32 %v3258, %v3298
    %v3300 = vpop.f32.mrb[0].mxu0
    %v3301 = vadd.f32 %v3260, %v3300
    %v3302 = vpop.f32.mrb[0].mxu0
    %v3303 = vpop.f32.mrb[0].mxu0
    %3304 = vdwg.mxu0
    %3305 = vmatprep.subr.bf16.mxu0 %v2968
    %3306 = vmatpush1.bf16.msra.mxu0 %v2967
    %3307 = vmatprep.subr.bf16.mxu0 %v2972
    %3308 = vmatpush1.bf16.msra.mxu0 %v2971
    %3309 = vmatprep.subr.bf16.mxu0 %v2976
    %3310 = vmatpush1.bf16.msra.mxu0 %v2975
    %3311 = vmatprep.subr.bf16.mxu0 %v2980
    %3312 = vmatpush1.bf16.msra.mxu0 %v2979
    %3313 = vmatprep.subr.bf16.mxu0 %v2984
    %3314 = vmatpush1.bf16.msra.mxu0 %v2983
    %3315 = vmatprep.subr.bf16.mxu0 %v2988
    %3316 = vmatpush1.bf16.msra.mxu0 %v2987
    %3317 = vmatprep.subr.bf16.mxu0 %v2992
    %3318 = vmatpush1.bf16.msra.mxu0 %v2991
    %3319 = vmatprep.subr.bf16.mxu0 %v2996
    %3320 = vmatpush1.bf16.msra.mxu0 %v2995
    %3321 = vmatprep.subr.bf16.mxu0 %v3000
    %3322 = vmatpush1.bf16.msra.mxu0 %v2999
    %3323 = vmatprep.subr.bf16.mxu0 %v3004
    %3324 = vmatpush1.bf16.msra.mxu0 %v3003
    %3325 = vmatprep.subr.bf16.mxu0 %v3008
    %3326 = vmatpush1.bf16.msra.mxu0 %v3007
    %3327 = vmatprep.subr.bf16.mxu0 %v3012
    %3328 = vmatpush1.bf16.msra.mxu0 %v3011
    %3329 = vmatprep.subr.bf16.mxu0 %v3016
    %3330 = vmatpush1.bf16.msra.mxu0 %v3015
    %3331 = vmatprep.subr.bf16.mxu0 %v3020
    %3332 = vmatpush1.bf16.msra.mxu0 %v3019
    %3333 = vmatprep.subr.bf16.mxu0 %v3024
    %3334 = vmatpush1.bf16.msra.mxu0 %v3023
    %3335 = vmatprep.subr.bf16.mxu0 %v3028
    %3336 = vmatpush1.bf16.msra.mxu0 %v3027
    %3337 = vmatprep.mubr.bf16.mxu0 %v2048
    %3338 = vmatmul.mubr.bf16.gmra.mrb[0].mxu0 %v2047
    %v3339 = vpop.f32.mrb[0].mxu0
    %v3340 = vadd.f32 %v3299, %v3339
    %v3341 = vpop.f32.mrb[0].mxu0
    %v3342 = vadd.f32 %v3301, %v3341
    %v3343 = vpop.f32.mrb[0].mxu0
    %v3344 = vpop.f32.mrb[0].mxu0
    %3345 = vdwg.mxu0
    %3346 = vmatprep.subr.bf16.mxu0 %v2842
    %3347 = vmatpush1.bf16.msra.mxu0 %v2841
    %3348 = vmatprep.subr.bf16.mxu0 %v2846
    %3349 = vmatpush1.bf16.msra.mxu0 %v2845
    %3350 = vmatprep.subr.bf16.mxu0 %v2850
    %3351 = vmatpush1.bf16.msra.mxu0 %v2849
    %3352 = vmatprep.subr.bf16.mxu0 %v2854
    %3353 = vmatpush1.bf16.msra.mxu0 %v2853
    %3354 = vmatprep.subr.bf16.mxu0 %v2858
    %3355 = vmatpush1.bf16.msra.mxu0 %v2857
    %3356 = vmatprep.subr.bf16.mxu0 %v2862
    %3357 = vmatpush1.bf16.msra.mxu0 %v2861
    %3358 = vmatprep.subr.bf16.mxu0 %v2866
    %3359 = vmatpush1.bf16.msra.mxu0 %v2865
    %3360 = vmatprep.subr.bf16.mxu0 %v2870
    %3361 = vmatpush1.bf16.msra.mxu0 %v2869
    %3362 = vmatprep.subr.bf16.mxu0 %v2874
    %3363 = vmatpush1.bf16.msra.mxu0 %v2873
    %3364 = vmatprep.subr.bf16.mxu0 %v2878
    %3365 = vmatpush1.bf16.msra.mxu0 %v2877
    %3366 = vmatprep.subr.bf16.mxu0 %v2882
    %3367 = vmatpush1.bf16.msra.mxu0 %v2881
    %3368 = vmatprep.subr.bf16.mxu0 %v2886
    %3369 = vmatpush1.bf16.msra.mxu0 %v2885
    %3370 = vmatprep.subr.bf16.mxu0 %v2890
    %3371 = vmatpush1.bf16.msra.mxu0 %v2889
    %3372 = vmatprep.subr.bf16.mxu0 %v2894
    %3373 = vmatpush1.bf16.msra.mxu0 %v2893
    %3374 = vmatprep.subr.bf16.mxu0 %v2898
    %3375 = vmatpush1.bf16.msra.mxu0 %v2897
    %3376 = vmatprep.subr.bf16.mxu0 %v2902
    %3377 = vmatpush1.bf16.msra.mxu0 %v2901
    %3378 = vmatprep.mubr.bf16.mxu0 %v2044
    %3379 = vmatmul.mubr.bf16.gmra.mrb[0].mxu0 %v2043
    %v3380 = vpop.f32.mrb[0].mxu0
    %v3381 = vadd.f32 %v2254, %v3380
    %v3382 = vpop.f32.mrb[0].mxu0
    %v3383 = vadd.f32 %v2258, %v3382
    %v3384 = vpop.f32.mrb[0].mxu0
    %v3385 = vpop.f32.mrb[0].mxu0
    %3386 = vdwg.mxu0
    %3387 = vmatprep.subr.bf16.mxu0 %v2906
    %3388 = vmatpush1.bf16.msra.mxu0 %v2905
    %3389 = vmatprep.subr.bf16.mxu0 %v2910
    %3390 = vmatpush1.bf16.msra.mxu0 %v2909
    %3391 = vmatprep.subr.bf16.mxu0 %v2914
    %3392 = vmatpush1.bf16.msra.mxu0 %v2913
    %3393 = vmatprep.subr.bf16.mxu0 %v2918
    %3394 = vmatpush1.bf16.msra.mxu0 %v2917
    %3395 = vmatprep.subr.bf16.mxu0 %v2922
    %3396 = vmatpush1.bf16.msra.mxu0 %v2921
    %3397 = vmatprep.subr.bf16.mxu0 %v2926
    %3398 = vmatpush1.bf16.msra.mxu0 %v2925
    %3399 = vmatprep.subr.bf16.mxu0 %v2930
    %3400 = vmatpush1.bf16.msra.mxu0 %v2929
    %3401 = vmatprep.subr.bf16.mxu0 %v2934
    %3402 = vmatpush1.bf16.msra.mxu0 %v2933
    %3403 = vmatprep.subr.bf16.mxu0 %v2938
    %3404 = vmatpush1.bf16.msra.mxu0 %v2937
    %3405 = vmatprep.subr.bf16.mxu0 %v2942
    %3406 = vmatpush1.bf16.msra.mxu0 %v2941
    %3407 = vmatprep.subr.bf16.mxu0 %v2946
    %3408 = vmatpush1.bf16.msra.mxu0 %v2945
    %3409 = vmatprep.subr.bf16.mxu0 %v2950
    %3410 = vmatpush1.bf16.msra.mxu0 %v2949
    %3411 = vmatprep.subr.bf16.mxu0 %v2954
    %3412 = vmatpush1.bf16.msra.mxu0 %v2953
    %3413 = vmatprep.subr.bf16.mxu0 %v2958
    %3414 = vmatpush1.bf16.msra.mxu0 %v2957
    %3415 = vmatprep.subr.bf16.mxu0 %v2962
    %3416 = vmatpush1.bf16.msra.mxu0 %v2961
    %3417 = vmatprep.subr.bf16.mxu0 %v2966
    %3418 = vmatpush1.bf16.msra.mxu0 %v2965
    %3419 = vmatprep.mubr.bf16.mxu0 %v2046
    %3420 = vmatmul.mubr.bf16.gmra.mrb[0].mxu0 %v2045
    %v3421 = vpop.f32.mrb[0].mxu0
    %v3422 = vadd.f32 %v3381, %v3421
    %v3423 = vpop.f32.mrb[0].mxu0
    %v3424 = vadd.f32 %v3383, %v3423
    %v3425 = vpop.f32.mrb[0].mxu0
    %v3426 = vpop.f32.mrb[0].mxu0
    %3427 = vdwg.mxu0
    %3428 = vmatprep.subr.bf16.mxu0 %v2970
    %3429 = vmatpush1.bf16.msra.mxu0 %v2969
    %3430 = vmatprep.subr.bf16.mxu0 %v2974
    %3431 = vmatpush1.bf16.msra.mxu0 %v2973
    %3432 = vmatprep.subr.bf16.mxu0 %v2978
    %3433 = vmatpush1.bf16.msra.mxu0 %v2977
    %3434 = vmatprep.subr.bf16.mxu0 %v2982
    %3435 = vmatpush1.bf16.msra.mxu0 %v2981
    %3436 = vmatprep.subr.bf16.mxu0 %v2986
    %3437 = vmatpush1.bf16.msra.mxu0 %v2985
    %3438 = vmatprep.subr.bf16.mxu0 %v2990
    %3439 = vmatpush1.bf16.msra.mxu0 %v2989
    %3440 = vmatprep.subr.bf16.mxu0 %v2994
    %3441 = vmatpush1.bf16.msra.mxu0 %v2993
    %3442 = vmatprep.subr.bf16.mxu0 %v2998
    %3443 = vmatpush1.bf16.msra.mxu0 %v2997
    %3444 = vmatprep.subr.bf16.mxu0 %v3002
    %3445 = vmatpush1.bf16.msra.mxu0 %v3001
    %3446 = vmatprep.subr.bf16.mxu0 %v3006
    %3447 = vmatpush1.bf16.msra.mxu0 %v3005
    %3448 = vmatprep.subr.bf16.mxu0 %v3010
    %3449 = vmatpush1.bf16.msra.mxu0 %v3009
    %3450 = vmatprep.subr.bf16.mxu0 %v3014
    %3451 = vmatpush1.bf16.msra.mxu0 %v3013
    %3452 = vmatprep.subr.bf16.mxu0 %v3018
    %3453 = vmatpush1.bf16.msra.mxu0 %v3017
    %3454 = vmatprep.subr.bf16.mxu0 %v3022
    %3455 = vmatpush1.bf16.msra.mxu0 %v3021
    %3456 = vmatprep.subr.bf16.mxu0 %v3026
    %3457 = vmatpush1.bf16.msra.mxu0 %v3025
    %3458 = vmatprep.subr.bf16.mxu0 %v3030
    %3459 = vmatpush1.bf16.msra.mxu0 %v3029
    %3460 = vmatprep.mubr.bf16.mxu0 %v2048
    %3461 = vmatmul.mubr.bf16.gmra.mrb[0].mxu0 %v2047
    %v3462 = vpop.f32.mrb[0].mxu0
    %v3463 = vadd.f32 %v3422, %v3462
    %v3464 = vpop.f32.mrb[0].mxu0
    %v3465 = vadd.f32 %v3424, %v3464
    %v3466 = vpop.f32.mrb[0].mxu0
    %v3467 = vpop.f32.mrb[0].mxu0
    %3468 = vdwg.mxu0
    %3469 = vst [vmem:[%s9] sm:$0xff] %v3340
    %3470 = vst [vmem:[%s9 + $0x8] sm:$0xff] %v3342
    %3471 = vst [vmem:[%s9 + $0x10] sm:$0xff] %v3463
    %3472 = vst [vmem:[%s9 + $0x18] sm:$0xff] %v3465
    %v3473 = vld [vmem:[#allocation3] sm:$0xff]
    %v3474 = vmul.f32 %v3473, 0.0625
    %v3475 = vpack.c.bf16 %v3474, %v3474
    %v3476 = vld [vmem:[%s3] sm:$0xff]
    %v3477 = vld [vmem:[%s3 + $0x8] sm:$0xff]
    %v3478 = vld [vmem:[%s3 + $0x10] sm:$0xff]
    %v3479 = vld [vmem:[%s3 + $0x18] sm:$0xff]
    %v3480 = vld [vmem:[%s3 + $0x20] sm:$0xff]
    %v3481 = vld [vmem:[%s3 + $0x28] sm:$0xff]
    %v3482 = vld [vmem:[%s3 + $0x30] sm:$0xff]
    %v3483 = vld [vmem:[%s3 + $0x38] sm:$0xff]
    %v3484 = vld [vmem:[%s3 + $0x40] sm:$0xff]
    %v3485 = vld [vmem:[%s3 + $0x48] sm:$0xff]
    %v3486 = vld [vmem:[%s3 + $0x50] sm:$0xff]
    %v3487 = vld [vmem:[%s3 + $0x58] sm:$0xff]
    %v3488 = vld [vmem:[%s3 + $0x60] sm:$0xff]
    %v3489 = vld [vmem:[%s3 + $0x68] sm:$0xff]
    %v3490 = vld [vmem:[%s3 + $0x70] sm:$0xff]
    %v3491 = vld [vmem:[%s3 + $0x78] sm:$0xff]
    %v3492 = vld [vmem:[%s3 + $0x80] sm:$0xff]
    %v3493 = vld [vmem:[%s3 + $0x88] sm:$0xff]
    %v3494 = vld [vmem:[%s4] sm:$0x3f]
    %v3496 = vlaneseq
    %v3497 = vshrl.u32 %v3496, 7
    %v3498 = vsub.s32 0, %v3497
    %v3499 = vrot.slane %v3494, %v3498
    %v3500 = vlaneseq
    %v3501 = vshrl.u32 %v3500, 7
    %v3502 = vsub.s32 1, %v3501
    %v3503 = vrot.slane %v3494, %v3502
    %v3504 = vlaneseq
    %v3505 = vshrl.u32 %v3504, 7
    %v3506 = vsub.s32 2, %v3505
    %v3507 = vrot.slane %v3494, %v3506
    %v3508 = vlaneseq
    %v3509 = vshrl.u32 %v3508, 7
    %v3510 = vsub.s32 3, %v3509
    %v3511 = vrot.slane %v3494, %v3510
    %v3512 = vlaneseq
    %v3513 = vshrl.u32 %v3512, 7
    %v3514 = vsub.s32 4, %v3513
    %v3515 = vrot.slane %v3494, %v3514
    %v3516 = vlaneseq
    %v3517 = vshrl.u32 %v3516, 7
    %v3518 = vsub.s32 5, %v3517
    %v3519 = vrot.slane %v3494, %v3518
    %v3544 = vunpack.c.l.b16 %v3476
    %v3545 = vunpack.c.h.b16 %v3476
    %v3546 = vunpack.c.l.b16 %v3477
    %v3547 = vunpack.c.h.b16 %v3477
    %v3548 = vunpack.c.l.b16 %v3478
    %v3549 = vunpack.c.h.b16 %v3478
    %v3550 = vunpack.c.l.b16 %v3479
    %v3551 = vunpack.c.h.b16 %v3479
    %v3552 = vunpack.c.l.b16 %v3480
    %v3553 = vunpack.c.h.b16 %v3480
    %v3554 = vunpack.c.l.b16 %v3481
    %v3555 = vunpack.c.h.b16 %v3481
    %v3556 = vunpack.c.l.b16 %v3482
    %v3557 = vunpack.c.h.b16 %v3482
    %v3558 = vunpack.c.l.b16 %v3483
    %v3559 = vunpack.c.h.b16 %v3483
    %v3560 = vunpack.c.l.b16 %v3484
    %v3561 = vunpack.c.h.b16 %v3484
    %v3562 = vunpack.c.l.b16 %v3485
    %v3563 = vunpack.c.h.b16 %v3485
    %v3564 = vunpack.c.l.b16 %v3486
    %v3565 = vunpack.c.h.b16 %v3486
    %v3566 = vunpack.c.l.b16 %v3487
    %v3567 = vunpack.c.h.b16 %v3487
    %v3568 = vunpack.c.l.b16 %v3488
    %v3569 = vunpack.c.h.b16 %v3488
    %v3570 = vunpack.c.l.b16 %v3489
    %v3571 = vunpack.c.h.b16 %v3489
    %v3572 = vunpack.c.l.b16 %v3490
    %v3573 = vunpack.c.h.b16 %v3490
    %v3574 = vunpack.c.l.b16 %v3491
    %v3575 = vunpack.c.h.b16 %v3491
    %v3576 = vunpack.c.l.b16 %v3492
    %v3577 = vunpack.c.h.b16 %v3492
    %v3578 = vunpack.c.l.b16 %v3493
    %v3579 = vunpack.c.h.b16 %v3493
    %v3580 = vpack.c.b16 %v3550, %v3544
    %v3581 = vpack.c.b16 %v3551, %v3545
    %v3582 = vpack.c.b16 %v3552, %v3546
    %v3583 = vpack.c.b16 %v3553, %v3547
    %v3584 = vpack.c.b16 %v3554, %v3548
    %v3585 = vpack.c.b16 %v3555, %v3549
    %v3586 = vpack.c.b16 %v3562, %v3556
    %v3587 = vpack.c.b16 %v3563, %v3557
    %v3588 = vpack.c.b16 %v3564, %v3558
    %v3589 = vpack.c.b16 %v3565, %v3559
    %v3590 = vpack.c.b16 %v3566, %v3560
    %v3591 = vpack.c.b16 %v3567, %v3561
    %v3592 = vpack.c.b16 %v3574, %v3568
    %v3593 = vpack.c.b16 %v3575, %v3569
    %v3594 = vpack.c.b16 %v3576, %v3570
    %v3595 = vpack.c.b16 %v3577, %v3571
    %v3596 = vpack.c.b16 %v3578, %v3572
    %v3597 = vpack.c.b16 %v3579, %v3573
    %v3617 = vsel %vm594, %v3475, 0
    %3619 = vmatprep.subr.bf16.mxu0 %v3581
    %3620 = vmatpush1.bf16.msra.mxu0 %v3580
    %3621 = vmatprep.subr.bf16.mxu0 %v3587
    %3622 = vmatpush1.bf16.msra.mxu0 %v3586
    %3623 = vmatprep.subr.bf16.mxu0 %v3593
    %3624 = vmatpush1.bf16.msra.mxu0 %v3592
    %3625 = vmatprep.subr.bf16.mxu0 0
    %3626 = vmatpush1.bf16.msra.mxu0 0
    %3627 = vmatprep.subr.bf16.mxu0 0
    %3628 = vmatpush1.bf16.msra.mxu0 0
    %3629 = vmatprep.subr.bf16.mxu0 0
    %3630 = vmatpush1.bf16.msra.mxu0 0
    %3631 = vmatprep.subr.bf16.mxu0 0
    %3632 = vmatpush1.bf16.msra.mxu0 0
    %3633 = vmatprep.subr.bf16.mxu0 0
    %3634 = vmatpush1.bf16.msra.mxu0 0
    %3635 = vmatprep.subr.bf16.mxu0 0
    %3636 = vmatpush1.bf16.msra.mxu0 0
    %3637 = vmatprep.subr.bf16.mxu0 0
    %3638 = vmatpush1.bf16.msra.mxu0 0
    %3639 = vmatprep.subr.bf16.mxu0 0
    %3640 = vmatpush1.bf16.msra.mxu0 0
    %3641 = vmatprep.subr.bf16.mxu0 0
    %3642 = vmatpush1.bf16.msra.mxu0 0
    %3643 = vmatprep.subr.bf16.mxu0 0
    %3644 = vmatpush1.bf16.msra.mxu0 0
    %3645 = vmatprep.subr.bf16.mxu0 0
    %3646 = vmatpush1.bf16.msra.mxu0 0
    %3647 = vmatprep.subr.bf16.mxu0 0
    %3648 = vmatpush1.bf16.msra.mxu0 0
    %3649 = vmatprep.subr.bf16.mxu0 0
    %3650 = vmatpush1.bf16.msra.mxu0 0
    %3651 = vmatprep.mubr.bf16.mxu0 0
    %3652 = vmatmul.mubr.bf16.gmra.mrb[0].mxu0 %v3617
    %v3653 = vpop.f32.mrb[0].mxu0
    %v3654 = vadd.f32 %v3499, %v3653
    %v3655 = vpop.f32.mrb[0].mxu0
    %v3656 = vadd.f32 %v3503, %v3655
    %v3657 = vpop.f32.mrb[0].mxu0
    %v3658 = vpop.f32.mrb[0].mxu0
    %3659 = vdwg.mxu0
    %3660 = vmatprep.subr.bf16.mxu0 %v3583
    %3661 = vmatpush1.bf16.msra.mxu0 %v3582
    %3662 = vmatprep.subr.bf16.mxu0 %v3589
    %3663 = vmatpush1.bf16.msra.mxu0 %v3588
    %3664 = vmatprep.subr.bf16.mxu0 %v3595
    %3665 = vmatpush1.bf16.msra.mxu0 %v3594
    %3666 = vmatprep.subr.bf16.mxu0 0
    %3667 = vmatpush1.bf16.msra.mxu0 0
    %3668 = vmatprep.subr.bf16.mxu0 0
    %3669 = vmatpush1.bf16.msra.mxu0 0
    %3670 = vmatprep.subr.bf16.mxu0 0
    %3671 = vmatpush1.bf16.msra.mxu0 0
    %3672 = vmatprep.subr.bf16.mxu0 0
    %3673 = vmatpush1.bf16.msra.mxu0 0
    %3674 = vmatprep.subr.bf16.mxu0 0
    %3675 = vmatpush1.bf16.msra.mxu0 0
    %3676 = vmatprep.subr.bf16.mxu0 0
    %3677 = vmatpush1.bf16.msra.mxu0 0
    %3678 = vmatprep.subr.bf16.mxu0 0
    %3679 = vmatpush1.bf16.msra.mxu0 0
    %3680 = vmatprep.subr.bf16.mxu0 0
    %3681 = vmatpush1.bf16.msra.mxu0 0
    %3682 = vmatprep.subr.bf16.mxu0 0
    %3683 = vmatpush1.bf16.msra.mxu0 0
    %3684 = vmatprep.subr.bf16.mxu0 0
    %3685 = vmatpush1.bf16.msra.mxu0 0
    %3686 = vmatprep.subr.bf16.mxu0 0
    %3687 = vmatpush1.bf16.msra.mxu0 0
    %3688 = vmatprep.subr.bf16.mxu0 0
    %3689 = vmatpush1.bf16.msra.mxu0 0
    %3690 = vmatprep.subr.bf16.mxu0 0
    %3691 = vmatpush1.bf16.msra.mxu0 0
    %3692 = vmatprep.mubr.bf16.mxu0 0
    %3693 = vmatmul.mubr.bf16.gmra.mrb[0].mxu0 %v3617
    %v3694 = vpop.f32.mrb[0].mxu0
    %v3695 = vadd.f32 %v3507, %v3694
    %v3696 = vpop.f32.mrb[0].mxu0
    %v3697 = vadd.f32 %v3511, %v3696
    %v3698 = vpop.f32.mrb[0].mxu0
    %v3699 = vpop.f32.mrb[0].mxu0
    %3700 = vdwg.mxu0
    %3701 = vmatprep.subr.bf16.mxu0 %v3585
    %3702 = vmatpush1.bf16.msra.mxu0 %v3584
    %3703 = vmatprep.subr.bf16.mxu0 %v3591
    %3704 = vmatpush1.bf16.msra.mxu0 %v3590
    %3705 = vmatprep.subr.bf16.mxu0 %v3597
    %3706 = vmatpush1.bf16.msra.mxu0 %v3596
    %3707 = vmatprep.subr.bf16.mxu0 0
    %3708 = vmatpush1.bf16.msra.mxu0 0
    %3709 = vmatprep.subr.bf16.mxu0 0
    %3710 = vmatpush1.bf16.msra.mxu0 0
    %3711 = vmatprep.subr.bf16.mxu0 0
    %3712 = vmatpush1.bf16.msra.mxu0 0
    %3713 = vmatprep.subr.bf16.mxu0 0
    %3714 = vmatpush1.bf16.msra.mxu0 0
    %3715 = vmatprep.subr.bf16.mxu0 0
    %3716 = vmatpush1.bf16.msra.mxu0 0
    %3717 = vmatprep.subr.bf16.mxu0 0
    %3718 = vmatpush1.bf16.msra.mxu0 0
    %3719 = vmatprep.subr.bf16.mxu0 0
    %3720 = vmatpush1.bf16.msra.mxu0 0
    %3721 = vmatprep.subr.bf16.mxu0 0
    %3722 = vmatpush1.bf16.msra.mxu0 0
    %3723 = vmatprep.subr.bf16.mxu0 0
    %3724 = vmatpush1.bf16.msra.mxu0 0
    %3725 = vmatprep.subr.bf16.mxu0 0
    %3726 = vmatpush1.bf16.msra.mxu0 0
    %3727 = vmatprep.subr.bf16.mxu0 0
    %3728 = vmatpush1.bf16.msra.mxu0 0
    %3729 = vmatprep.subr.bf16.mxu0 0
    %3730 = vmatpush1.bf16.msra.mxu0 0
    %3731 = vmatprep.subr.bf16.mxu0 0
    %3732 = vmatpush1.bf16.msra.mxu0 0
    %3733 = vmatprep.mubr.bf16.mxu0 0
    %3734 = vmatmul.mubr.bf16.gmra.mrb[0].mxu0 %v3617
    %v3735 = vpop.f32.mrb[0].mxu0
    %v3736 = vadd.f32 %v3515, %v3735
    %v3737 = vpop.f32.mrb[0].mxu0
    %v3738 = vadd.f32 %v3519, %v3737
    %v3739 = vpop.f32.mrb[0].mxu0
    %v3740 = vpop.f32.mrb[0].mxu0
    %3741 = vdwg.mxu0
    %v3742 = vadd.f32 %v3654, %v3656
    %v3743 = vadd.f32 %v3742, %v3695
    %v3744 = vadd.f32 %v3743, %v3697
    %v3745 = vadd.f32 %v3744, %v3736
    %v3746 = vadd.f32 %v3745, %v3738
    %3747 = vadd.xlane.f32.xlu0 %v3746
    %v3748 = vpop.xlane.xlu0 %3747
    %v3749 = vmul.f32 %v3748, %v1937
    %v3750 = vsub.f32 %v3654, %v3749
    %v3751 = vsub.f32 %v3656, %v3749
    %v3752 = vsub.f32 %v3695, %v3749
    %v3753 = vsub.f32 %v3697, %v3749
    %v3754 = vsub.f32 %v3736, %v3749
    %v3755 = vsub.f32 %v3738, %v3749
    %v3756 = vmul.f32 %v3750, %v3750
    %v3757 = vmul.f32 %v3751, %v3751
    %v3758 = vmul.f32 %v3752, %v3752
    %v3759 = vmul.f32 %v3753, %v3753
    %v3760 = vmul.f32 %v3754, %v3754
    %v3761 = vmul.f32 %v3755, %v3755
    %v3762 = vadd.f32 %v3756, %v3757
    %v3763 = vadd.f32 %v3762, %v3758
    %v3764 = vadd.f32 %v3763, %v3759
    %v3765 = vadd.f32 %v3764, %v3760
    %v3766 = vadd.f32 %v3765, %v3761
    %3767 = vadd.xlane.f32.xlu0 %v3766
    %v3768 = vpop.xlane.xlu0 %3767
    %v3769 = vmul.f32 %v3768, %v1937
    %v3770 = vadd.f32 %v3769, 1e-05
    %v3771 = vrsqrt.pop %v3770
    %v3772 = vmul.f32 %v3750, %v3771
    %v3773 = vmul.f32 %v3751, %v3771
    %v3774 = vmul.f32 %v3752, %v3771
    %v3775 = vmul.f32 %v3753, %v3771
    %v3776 = vmul.f32 %v3754, %v3771
    %v3777 = vmul.f32 %v3755, %v3771
    %v3778 = vld [vmem:[%s5] sm:$0x3f]
    %v3780 = vlaneseq
    %v3781 = vshrl.u32 %v3780, 7
    %v3782 = vsub.s32 0, %v3781
    %v3783 = vrot.slane %v3778, %v3782
    %v3784 = vlaneseq
    %v3785 = vshrl.u32 %v3784, 7
    %v3786 = vsub.s32 1, %v3785
    %v3787 = vrot.slane %v3778, %v3786
    %v3788 = vlaneseq
    %v3789 = vshrl.u32 %v3788, 7
    %v3790 = vsub.s32 2, %v3789
    %v3791 = vrot.slane %v3778, %v3790
    %v3792 = vlaneseq
    %v3793 = vshrl.u32 %v3792, 7
    %v3794 = vsub.s32 3, %v3793
    %v3795 = vrot.slane %v3778, %v3794
    %v3796 = vlaneseq
    %v3797 = vshrl.u32 %v3796, 7
    %v3798 = vsub.s32 4, %v3797
    %v3799 = vrot.slane %v3778, %v3798
    %v3800 = vlaneseq
    %v3801 = vshrl.u32 %v3800, 7
    %v3802 = vsub.s32 5, %v3801
    %v3803 = vrot.slane %v3778, %v3802
    %v3810 = vmul.f32 %v3772, %v3783
    %v3811 = vmul.f32 %v3773, %v3787
    %v3812 = vmul.f32 %v3774, %v3791
    %v3813 = vmul.f32 %v3775, %v3795
    %v3814 = vmul.f32 %v3776, %v3799
    %v3815 = vmul.f32 %v3777, %v3803
    %v3816 = vld [vmem:[%s6] sm:$0x3f]
    %v3818 = vlaneseq
    %v3819 = vshrl.u32 %v3818, 7
    %v3820 = vsub.s32 0, %v3819
    %v3821 = vrot.slane %v3816, %v3820
    %v3822 = vlaneseq
    %v3823 = vshrl.u32 %v3822, 7
    %v3824 = vsub.s32 1, %v3823
    %v3825 = vrot.slane %v3816, %v3824
    %v3826 = vlaneseq
    %v3827 = vshrl.u32 %v3826, 7
    %v3828 = vsub.s32 2, %v3827
    %v3829 = vrot.slane %v3816, %v3828
    %v3830 = vlaneseq
    %v3831 = vshrl.u32 %v3830, 7
    %v3832 = vsub.s32 3, %v3831
    %v3833 = vrot.slane %v3816, %v3832
    %v3834 = vlaneseq
    %v3835 = vshrl.u32 %v3834, 7
    %v3836 = vsub.s32 4, %v3835
    %v3837 = vrot.slane %v3816, %v3836
    %v3838 = vlaneseq
    %v3839 = vshrl.u32 %v3838, 7
    %v3840 = vsub.s32 5, %v3839
    %v3841 = vrot.slane %v3816, %v3840
    %v3848 = vadd.f32 %v3810, %v3821
    %v3849 = vadd.f32 %v3811, %v3825
    %v3850 = vadd.f32 %v3812, %v3829
    %v3851 = vadd.f32 %v3813, %v3833
    %v3852 = vadd.f32 %v3814, %v3837
    %v3853 = vadd.f32 %v3815, %v3841
    %v3854 = vpack.c.bf16 %v3848, %v3848
    %v3855 = vpack.c.bf16 %v3849, %v3849
    %v3856 = vpack.c.bf16 %v3850, %v3850
    %v3857 = vpack.c.bf16 %v3851, %v3851
    %v3858 = vpack.c.bf16 %v3852, %v3852
    %v3859 = vpack.c.bf16 %v3853, %v3853
    %v3860 = vld [vmem:[%s7] sm:$0xff]
    %v3861 = vld [vmem:[%s7 + $0x8] sm:$0xff]
    %v3862 = vld [vmem:[%s7 + $0x10] sm:$0xff]
    %v3863 = vld [vmem:[%s7 + $0x18] sm:$0xff]
    %v3864 = vld [vmem:[%s7 + $0x20] sm:$0xff]
    %v3865 = vld [vmem:[%s7 + $0x28] sm:$0xff]
    %v3866 = vld [vmem:[%s7 + $0x30] sm:$0xff]
    %v3867 = vld [vmem:[%s7 + $0x38] sm:$0xff]
    %v3868 = vld [vmem:[%s7 + $0x40] sm:$0xff]
    %v3869 = vld [vmem:[%s7 + $0x48] sm:$0xff]
    %v3870 = vld [vmem:[%s7 + $0x50] sm:$0xff]
    %v3871 = vld [vmem:[%s7 + $0x58] sm:$0xff]
    %v3872 = vld [vmem:[%s7 + $0x60] sm:$0xff]
    %v3873 = vld [vmem:[%s7 + $0x68] sm:$0xff]
    %v3874 = vld [vmem:[%s7 + $0x70] sm:$0xff]
    %v3875 = vld [vmem:[%s7 + $0x78] sm:$0xff]
    %v3876 = vld [vmem:[%s7 + $0x80] sm:$0xff]
    %v3877 = vld [vmem:[%s7 + $0x88] sm:$0xff]
    %v3878 = vld [vmem:[%s7 + $0x90] sm:$0xff]
    %v3879 = vld [vmem:[%s7 + $0x98] sm:$0xff]
    %v3880 = vld [vmem:[%s7 + $0xa0] sm:$0xff]
    %v3881 = vld [vmem:[%s7 + $0xa8] sm:$0xff]
    %v3882 = vld [vmem:[%s7 + $0xb0] sm:$0xff]
    %v3883 = vld [vmem:[%s7 + $0xb8] sm:$0xff]
    %v3884 = vld [vmem:[%s7 + $0xc0] sm:$0xff]
    %v3885 = vld [vmem:[%s7 + $0xc8] sm:$0xff]
    %v3886 = vld [vmem:[%s7 + $0xd0] sm:$0xff]
    %v3887 = vld [vmem:[%s7 + $0xd8] sm:$0xff]
    %v3888 = vld [vmem:[%s7 + $0xe0] sm:$0xff]
    %v3889 = vld [vmem:[%s7 + $0xe8] sm:$0xff]
    %v3890 = vld [vmem:[%s7 + $0xf0] sm:$0xff]
    %v3891 = vld [vmem:[%s7 + $0xf8] sm:$0xff]
    %v3892 = vld [vmem:[%s7 + $0x100] sm:$0xff]
    %v3893 = vld [vmem:[%s7 + $0x108] sm:$0xff]
    %v3894 = vld [vmem:[%s7 + $0x110] sm:$0xff]
    %v3895 = vld [vmem:[%s7 + $0x118] sm:$0xff]
    %v3896 = vld [vmem:[%s7 + $0x120] sm:$0xff]
    %v3897 = vld [vmem:[%s7 + $0x128] sm:$0xff]
    %v3898 = vld [vmem:[%s7 + $0x130] sm:$0xff]
    %v3899 = vld [vmem:[%s7 + $0x138] sm:$0xff]
    %v3900 = vld [vmem:[%s7 + $0x140] sm:$0xff]
    %v3901 = vld [vmem:[%s7 + $0x148] sm:$0xff]
    %v3902 = vld [vmem:[%s7 + $0x150] sm:$0xff]
    %v3903 = vld [vmem:[%s7 + $0x158] sm:$0xff]
    %v3904 = vld [vmem:[%s7 + $0x160] sm:$0xff]
    %v3905 = vld [vmem:[%s7 + $0x168] sm:$0xff]
    %v3906 = vld [vmem:[%s7 + $0x170] sm:$0xff]
    %v3907 = vld [vmem:[%s7 + $0x178] sm:$0xff]
    %v3908 = vld [vmem:[%s7 + $0x180] sm:$0xff]
    %v3909 = vld [vmem:[%s7 + $0x188] sm:$0xff]
    %v3910 = vld [vmem:[%s7 + $0x190] sm:$0xff]
    %v3911 = vld [vmem:[%s7 + $0x198] sm:$0xff]
    %v3912 = vld [vmem:[%s7 + $0x1a0] sm:$0xff]
    %v3913 = vld [vmem:[%s7 + $0x1a8] sm:$0xff]
    %v3914 = vld [vmem:[%s7 + $0x1b0] sm:$0xff]
    %v3915 = vld [vmem:[%s7 + $0x1b8] sm:$0xff]
    %v3916 = vld [vmem:[%s7 + $0x1c0] sm:$0xff]
    %v3917 = vld [vmem:[%s7 + $0x1c8] sm:$0xff]
    %v3918 = vld [vmem:[%s7 + $0x1d0] sm:$0xff]
    %v3919 = vld [vmem:[%s7 + $0x1d8] sm:$0xff]
    %v3920 = vld [vmem:[%s7 + $0x1e0] sm:$0xff]
    %v3921 = vld [vmem:[%s7 + $0x1e8] sm:$0xff]
    %v3922 = vld [vmem:[%s7 + $0x1f0] sm:$0xff]
    %v3923 = vld [vmem:[%s7 + $0x1f8] sm:$0xff]
    %v3924 = vld [vmem:[%s7 + $0x200] sm:$0xff]
    %v3925 = vld [vmem:[%s7 + $0x208] sm:$0xff]
    %v3926 = vld [vmem:[%s7 + $0x210] sm:$0xff]
    %v3927 = vld [vmem:[%s7 + $0x218] sm:$0xff]
    %v3928 = vld [vmem:[%s7 + $0x220] sm:$0xff]
    %v3929 = vld [vmem:[%s7 + $0x228] sm:$0xff]
    %v3930 = vld [vmem:[%s7 + $0x230] sm:$0xff]
    %v3931 = vld [vmem:[%s7 + $0x238] sm:$0xff]
    %v3932 = vld [vmem:[%s7 + $0x240] sm:$0xff]
    %v3933 = vld [vmem:[%s7 + $0x248] sm:$0xff]
    %v3934 = vld [vmem:[%s7 + $0x250] sm:$0xff]
    %v3935 = vld [vmem:[%s7 + $0x258] sm:$0xff]
    %v3936 = vld [vmem:[%s7 + $0x260] sm:$0xff]
    %v3937 = vld [vmem:[%s7 + $0x268] sm:$0xff]
    %v3938 = vld [vmem:[%s7 + $0x270] sm:$0xff]
    %v3939 = vld [vmem:[%s7 + $0x278] sm:$0xff]
    %v3940 = vld [vmem:[%s7 + $0x280] sm:$0xff]
    %v3941 = vld [vmem:[%s7 + $0x288] sm:$0xff]
    %v3942 = vld [vmem:[%s7 + $0x290] sm:$0xff]
    %v3943 = vld [vmem:[%s7 + $0x298] sm:$0xff]
    %v3944 = vld [vmem:[%s7 + $0x2a0] sm:$0xff]
    %v3945 = vld [vmem:[%s7 + $0x2a8] sm:$0xff]
    %v3946 = vld [vmem:[%s7 + $0x2b0] sm:$0xff]
    %v3947 = vld [vmem:[%s7 + $0x2b8] sm:$0xff]
    %v3948 = vld [vmem:[%s7 + $0x2c0] sm:$0xff]
    %v3949 = vld [vmem:[%s7 + $0x2c8] sm:$0xff]
    %v3950 = vld [vmem:[%s7 + $0x2d0] sm:$0xff]
    %v3951 = vld [vmem:[%s7 + $0x2d8] sm:$0xff]
    %v3952 = vld [vmem:[%s7 + $0x2e0] sm:$0xff]
    %v3953 = vld [vmem:[%s7 + $0x2e8] sm:$0xff]
    %v3954 = vld [vmem:[%s7 + $0x2f0] sm:$0xff]
    %v3955 = vld [vmem:[%s7 + $0x2f8] sm:$0xff]
    %v3956 = vld [vmem:[%s7 + $0x300] sm:$0xff]
    %v3957 = vld [vmem:[%s7 + $0x308] sm:$0xff]
    %v3958 = vld [vmem:[%s7 + $0x310] sm:$0xff]
    %v3959 = vld [vmem:[%s7 + $0x318] sm:$0xff]
    %v3960 = vld [vmem:[%s7 + $0x320] sm:$0xff]
    %v3961 = vld [vmem:[%s7 + $0x328] sm:$0xff]
    %v3962 = vld [vmem:[%s7 + $0x330] sm:$0xff]
    %v3963 = vld [vmem:[%s7 + $0x338] sm:$0xff]
    %v3964 = vld [vmem:[%s7 + $0x340] sm:$0xff]
    %v3965 = vld [vmem:[%s7 + $0x348] sm:$0xff]
    %v3966 = vld [vmem:[%s7 + $0x350] sm:$0xff]
    %v3967 = vld [vmem:[%s7 + $0x358] sm:$0xff]
    %v3968 = vld [vmem:[%s7 + $0x360] sm:$0xff]
    %v3969 = vld [vmem:[%s7 + $0x368] sm:$0xff]
    %v3970 = vld [vmem:[%s7 + $0x370] sm:$0xff]
    %v3971 = vld [vmem:[%s7 + $0x378] sm:$0xff]
    %v3972 = vld [vmem:[%s7 + $0x380] sm:$0xff]
    %v3973 = vld [vmem:[%s7 + $0x388] sm:$0xff]
    %v3974 = vld [vmem:[%s7 + $0x390] sm:$0xff]
    %v3975 = vld [vmem:[%s7 + $0x398] sm:$0xff]
    %v3976 = vld [vmem:[%s7 + $0x3a0] sm:$0xff]
    %v3977 = vld [vmem:[%s7 + $0x3a8] sm:$0xff]
    %v3978 = vld [vmem:[%s7 + $0x3b0] sm:$0xff]
    %v3979 = vld [vmem:[%s7 + $0x3b8] sm:$0xff]
    %v3980 = vld [vmem:[%s7 + $0x3c0] sm:$0xff]
    %v3981 = vld [vmem:[%s7 + $0x3c8] sm:$0xff]
    %v3982 = vld [vmem:[%s7 + $0x3d0] sm:$0xff]
    %v3983 = vld [vmem:[%s7 + $0x3d8] sm:$0xff]
    %v3984 = vld [vmem:[%s7 + $0x3e0] sm:$0xff]
    %v3985 = vld [vmem:[%s7 + $0x3e8] sm:$0xff]
    %v3986 = vld [vmem:[%s7 + $0x3f0] sm:$0xff]
    %v3987 = vld [vmem:[%s7 + $0x3f8] sm:$0xff]
    %v3988 = vld [vmem:[%s7 + $0x400] sm:$0xff]
    %v3989 = vld [vmem:[%s7 + $0x408] sm:$0xff]
    %v3990 = vld [vmem:[%s7 + $0x410] sm:$0xff]
    %v3991 = vld [vmem:[%s7 + $0x418] sm:$0xff]
    %v3992 = vld [vmem:[%s7 + $0x420] sm:$0xff]
    %v3993 = vld [vmem:[%s7 + $0x428] sm:$0xff]
    %v3994 = vld [vmem:[%s7 + $0x430] sm:$0xff]
    %v3995 = vld [vmem:[%s7 + $0x438] sm:$0xff]
    %v3996 = vld [vmem:[%s7 + $0x440] sm:$0xff]
    %v3997 = vld [vmem:[%s7 + $0x448] sm:$0xff]
    %v3998 = vld [vmem:[%s7 + $0x450] sm:$0xff]
    %v3999 = vld [vmem:[%s7 + $0x458] sm:$0xff]
    %v4000 = vld [vmem:[%s7 + $0x460] sm:$0xff]
    %v4001 = vld [vmem:[%s7 + $0x468] sm:$0xff]
    %v4002 = vld [vmem:[%s7 + $0x470] sm:$0xff]
    %v4003 = vld [vmem:[%s7 + $0x478] sm:$0xff]
    %v4004 = vld [vmem:[%s7 + $0x480] sm:$0xff]
    %v4005 = vld [vmem:[%s7 + $0x488] sm:$0xff]
    %v4006 = vld [vmem:[%s7 + $0x490] sm:$0xff]
    %v4007 = vld [vmem:[%s7 + $0x498] sm:$0xff]
    %v4008 = vld [vmem:[%s7 + $0x4a0] sm:$0xff]
    %v4009 = vld [vmem:[%s7 + $0x4a8] sm:$0xff]
    %v4010 = vld [vmem:[%s7 + $0x4b0] sm:$0xff]
    %v4011 = vld [vmem:[%s7 + $0x4b8] sm:$0xff]
    %v4012 = vld [vmem:[%s7 + $0x4c0] sm:$0xff]
    %v4013 = vld [vmem:[%s7 + $0x4c8] sm:$0xff]
    %v4014 = vld [vmem:[%s7 + $0x4d0] sm:$0xff]
    %v4015 = vld [vmem:[%s7 + $0x4d8] sm:$0xff]
    %v4016 = vld [vmem:[%s7 + $0x4e0] sm:$0xff]
    %v4017 = vld [vmem:[%s7 + $0x4e8] sm:$0xff]
    %v4018 = vld [vmem:[%s7 + $0x4f0] sm:$0xff]
    %v4019 = vld [vmem:[%s7 + $0x4f8] sm:$0xff]
    %v4020 = vld [vmem:[%s7 + $0x500] sm:$0xff]
    %v4021 = vld [vmem:[%s7 + $0x508] sm:$0xff]
    %v4022 = vld [vmem:[%s7 + $0x510] sm:$0xff]
    %v4023 = vld [vmem:[%s7 + $0x518] sm:$0xff]
    %v4024 = vld [vmem:[%s7 + $0x520] sm:$0xff]
    %v4025 = vld [vmem:[%s7 + $0x528] sm:$0xff]
    %v4026 = vld [vmem:[%s7 + $0x530] sm:$0xff]
    %v4027 = vld [vmem:[%s7 + $0x538] sm:$0xff]
    %v4028 = vld [vmem:[%s7 + $0x540] sm:$0xff]
    %v4029 = vld [vmem:[%s7 + $0x548] sm:$0xff]
    %v4030 = vld [vmem:[%s7 + $0x550] sm:$0xff]
    %v4031 = vld [vmem:[%s7 + $0x558] sm:$0xff]
    %v4032 = vld [vmem:[%s7 + $0x560] sm:$0xff]
    %v4033 = vld [vmem:[%s7 + $0x568] sm:$0xff]
    %v4034 = vld [vmem:[%s7 + $0x570] sm:$0xff]
    %v4035 = vld [vmem:[%s7 + $0x578] sm:$0xff]
    %v4036 = vld [vmem:[%s7 + $0x580] sm:$0xff]
    %v4037 = vld [vmem:[%s7 + $0x588] sm:$0xff]
    %v4038 = vld [vmem:[%s7 + $0x590] sm:$0xff]
    %v4039 = vld [vmem:[%s7 + $0x598] sm:$0xff]
    %v4040 = vld [vmem:[%s7 + $0x5a0] sm:$0xff]
    %v4041 = vld [vmem:[%s7 + $0x5a8] sm:$0xff]
    %v4042 = vld [vmem:[%s7 + $0x5b0] sm:$0xff]
    %v4043 = vld [vmem:[%s7 + $0x5b8] sm:$0xff]
    %v4044 = vld [vmem:[%s7 + $0x5c0] sm:$0xff]
    %v4045 = vld [vmem:[%s7 + $0x5c8] sm:$0xff]
    %v4046 = vld [vmem:[%s7 + $0x5d0] sm:$0xff]
    %v4047 = vld [vmem:[%s7 + $0x5d8] sm:$0xff]
    %v4048 = vld [vmem:[%s7 + $0x5e0] sm:$0xff]
    %v4049 = vld [vmem:[%s7 + $0x5e8] sm:$0xff]
    %v4050 = vld [vmem:[%s7 + $0x5f0] sm:$0xff]
    %v4051 = vld [vmem:[%s7 + $0x5f8] sm:$0xff]
    %v4052 = vld [vmem:[%s8] sm:$0xf]
    %v4054 = vlaneseq
    %v4055 = vshrl.u32 %v4054, 7
    %v4056 = vsub.s32 0, %v4055
    %v4057 = vrot.slane %v4052, %v4056
    %v4058 = vlaneseq
    %v4059 = vshrl.u32 %v4058, 7
    %v4060 = vsub.s32 1, %v4059
    %v4061 = vrot.slane %v4052, %v4060
    %v4062 = vlaneseq
    %v4063 = vshrl.u32 %v4062, 7
    %v4064 = vsub.s32 2, %v4063
    %v4065 = vrot.slane %v4052, %v4064
    %v4066 = vlaneseq
    %v4067 = vshrl.u32 %v4066, 7
    %v4068 = vsub.s32 3, %v4067
    %v4069 = vrot.slane %v4052, %v4068
    %v4266 = vunpack.c.l.b16 %v3860
    %v4267 = vunpack.c.h.b16 %v3860
    %v4268 = vunpack.c.l.b16 %v3861
    %v4269 = vunpack.c.h.b16 %v3861
    %v4270 = vunpack.c.l.b16 %v3862
    %v4271 = vunpack.c.h.b16 %v3862
    %v4272 = vunpack.c.l.b16 %v3863
    %v4273 = vunpack.c.h.b16 %v3863
    %v4274 = vunpack.c.l.b16 %v3864
    %v4275 = vunpack.c.h.b16 %v3864
    %v4276 = vunpack.c.l.b16 %v3865
    %v4277 = vunpack.c.h.b16 %v3865
    %v4278 = vunpack.c.l.b16 %v3866
    %v4279 = vunpack.c.h.b16 %v3866
    %v4280 = vunpack.c.l.b16 %v3867
    %v4281 = vunpack.c.h.b16 %v3867
    %v4282 = vunpack.c.l.b16 %v3868
    %v4283 = vunpack.c.h.b16 %v3868
    %v4284 = vunpack.c.l.b16 %v3869
    %v4285 = vunpack.c.h.b16 %v3869
    %v4286 = vunpack.c.l.b16 %v3870
    %v4287 = vunpack.c.h.b16 %v3870
    %v4288 = vunpack.c.l.b16 %v3871
    %v4289 = vunpack.c.h.b16 %v3871
    %v4290 = vunpack.c.l.b16 %v3872
    %v4291 = vunpack.c.h.b16 %v3872
    %v4292 = vunpack.c.l.b16 %v3873
    %v4293 = vunpack.c.h.b16 %v3873
    %v4294 = vunpack.c.l.b16 %v3874
    %v4295 = vunpack.c.h.b16 %v3874
    %v4296 = vunpack.c.l.b16 %v3875
    %v4297 = vunpack.c.h.b16 %v3875
    %v4298 = vunpack.c.l.b16 %v3876
    %v4299 = vunpack.c.h.b16 %v3876
    %v4300 = vunpack.c.l.b16 %v3877
    %v4301 = vunpack.c.h.b16 %v3877
    %v4302 = vunpack.c.l.b16 %v3878
    %v4303 = vunpack.c.h.b16 %v3878
    %v4304 = vunpack.c.l.b16 %v3879
    %v4305 = vunpack.c.h.b16 %v3879
    %v4306 = vunpack.c.l.b16 %v3880
    %v4307 = vunpack.c.h.b16 %v3880
    %v4308 = vunpack.c.l.b16 %v3881
    %v4309 = vunpack.c.h.b16 %v3881
    %v4310 = vunpack.c.l.b16 %v3882
    %v4311 = vunpack.c.h.b16 %v3882
    %v4312 = vunpack.c.l.b16 %v3883
    %v4313 = vunpack.c.h.b16 %v3883
    %v4314 = vunpack.c.l.b16 %v3884
    %v4315 = vunpack.c.h.b16 %v3884
    %v4316 = vunpack.c.l.b16 %v3885
    %v4317 = vunpack.c.h.b16 %v3885
    %v4318 = vunpack.c.l.b16 %v3886
    %v4319 = vunpack.c.h.b16 %v3886
    %v4320 = vunpack.c.l.b16 %v3887
    %v4321 = vunpack.c.h.b16 %v3887
    %v4322 = vunpack.c.l.b16 %v3888
    %v4323 = vunpack.c.h.b16 %v3888
    %v4324 = vunpack.c.l.b16 %v3889
    %v4325 = vunpack.c.h.b16 %v3889
    %v4326 = vunpack.c.l.b16 %v3890
    %v4327 = vunpack.c.h.b16 %v3890
    %v4328 = vunpack.c.l.b16 %v3891
    %v4329 = vunpack.c.h.b16 %v3891
    %v4330 = vunpack.c.l.b16 %v3892
    %v4331 = vunpack.c.h.b16 %v3892
    %v4332 = vunpack.c.l.b16 %v3893
    %v4333 = vunpack.c.h.b16 %v3893
    %v4334 = vunpack.c.l.b16 %v3894
    %v4335 = vunpack.c.h.b16 %v3894
    %v4336 = vunpack.c.l.b16 %v3895
    %v4337 = vunpack.c.h.b16 %v3895
    %v4338 = vunpack.c.l.b16 %v3896
    %v4339 = vunpack.c.h.b16 %v3896
    %v4340 = vunpack.c.l.b16 %v3897
    %v4341 = vunpack.c.h.b16 %v3897
    %v4342 = vunpack.c.l.b16 %v3898
    %v4343 = vunpack.c.h.b16 %v3898
    %v4344 = vunpack.c.l.b16 %v3899
    %v4345 = vunpack.c.h.b16 %v3899
    %v4346 = vunpack.c.l.b16 %v3900
    %v4347 = vunpack.c.h.b16 %v3900
    %v4348 = vunpack.c.l.b16 %v3901
    %v4349 = vunpack.c.h.b16 %v3901
    %v4350 = vunpack.c.l.b16 %v3902
    %v4351 = vunpack.c.h.b16 %v3902
    %v4352 = vunpack.c.l.b16 %v3903
    %v4353 = vunpack.c.h.b16 %v3903
    %v4354 = vunpack.c.l.b16 %v3904
    %v4355 = vunpack.c.h.b16 %v3904
    %v4356 = vunpack.c.l.b16 %v3905
    %v4357 = vunpack.c.h.b16 %v3905
    %v4358 = vunpack.c.l.b16 %v3906
    %v4359 = vunpack.c.h.b16 %v3906
    %v4360 = vunpack.c.l.b16 %v3907
    %v4361 = vunpack.c.h.b16 %v3907
    %v4362 = vunpack.c.l.b16 %v3908
    %v4363 = vunpack.c.h.b16 %v3908
    %v4364 = vunpack.c.l.b16 %v3909
    %v4365 = vunpack.c.h.b16 %v3909
    %v4366 = vunpack.c.l.b16 %v3910
    %v4367 = vunpack.c.h.b16 %v3910
    %v4368 = vunpack.c.l.b16 %v3911
    %v4369 = vunpack.c.h.b16 %v3911
    %v4370 = vunpack.c.l.b16 %v3912
    %v4371 = vunpack.c.h.b16 %v3912
    %v4372 = vunpack.c.l.b16 %v3913
    %v4373 = vunpack.c.h.b16 %v3913
    %v4374 = vunpack.c.l.b16 %v3914
    %v4375 = vunpack.c.h.b16 %v3914
    %v4376 = vunpack.c.l.b16 %v3915
    %v4377 = vunpack.c.h.b16 %v3915
    %v4378 = vunpack.c.l.b16 %v3916
    %v4379 = vunpack.c.h.b16 %v3916
    %v4380 = vunpack.c.l.b16 %v3917
    %v4381 = vunpack.c.h.b16 %v3917
    %v4382 = vunpack.c.l.b16 %v3918
    %v4383 = vunpack.c.h.b16 %v3918
    %v4384 = vunpack.c.l.b16 %v3919
    %v4385 = vunpack.c.h.b16 %v3919
    %v4386 = vunpack.c.l.b16 %v3920
    %v4387 = vunpack.c.h.b16 %v3920
    %v4388 = vunpack.c.l.b16 %v3921
    %v4389 = vunpack.c.h.b16 %v3921
    %v4390 = vunpack.c.l.b16 %v3922
    %v4391 = vunpack.c.h.b16 %v3922
    %v4392 = vunpack.c.l.b16 %v3923
    %v4393 = vunpack.c.h.b16 %v3923
    %v4394 = vunpack.c.l.b16 %v3924
    %v4395 = vunpack.c.h.b16 %v3924
    %v4396 = vunpack.c.l.b16 %v3925
    %v4397 = vunpack.c.h.b16 %v3925
    %v4398 = vunpack.c.l.b16 %v3926
    %v4399 = vunpack.c.h.b16 %v3926
    %v4400 = vunpack.c.l.b16 %v3927
    %v4401 = vunpack.c.h.b16 %v3927
    %v4402 = vunpack.c.l.b16 %v3928
    %v4403 = vunpack.c.h.b16 %v3928
    %v4404 = vunpack.c.l.b16 %v3929
    %v4405 = vunpack.c.h.b16 %v3929
    %v4406 = vunpack.c.l.b16 %v3930
    %v4407 = vunpack.c.h.b16 %v3930
    %v4408 = vunpack.c.l.b16 %v3931
    %v4409 = vunpack.c.h.b16 %v3931
    %v4410 = vunpack.c.l.b16 %v3932
    %v4411 = vunpack.c.h.b16 %v3932
    %v4412 = vunpack.c.l.b16 %v3933
    %v4413 = vunpack.c.h.b16 %v3933
    %v4414 = vunpack.c.l.b16 %v3934
    %v4415 = vunpack.c.h.b16 %v3934
    %v4416 = vunpack.c.l.b16 %v3935
    %v4417 = vunpack.c.h.b16 %v3935
    %v4418 = vunpack.c.l.b16 %v3936
    %v4419 = vunpack.c.h.b16 %v3936
    %v4420 = vunpack.c.l.b16 %v3937
    %v4421 = vunpack.c.h.b16 %v3937
    %v4422 = vunpack.c.l.b16 %v3938
    %v4423 = vunpack.c.h.b16 %v3938
    %v4424 = vunpack.c.l.b16 %v3939
    %v4425 = vunpack.c.h.b16 %v3939
    %v4426 = vunpack.c.l.b16 %v3940
    %v4427 = vunpack.c.h.b16 %v3940
    %v4428 = vunpack.c.l.b16 %v3941
    %v4429 = vunpack.c.h.b16 %v3941
    %v4430 = vunpack.c.l.b16 %v3942
    %v4431 = vunpack.c.h.b16 %v3942
    %v4432 = vunpack.c.l.b16 %v3943
    %v4433 = vunpack.c.h.b16 %v3943
    %v4434 = vunpack.c.l.b16 %v3944
    %v4435 = vunpack.c.h.b16 %v3944
    %v4436 = vunpack.c.l.b16 %v3945
    %v4437 = vunpack.c.h.b16 %v3945
    %v4438 = vunpack.c.l.b16 %v3946
    %v4439 = vunpack.c.h.b16 %v3946
    %v4440 = vunpack.c.l.b16 %v3947
    %v4441 = vunpack.c.h.b16 %v3947
    %v4442 = vunpack.c.l.b16 %v3948
    %v4443 = vunpack.c.h.b16 %v3948
    %v4444 = vunpack.c.l.b16 %v3949
    %v4445 = vunpack.c.h.b16 %v3949
    %v4446 = vunpack.c.l.b16 %v3950
    %v4447 = vunpack.c.h.b16 %v3950
    %v4448 = vunpack.c.l.b16 %v3951
    %v4449 = vunpack.c.h.b16 %v3951
    %v4450 = vunpack.c.l.b16 %v3952
    %v4451 = vunpack.c.h.b16 %v3952
    %v4452 = vunpack.c.l.b16 %v3953
    %v4453 = vunpack.c.h.b16 %v3953
    %v4454 = vunpack.c.l.b16 %v3954
    %v4455 = vunpack.c.h.b16 %v3954
    %v4456 = vunpack.c.l.b16 %v3955
    %v4457 = vunpack.c.h.b16 %v3955
    %v4458 = vunpack.c.l.b16 %v3956
    %v4459 = vunpack.c.h.b16 %v3956
    %v4460 = vunpack.c.l.b16 %v3957
    %v4461 = vunpack.c.h.b16 %v3957
    %v4462 = vunpack.c.l.b16 %v3958
    %v4463 = vunpack.c.h.b16 %v3958
    %v4464 = vunpack.c.l.b16 %v3959
    %v4465 = vunpack.c.h.b16 %v3959
    %v4466 = vunpack.c.l.b16 %v3960
    %v4467 = vunpack.c.h.b16 %v3960
    %v4468 = vunpack.c.l.b16 %v3961
    %v4469 = vunpack.c.h.b16 %v3961
    %v4470 = vunpack.c.l.b16 %v3962
    %v4471 = vunpack.c.h.b16 %v3962
    %v4472 = vunpack.c.l.b16 %v3963
    %v4473 = vunpack.c.h.b16 %v3963
    %v4474 = vunpack.c.l.b16 %v3964
    %v4475 = vunpack.c.h.b16 %v3964
    %v4476 = vunpack.c.l.b16 %v3965
    %v4477 = vunpack.c.h.b16 %v3965
    %v4478 = vunpack.c.l.b16 %v3966
    %v4479 = vunpack.c.h.b16 %v3966
    %v4480 = vunpack.c.l.b16 %v3967
    %v4481 = vunpack.c.h.b16 %v3967
    %v4482 = vunpack.c.l.b16 %v3968
    %v4483 = vunpack.c.h.b16 %v3968
    %v4484 = vunpack.c.l.b16 %v3969
    %v4485 = vunpack.c.h.b16 %v3969
    %v4486 = vunpack.c.l.b16 %v3970
    %v4487 = vunpack.c.h.b16 %v3970
    %v4488 = vunpack.c.l.b16 %v3971
    %v4489 = vunpack.c.h.b16 %v3971
    %v4490 = vunpack.c.l.b16 %v3972
    %v4491 = vunpack.c.h.b16 %v3972
    %v4492 = vunpack.c.l.b16 %v3973
    %v4493 = vunpack.c.h.b16 %v3973
    %v4494 = vunpack.c.l.b16 %v3974
    %v4495 = vunpack.c.h.b16 %v3974
    %v4496 = vunpack.c.l.b16 %v3975
    %v4497 = vunpack.c.h.b16 %v3975
    %v4498 = vunpack.c.l.b16 %v3976
    %v4499 = vunpack.c.h.b16 %v3976
    %v4500 = vunpack.c.l.b16 %v3977
    %v4501 = vunpack.c.h.b16 %v3977
    %v4502 = vunpack.c.l.b16 %v3978
    %v4503 = vunpack.c.h.b16 %v3978
    %v4504 = vunpack.c.l.b16 %v3979
    %v4505 = vunpack.c.h.b16 %v3979
    %v4506 = vunpack.c.l.b16 %v3980
    %v4507 = vunpack.c.h.b16 %v3980
    %v4508 = vunpack.c.l.b16 %v3981
    %v4509 = vunpack.c.h.b16 %v3981
    %v4510 = vunpack.c.l.b16 %v3982
    %v4511 = vunpack.c.h.b16 %v3982
    %v4512 = vunpack.c.l.b16 %v3983
    %v4513 = vunpack.c.h.b16 %v3983
    %v4514 = vunpack.c.l.b16 %v3984
    %v4515 = vunpack.c.h.b16 %v3984
    %v4516 = vunpack.c.l.b16 %v3985
    %v4517 = vunpack.c.h.b16 %v3985
    %v4518 = vunpack.c.l.b16 %v3986
    %v4519 = vunpack.c.h.b16 %v3986
    %v4520 = vunpack.c.l.b16 %v3987
    %v4521 = vunpack.c.h.b16 %v3987
    %v4522 = vunpack.c.l.b16 %v3988
    %v4523 = vunpack.c.h.b16 %v3988
    %v4524 = vunpack.c.l.b16 %v3989
    %v4525 = vunpack.c.h.b16 %v3989
    %v4526 = vunpack.c.l.b16 %v3990
    %v4527 = vunpack.c.h.b16 %v3990
    %v4528 = vunpack.c.l.b16 %v3991
    %v4529 = vunpack.c.h.b16 %v3991
    %v4530 = vunpack.c.l.b16 %v3992
    %v4531 = vunpack.c.h.b16 %v3992
    %v4532 = vunpack.c.l.b16 %v3993
    %v4533 = vunpack.c.h.b16 %v3993
    %v4534 = vunpack.c.l.b16 %v3994
    %v4535 = vunpack.c.h.b16 %v3994
    %v4536 = vunpack.c.l.b16 %v3995
    %v4537 = vunpack.c.h.b16 %v3995
    %v4538 = vunpack.c.l.b16 %v3996
    %v4539 = vunpack.c.h.b16 %v3996
    %v4540 = vunpack.c.l.b16 %v3997
    %v4541 = vunpack.c.h.b16 %v3997
    %v4542 = vunpack.c.l.b16 %v3998
    %v4543 = vunpack.c.h.b16 %v3998
    %v4544 = vunpack.c.l.b16 %v3999
    %v4545 = vunpack.c.h.b16 %v3999
    %v4546 = vunpack.c.l.b16 %v4000
    %v4547 = vunpack.c.h.b16 %v4000
    %v4548 = vunpack.c.l.b16 %v4001
    %v4549 = vunpack.c.h.b16 %v4001
    %v4550 = vunpack.c.l.b16 %v4002
    %v4551 = vunpack.c.h.b16 %v4002
    %v4552 = vunpack.c.l.b16 %v4003
    %v4553 = vunpack.c.h.b16 %v4003
    %v4554 = vunpack.c.l.b16 %v4004
    %v4555 = vunpack.c.h.b16 %v4004
    %v4556 = vunpack.c.l.b16 %v4005
    %v4557 = vunpack.c.h.b16 %v4005
    %v4558 = vunpack.c.l.b16 %v4006
    %v4559 = vunpack.c.h.b16 %v4006
    %v4560 = vunpack.c.l.b16 %v4007
    %v4561 = vunpack.c.h.b16 %v4007
    %v4562 = vunpack.c.l.b16 %v4008
    %v4563 = vunpack.c.h.b16 %v4008
    %v4564 = vunpack.c.l.b16 %v4009
    %v4565 = vunpack.c.h.b16 %v4009
    %v4566 = vunpack.c.l.b16 %v4010
    %v4567 = vunpack.c.h.b16 %v4010
    %v4568 = vunpack.c.l.b16 %v4011
    %v4569 = vunpack.c.h.b16 %v4011
    %v4570 = vunpack.c.l.b16 %v4012
    %v4571 = vunpack.c.h.b16 %v4012
    %v4572 = vunpack.c.l.b16 %v4013
    %v4573 = vunpack.c.h.b16 %v4013
    %v4574 = vunpack.c.l.b16 %v4014
    %v4575 = vunpack.c.h.b16 %v4014
    %v4576 = vunpack.c.l.b16 %v4015
    %v4577 = vunpack.c.h.b16 %v4015
    %v4578 = vunpack.c.l.b16 %v4016
    %v4579 = vunpack.c.h.b16 %v4016
    %v4580 = vunpack.c.l.b16 %v4017
    %v4581 = vunpack.c.h.b16 %v4017
    %v4582 = vunpack.c.l.b16 %v4018
    %v4583 = vunpack.c.h.b16 %v4018
    %v4584 = vunpack.c.l.b16 %v4019
    %v4585 = vunpack.c.h.b16 %v4019
    %v4586 = vunpack.c.l.b16 %v4020
    %v4587 = vunpack.c.h.b16 %v4020
    %v4588 = vunpack.c.l.b16 %v4021
    %v4589 = vunpack.c.h.b16 %v4021
    %v4590 = vunpack.c.l.b16 %v4022
    %v4591 = vunpack.c.h.b16 %v4022
    %v4592 = vunpack.c.l.b16 %v4023
    %v4593 = vunpack.c.h.b16 %v4023
    %v4594 = vunpack.c.l.b16 %v4024
    %v4595 = vunpack.c.h.b16 %v4024
    %v4596 = vunpack.c.l.b16 %v4025
    %v4597 = vunpack.c.h.b16 %v4025
    %v4598 = vunpack.c.l.b16 %v4026
    %v4599 = vunpack.c.h.b16 %v4026
    %v4600 = vunpack.c.l.b16 %v4027
    %v4601 = vunpack.c.h.b16 %v4027
    %v4602 = vunpack.c.l.b16 %v4028
    %v4603 = vunpack.c.h.b16 %v4028
    %v4604 = vunpack.c.l.b16 %v4029
    %v4605 = vunpack.c.h.b16 %v4029
    %v4606 = vunpack.c.l.b16 %v4030
    %v4607 = vunpack.c.h.b16 %v4030
    %v4608 = vunpack.c.l.b16 %v4031
    %v4609 = vunpack.c.h.b16 %v4031
    %v4610 = vunpack.c.l.b16 %v4032
    %v4611 = vunpack.c.h.b16 %v4032
    %v4612 = vunpack.c.l.b16 %v4033
    %v4613 = vunpack.c.h.b16 %v4033
    %v4614 = vunpack.c.l.b16 %v4034
    %v4615 = vunpack.c.h.b16 %v4034
    %v4616 = vunpack.c.l.b16 %v4035
    %v4617 = vunpack.c.h.b16 %v4035
    %v4618 = vunpack.c.l.b16 %v4036
    %v4619 = vunpack.c.h.b16 %v4036
    %v4620 = vunpack.c.l.b16 %v4037
    %v4621 = vunpack.c.h.b16 %v4037
    %v4622 = vunpack.c.l.b16 %v4038
    %v4623 = vunpack.c.h.b16 %v4038
    %v4624 = vunpack.c.l.b16 %v4039
    %v4625 = vunpack.c.h.b16 %v4039
    %v4626 = vunpack.c.l.b16 %v4040
    %v4627 = vunpack.c.h.b16 %v4040
    %v4628 = vunpack.c.l.b16 %v4041
    %v4629 = vunpack.c.h.b16 %v4041
    %v4630 = vunpack.c.l.b16 %v4042
    %v4631 = vunpack.c.h.b16 %v4042
    %v4632 = vunpack.c.l.b16 %v4043
    %v4633 = vunpack.c.h.b16 %v4043
    %v4634 = vunpack.c.l.b16 %v4044
    %v4635 = vunpack.c.h.b16 %v4044
    %v4636 = vunpack.c.l.b16 %v4045
    %v4637 = vunpack.c.h.b16 %v4045
    %v4638 = vunpack.c.l.b16 %v4046
    %v4639 = vunpack.c.h.b16 %v4046
    %v4640 = vunpack.c.l.b16 %v4047
    %v4641 = vunpack.c.h.b16 %v4047
    %v4642 = vunpack.c.l.b16 %v4048
    %v4643 = vunpack.c.h.b16 %v4048
    %v4644 = vunpack.c.l.b16 %v4049
    %v4645 = vunpack.c.h.b16 %v4049
    %v4646 = vunpack.c.l.b16 %v4050
    %v4647 = vunpack.c.h.b16 %v4050
    %v4648 = vunpack.c.l.b16 %v4051
    %v4649 = vunpack.c.h.b16 %v4051
    %v4650 = vpack.c.b16 %v4270, %v4266
    %v4651 = vpack.c.b16 %v4271, %v4267
    %v4652 = vpack.c.b16 %v4272, %v4268
    %v4653 = vpack.c.b16 %v4273, %v4269
    %v4654 = vpack.c.b16 %v4278, %v4274
    %v4655 = vpack.c.b16 %v4279, %v4275
    %v4656 = vpack.c.b16 %v4280, %v4276
    %v4657 = vpack.c.b16 %v4281, %v4277
    %v4658 = vpack.c.b16 %v4286, %v4282
    %v4659 = vpack.c.b16 %v4287, %v4283
    %v4660 = vpack.c.b16 %v4288, %v4284
    %v4661 = vpack.c.b16 %v4289, %v4285
    %v4662 = vpack.c.b16 %v4294, %v4290
    %v4663 = vpack.c.b16 %v4295, %v4291
    %v4664 = vpack.c.b16 %v4296, %v4292
    %v4665 = vpack.c.b16 %v4297, %v4293
    %v4666 = vpack.c.b16 %v4302, %v4298
    %v4667 = vpack.c.b16 %v4303, %v4299
    %v4668 = vpack.c.b16 %v4304, %v4300
    %v4669 = vpack.c.b16 %v4305, %v4301
    %v4670 = vpack.c.b16 %v4310, %v4306
    %v4671 = vpack.c.b16 %v4311, %v4307
    %v4672 = vpack.c.b16 %v4312, %v4308
    %v4673 = vpack.c.b16 %v4313, %v4309
    %v4674 = vpack.c.b16 %v4318, %v4314
    %v4675 = vpack.c.b16 %v4319, %v4315
    %v4676 = vpack.c.b16 %v4320, %v4316
    %v4677 = vpack.c.b16 %v4321, %v4317
    %v4678 = vpack.c.b16 %v4326, %v4322
    %v4679 = vpack.c.b16 %v4327, %v4323
    %v4680 = vpack.c.b16 %v4328, %v4324
    %v4681 = vpack.c.b16 %v4329, %v4325
    %v4682 = vpack.c.b16 %v4334, %v4330
    %v4683 = vpack.c.b16 %v4335, %v4331
    %v4684 = vpack.c.b16 %v4336, %v4332
    %v4685 = vpack.c.b16 %v4337, %v4333
    %v4686 = vpack.c.b16 %v4342, %v4338
    %v4687 = vpack.c.b16 %v4343, %v4339
    %v4688 = vpack.c.b16 %v4344, %v4340
    %v4689 = vpack.c.b16 %v4345, %v4341
    %v4690 = vpack.c.b16 %v4350, %v4346
    %v4691 = vpack.c.b16 %v4351, %v4347
    %v4692 = vpack.c.b16 %v4352, %v4348
    %v4693 = vpack.c.b16 %v4353, %v4349
    %v4694 = vpack.c.b16 %v4358, %v4354
    %v4695 = vpack.c.b16 %v4359, %v4355
    %v4696 = vpack.c.b16 %v4360, %v4356
    %v4697 = vpack.c.b16 %v4361, %v4357
    %v4698 = vpack.c.b16 %v4366, %v4362
    %v4699 = vpack.c.b16 %v4367, %v4363
    %v4700 = vpack.c.b16 %v4368, %v4364
    %v4701 = vpack.c.b16 %v4369, %v4365
    %v4702 = vpack.c.b16 %v4374, %v4370
    %v4703 = vpack.c.b16 %v4375, %v4371
    %v4704 = vpack.c.b16 %v4376, %v4372
    %v4705 = vpack.c.b16 %v4377, %v4373
    %v4706 = vpack.c.b16 %v4382, %v4378
    %v4707 = vpack.c.b16 %v4383, %v4379
    %v4708 = vpack.c.b16 %v4384, %v4380
    %v4709 = vpack.c.b16 %v4385, %v4381
    %v4710 = vpack.c.b16 %v4390, %v4386
    %v4711 = vpack.c.b16 %v4391, %v4387
    %v4712 = vpack.c.b16 %v4392, %v4388
    %v4713 = vpack.c.b16 %v4393, %v4389
    %v4714 = vpack.c.b16 %v4398, %v4394
    %v4715 = vpack.c.b16 %v4399, %v4395
    %v4716 = vpack.c.b16 %v4400, %v4396
    %v4717 = vpack.c.b16 %v4401, %v4397
    %v4718 = vpack.c.b16 %v4406, %v4402
    %v4719 = vpack.c.b16 %v4407, %v4403
    %v4720 = vpack.c.b16 %v4408, %v4404
    %v4721 = vpack.c.b16 %v4409, %v4405
    %v4722 = vpack.c.b16 %v4414, %v4410
    %v4723 = vpack.c.b16 %v4415, %v4411
    %v4724 = vpack.c.b16 %v4416, %v4412
    %v4725 = vpack.c.b16 %v4417, %v4413
    %v4726 = vpack.c.b16 %v4422, %v4418
    %v4727 = vpack.c.b16 %v4423, %v4419
    %v4728 = vpack.c.b16 %v4424, %v4420
    %v4729 = vpack.c.b16 %v4425, %v4421
    %v4730 = vpack.c.b16 %v4430, %v4426
    %v4731 = vpack.c.b16 %v4431, %v4427
    %v4732 = vpack.c.b16 %v4432, %v4428
    %v4733 = vpack.c.b16 %v4433, %v4429
    %v4734 = vpack.c.b16 %v4438, %v4434
    %v4735 = vpack.c.b16 %v4439, %v4435
    %v4736 = vpack.c.b16 %v4440, %v4436
    %v4737 = vpack.c.b16 %v4441, %v4437
    %v4738 = vpack.c.b16 %v4446, %v4442
    %v4739 = vpack.c.b16 %v4447, %v4443
    %v4740 = vpack.c.b16 %v4448, %v4444
    %v4741 = vpack.c.b16 %v4449, %v4445
    %v4742 = vpack.c.b16 %v4454, %v4450
    %v4743 = vpack.c.b16 %v4455, %v4451
    %v4744 = vpack.c.b16 %v4456, %v4452
    %v4745 = vpack.c.b16 %v4457, %v4453
    %v4746 = vpack.c.b16 %v4462, %v4458
    %v4747 = vpack.c.b16 %v4463, %v4459
    %v4748 = vpack.c.b16 %v4464, %v4460
    %v4749 = vpack.c.b16 %v4465, %v4461
    %v4750 = vpack.c.b16 %v4470, %v4466
    %v4751 = vpack.c.b16 %v4471, %v4467
    %v4752 = vpack.c.b16 %v4472, %v4468
    %v4753 = vpack.c.b16 %v4473, %v4469
    %v4754 = vpack.c.b16 %v4478, %v4474
    %v4755 = vpack.c.b16 %v4479, %v4475
    %v4756 = vpack.c.b16 %v4480, %v4476
    %v4757 = vpack.c.b16 %v4481, %v4477
    %v4758 = vpack.c.b16 %v4486, %v4482
    %v4759 = vpack.c.b16 %v4487, %v4483
    %v4760 = vpack.c.b16 %v4488, %v4484
    %v4761 = vpack.c.b16 %v4489, %v4485
    %v4762 = vpack.c.b16 %v4494, %v4490
    %v4763 = vpack.c.b16 %v4495, %v4491
    %v4764 = vpack.c.b16 %v4496, %v4492
    %v4765 = vpack.c.b16 %v4497, %v4493
    %v4766 = vpack.c.b16 %v4502, %v4498
    %v4767 = vpack.c.b16 %v4503, %v4499
    %v4768 = vpack.c.b16 %v4504, %v4500
    %v4769 = vpack.c.b16 %v4505, %v4501
    %v4770 = vpack.c.b16 %v4510, %v4506
    %v4771 = vpack.c.b16 %v4511, %v4507
    %v4772 = vpack.c.b16 %v4512, %v4508
    %v4773 = vpack.c.b16 %v4513, %v4509
    %v4774 = vpack.c.b16 %v4518, %v4514
    %v4775 = vpack.c.b16 %v4519, %v4515
    %v4776 = vpack.c.b16 %v4520, %v4516
    %v4777 = vpack.c.b16 %v4521, %v4517
    %v4778 = vpack.c.b16 %v4526, %v4522
    %v4779 = vpack.c.b16 %v4527, %v4523
    %v4780 = vpack.c.b16 %v4528, %v4524
    %v4781 = vpack.c.b16 %v4529, %v4525
    %v4782 = vpack.c.b16 %v4534, %v4530
    %v4783 = vpack.c.b16 %v4535, %v4531
    %v4784 = vpack.c.b16 %v4536, %v4532
    %v4785 = vpack.c.b16 %v4537, %v4533
    %v4786 = vpack.c.b16 %v4542, %v4538
    %v4787 = vpack.c.b16 %v4543, %v4539
    %v4788 = vpack.c.b16 %v4544, %v4540
    %v4789 = vpack.c.b16 %v4545, %v4541
    %v4790 = vpack.c.b16 %v4550, %v4546
    %v4791 = vpack.c.b16 %v4551, %v4547
    %v4792 = vpack.c.b16 %v4552, %v4548
    %v4793 = vpack.c.b16 %v4553, %v4549
    %v4794 = vpack.c.b16 %v4558, %v4554
    %v4795 = vpack.c.b16 %v4559, %v4555
    %v4796 = vpack.c.b16 %v4560, %v4556
    %v4797 = vpack.c.b16 %v4561, %v4557
    %v4798 = vpack.c.b16 %v4566, %v4562
    %v4799 = vpack.c.b16 %v4567, %v4563
    %v4800 = vpack.c.b16 %v4568, %v4564
    %v4801 = vpack.c.b16 %v4569, %v4565
    %v4802 = vpack.c.b16 %v4574, %v4570
    %v4803 = vpack.c.b16 %v4575, %v4571
    %v4804 = vpack.c.b16 %v4576, %v4572
    %v4805 = vpack.c.b16 %v4577, %v4573
    %v4806 = vpack.c.b16 %v4582, %v4578
    %v4807 = vpack.c.b16 %v4583, %v4579
    %v4808 = vpack.c.b16 %v4584, %v4580
    %v4809 = vpack.c.b16 %v4585, %v4581
    %v4810 = vpack.c.b16 %v4590, %v4586
    %v4811 = vpack.c.b16 %v4591, %v4587
    %v4812 = vpack.c.b16 %v4592, %v4588
    %v4813 = vpack.c.b16 %v4593, %v4589
    %v4814 = vpack.c.b16 %v4598, %v4594
    %v4815 = vpack.c.b16 %v4599, %v4595
    %v4816 = vpack.c.b16 %v4600, %v4596
    %v4817 = vpack.c.b16 %v4601, %v4597
    %v4818 = vpack.c.b16 %v4606, %v4602
    %v4819 = vpack.c.b16 %v4607, %v4603
    %v4820 = vpack.c.b16 %v4608, %v4604
    %v4821 = vpack.c.b16 %v4609, %v4605
    %v4822 = vpack.c.b16 %v4614, %v4610
    %v4823 = vpack.c.b16 %v4615, %v4611
    %v4824 = vpack.c.b16 %v4616, %v4612
    %v4825 = vpack.c.b16 %v4617, %v4613
    %v4826 = vpack.c.b16 %v4622, %v4618
    %v4827 = vpack.c.b16 %v4623, %v4619
    %v4828 = vpack.c.b16 %v4624, %v4620
    %v4829 = vpack.c.b16 %v4625, %v4621
    %v4830 = vpack.c.b16 %v4630, %v4626
    %v4831 = vpack.c.b16 %v4631, %v4627
    %v4832 = vpack.c.b16 %v4632, %v4628
    %v4833 = vpack.c.b16 %v4633, %v4629
    %v4834 = vpack.c.b16 %v4638, %v4634
    %v4835 = vpack.c.b16 %v4639, %v4635
    %v4836 = vpack.c.b16 %v4640, %v4636
    %v4837 = vpack.c.b16 %v4641, %v4637
    %v4838 = vpack.c.b16 %v4646, %v4642
    %v4839 = vpack.c.b16 %v4647, %v4643
    %v4840 = vpack.c.b16 %v4648, %v4644
    %v4841 = vpack.c.b16 %v4649, %v4645
    %5034 = vmatprep.subr.bf16.mxu0 %v4651
    %5035 = vmatpush1.bf16.msra.mxu0 %v4650
    %5036 = vmatprep.subr.bf16.mxu0 %v4655
    %5037 = vmatpush1.bf16.msra.mxu0 %v4654
    %5038 = vmatprep.subr.bf16.mxu0 %v4659
    %5039 = vmatpush1.bf16.msra.mxu0 %v4658
    %5040 = vmatprep.subr.bf16.mxu0 %v4663
    %5041 = vmatpush1.bf16.msra.mxu0 %v4662
    %5042 = vmatprep.subr.bf16.mxu0 %v4667
    %5043 = vmatpush1.bf16.msra.mxu0 %v4666
    %5044 = vmatprep.subr.bf16.mxu0 %v4671
    %5045 = vmatpush1.bf16.msra.mxu0 %v4670
    %5046 = vmatprep.subr.bf16.mxu0 %v4675
    %5047 = vmatpush1.bf16.msra.mxu0 %v4674
    %5048 = vmatprep.subr.bf16.mxu0 %v4679
    %5049 = vmatpush1.bf16.msra.mxu0 %v4678
    %5050 = vmatprep.subr.bf16.mxu0 %v4683
    %5051 = vmatpush1.bf16.msra.mxu0 %v4682
    %5052 = vmatprep.subr.bf16.mxu0 %v4687
    %5053 = vmatpush1.bf16.msra.mxu0 %v4686
    %5054 = vmatprep.subr.bf16.mxu0 %v4691
    %5055 = vmatpush1.bf16.msra.mxu0 %v4690
    %5056 = vmatprep.subr.bf16.mxu0 %v4695
    %5057 = vmatpush1.bf16.msra.mxu0 %v4694
    %5058 = vmatprep.subr.bf16.mxu0 %v4699
    %5059 = vmatpush1.bf16.msra.mxu0 %v4698
    %5060 = vmatprep.subr.bf16.mxu0 %v4703
    %5061 = vmatpush1.bf16.msra.mxu0 %v4702
    %5062 = vmatprep.subr.bf16.mxu0 %v4707
    %5063 = vmatpush1.bf16.msra.mxu0 %v4706
    %5064 = vmatprep.subr.bf16.mxu0 %v4711
    %5065 = vmatpush1.bf16.msra.mxu0 %v4710
    %5066 = vmatprep.mubr.bf16.mxu0 %v3855
    %5067 = vmatmul.mubr.bf16.gmra.mrb[0].mxu0 %v3854
    %v5068 = vpop.f32.mrb[0].mxu0
    %v5069 = vadd.f32 %v4057, %v5068
    %v5070 = vpop.f32.mrb[0].mxu0
    %v5071 = vadd.f32 %v4061, %v5070
    %v5072 = vpop.f32.mrb[0].mxu0
    %v5073 = vpop.f32.mrb[0].mxu0
    %5074 = vdwg.mxu0
    %5075 = vmatprep.subr.bf16.mxu0 %v4715
    %5076 = vmatpush1.bf16.msra.mxu0 %v4714
    %5077 = vmatprep.subr.bf16.mxu0 %v4719
    %5078 = vmatpush1.bf16.msra.mxu0 %v4718
    %5079 = vmatprep.subr.bf16.mxu0 %v4723
    %5080 = vmatpush1.bf16.msra.mxu0 %v4722
    %5081 = vmatprep.subr.bf16.mxu0 %v4727
    %5082 = vmatpush1.bf16.msra.mxu0 %v4726
    %5083 = vmatprep.subr.bf16.mxu0 %v4731
    %5084 = vmatpush1.bf16.msra.mxu0 %v4730
    %5085 = vmatprep.subr.bf16.mxu0 %v4735
    %5086 = vmatpush1.bf16.msra.mxu0 %v4734
    %5087 = vmatprep.subr.bf16.mxu0 %v4739
    %5088 = vmatpush1.bf16.msra.mxu0 %v4738
    %5089 = vmatprep.subr.bf16.mxu0 %v4743
    %5090 = vmatpush1.bf16.msra.mxu0 %v4742
    %5091 = vmatprep.subr.bf16.mxu0 %v4747
    %5092 = vmatpush1.bf16.msra.mxu0 %v4746
    %5093 = vmatprep.subr.bf16.mxu0 %v4751
    %5094 = vmatpush1.bf16.msra.mxu0 %v4750
    %5095 = vmatprep.subr.bf16.mxu0 %v4755
    %5096 = vmatpush1.bf16.msra.mxu0 %v4754
    %5097 = vmatprep.subr.bf16.mxu0 %v4759
    %5098 = vmatpush1.bf16.msra.mxu0 %v4758
    %5099 = vmatprep.subr.bf16.mxu0 %v4763
    %5100 = vmatpush1.bf16.msra.mxu0 %v4762
    %5101 = vmatprep.subr.bf16.mxu0 %v4767
    %5102 = vmatpush1.bf16.msra.mxu0 %v4766
    %5103 = vmatprep.subr.bf16.mxu0 %v4771
    %5104 = vmatpush1.bf16.msra.mxu0 %v4770
    %5105 = vmatprep.subr.bf16.mxu0 %v4775
    %5106 = vmatpush1.bf16.msra.mxu0 %v4774
    %5107 = vmatprep.mubr.bf16.mxu0 %v3857
    %5108 = vmatmul.mubr.bf16.gmra.mrb[0].mxu0 %v3856
    %v5109 = vpop.f32.mrb[0].mxu0
    %v5110 = vadd.f32 %v5069, %v5109
    %v5111 = vpop.f32.mrb[0].mxu0
    %v5112 = vadd.f32 %v5071, %v5111
    %v5113 = vpop.f32.mrb[0].mxu0
    %v5114 = vpop.f32.mrb[0].mxu0
    %5115 = vdwg.mxu0
    %5116 = vmatprep.subr.bf16.mxu0 %v4779
    %5117 = vmatpush1.bf16.msra.mxu0 %v4778
    %5118 = vmatprep.subr.bf16.mxu0 %v4783
    %5119 = vmatpush1.bf16.msra.mxu0 %v4782
    %5120 = vmatprep.subr.bf16.mxu0 %v4787
    %5121 = vmatpush1.bf16.msra.mxu0 %v4786
    %5122 = vmatprep.subr.bf16.mxu0 %v4791
    %5123 = vmatpush1.bf16.msra.mxu0 %v4790
    %5124 = vmatprep.subr.bf16.mxu0 %v4795
    %5125 = vmatpush1.bf16.msra.mxu0 %v4794
    %5126 = vmatprep.subr.bf16.mxu0 %v4799
    %5127 = vmatpush1.bf16.msra.mxu0 %v4798
    %5128 = vmatprep.subr.bf16.mxu0 %v4803
    %5129 = vmatpush1.bf16.msra.mxu0 %v4802
    %5130 = vmatprep.subr.bf16.mxu0 %v4807
    %5131 = vmatpush1.bf16.msra.mxu0 %v4806
    %5132 = vmatprep.subr.bf16.mxu0 %v4811
    %5133 = vmatpush1.bf16.msra.mxu0 %v4810
    %5134 = vmatprep.subr.bf16.mxu0 %v4815
    %5135 = vmatpush1.bf16.msra.mxu0 %v4814
    %5136 = vmatprep.subr.bf16.mxu0 %v4819
    %5137 = vmatpush1.bf16.msra.mxu0 %v4818
    %5138 = vmatprep.subr.bf16.mxu0 %v4823
    %5139 = vmatpush1.bf16.msra.mxu0 %v4822
    %5140 = vmatprep.subr.bf16.mxu0 %v4827
    %5141 = vmatpush1.bf16.msra.mxu0 %v4826
    %5142 = vmatprep.subr.bf16.mxu0 %v4831
    %5143 = vmatpush1.bf16.msra.mxu0 %v4830
    %5144 = vmatprep.subr.bf16.mxu0 %v4835
    %5145 = vmatpush1.bf16.msra.mxu0 %v4834
    %5146 = vmatprep.subr.bf16.mxu0 %v4839
    %5147 = vmatpush1.bf16.msra.mxu0 %v4838
    %5148 = vmatprep.mubr.bf16.mxu0 %v3859
    %5149 = vmatmul.mubr.bf16.gmra.mrb[0].mxu0 %v3858
    %v5150 = vpop.f32.mrb[0].mxu0
    %v5151 = vadd.f32 %v5110, %v5150
    %v5152 = vpop.f32.mrb[0].mxu0
    %v5153 = vadd.f32 %v5112, %v5152
    %v5154 = vpop.f32.mrb[0].mxu0
    %v5155 = vpop.f32.mrb[0].mxu0
    %5156 = vdwg.mxu0
    %5157 = vmatprep.subr.bf16.mxu0 %v4653
    %5158 = vmatpush1.bf16.msra.mxu0 %v4652
    %5159 = vmatprep.subr.bf16.mxu0 %v4657
    %5160 = vmatpush1.bf16.msra.mxu0 %v4656
    %5161 = vmatprep.subr.bf16.mxu0 %v4661
    %5162 = vmatpush1.bf16.msra.mxu0 %v4660
    %5163 = vmatprep.subr.bf16.mxu0 %v4665
    %5164 = vmatpush1.bf16.msra.mxu0 %v4664
    %5165 = vmatprep.subr.bf16.mxu0 %v4669
    %5166 = vmatpush1.bf16.msra.mxu0 %v4668
    %5167 = vmatprep.subr.bf16.mxu0 %v4673
    %5168 = vmatpush1.bf16.msra.mxu0 %v4672
    %5169 = vmatprep.subr.bf16.mxu0 %v4677
    %5170 = vmatpush1.bf16.msra.mxu0 %v4676
    %5171 = vmatprep.subr.bf16.mxu0 %v4681
    %5172 = vmatpush1.bf16.msra.mxu0 %v4680
    %5173 = vmatprep.subr.bf16.mxu0 %v4685
    %5174 = vmatpush1.bf16.msra.mxu0 %v4684
    %5175 = vmatprep.subr.bf16.mxu0 %v4689
    %5176 = vmatpush1.bf16.msra.mxu0 %v4688
    %5177 = vmatprep.subr.bf16.mxu0 %v4693
    %5178 = vmatpush1.bf16.msra.mxu0 %v4692
    %5179 = vmatprep.subr.bf16.mxu0 %v4697
    %5180 = vmatpush1.bf16.msra.mxu0 %v4696
    %5181 = vmatprep.subr.bf16.mxu0 %v4701
    %5182 = vmatpush1.bf16.msra.mxu0 %v4700
    %5183 = vmatprep.subr.bf16.mxu0 %v4705
    %5184 = vmatpush1.bf16.msra.mxu0 %v4704
    %5185 = vmatprep.subr.bf16.mxu0 %v4709
    %5186 = vmatpush1.bf16.msra.mxu0 %v4708
    %5187 = vmatprep.subr.bf16.mxu0 %v4713
    %5188 = vmatpush1.bf16.msra.mxu0 %v4712
    %5189 = vmatprep.mubr.bf16.mxu0 %v3855
    %5190 = vmatmul.mubr.bf16.gmra.mrb[0].mxu0 %v3854
    %v5191 = vpop.f32.mrb[0].mxu0
    %v5192 = vadd.f32 %v4065, %v5191
    %v5193 = vpop.f32.mrb[0].mxu0
    %v5194 = vadd.f32 %v4069, %v5193
    %v5195 = vpop.f32.mrb[0].mxu0
    %v5196 = vpop.f32.mrb[0].mxu0
    %5197 = vdwg.mxu0
    %5198 = vmatprep.subr.bf16.mxu0 %v4717
    %5199 = vmatpush1.bf16.msra.mxu0 %v4716
    %5200 = vmatprep.subr.bf16.mxu0 %v4721
    %5201 = vmatpush1.bf16.msra.mxu0 %v4720
    %5202 = vmatprep.subr.bf16.mxu0 %v4725
    %5203 = vmatpush1.bf16.msra.mxu0 %v4724
    %5204 = vmatprep.subr.bf16.mxu0 %v4729
    %5205 = vmatpush1.bf16.msra.mxu0 %v4728
    %5206 = vmatprep.subr.bf16.mxu0 %v4733
    %5207 = vmatpush1.bf16.msra.mxu0 %v4732
    %5208 = vmatprep.subr.bf16.mxu0 %v4737
    %5209 = vmatpush1.bf16.msra.mxu0 %v4736
    %5210 = vmatprep.subr.bf16.mxu0 %v4741
    %5211 = vmatpush1.bf16.msra.mxu0 %v4740
    %5212 = vmatprep.subr.bf16.mxu0 %v4745
    %5213 = vmatpush1.bf16.msra.mxu0 %v4744
    %5214 = vmatprep.subr.bf16.mxu0 %v4749
    %5215 = vmatpush1.bf16.msra.mxu0 %v4748
    %5216 = vmatprep.subr.bf16.mxu0 %v4753
    %5217 = vmatpush1.bf16.msra.mxu0 %v4752
    %5218 = vmatprep.subr.bf16.mxu0 %v4757
    %5219 = vmatpush1.bf16.msra.mxu0 %v4756
    %5220 = vmatprep.subr.bf16.mxu0 %v4761
    %5221 = vmatpush1.bf16.msra.mxu0 %v4760
    %5222 = vmatprep.subr.bf16.mxu0 %v4765
    %5223 = vmatpush1.bf16.msra.mxu0 %v4764
    %5224 = vmatprep.subr.bf16.mxu0 %v4769
    %5225 = vmatpush1.bf16.msra.mxu0 %v4768
    %5226 = vmatprep.subr.bf16.mxu0 %v4773
    %5227 = vmatpush1.bf16.msra.mxu0 %v4772
    %5228 = vmatprep.subr.bf16.mxu0 %v4777
    %5229 = vmatpush1.bf16.msra.mxu0 %v4776
    %5230 = vmatprep.mubr.bf16.mxu0 %v3857
    %5231 = vmatmul.mubr.bf16.gmra.mrb[0].mxu0 %v3856
    %v5232 = vpop.f32.mrb[0].mxu0
    %v5233 = vadd.f32 %v5192, %v5232
    %v5234 = vpop.f32.mrb[0].mxu0
    %v5235 = vadd.f32 %v5194, %v5234
    %v5236 = vpop.f32.mrb[0].mxu0
    %v5237 = vpop.f32.mrb[0].mxu0
    %5238 = vdwg.mxu0
    %5239 = vmatprep.subr.bf16.mxu0 %v4781
    %5240 = vmatpush1.bf16.msra.mxu0 %v4780
    %5241 = vmatprep.subr.bf16.mxu0 %v4785
    %5242 = vmatpush1.bf16.msra.mxu0 %v4784
    %5243 = vmatprep.subr.bf16.mxu0 %v4789
    %5244 = vmatpush1.bf16.msra.mxu0 %v4788
    %5245 = vmatprep.subr.bf16.mxu0 %v4793
    %5246 = vmatpush1.bf16.msra.mxu0 %v4792
    %5247 = vmatprep.subr.bf16.mxu0 %v4797
    %5248 = vmatpush1.bf16.msra.mxu0 %v4796
    %5249 = vmatprep.subr.bf16.mxu0 %v4801
    %5250 = vmatpush1.bf16.msra.mxu0 %v4800
    %5251 = vmatprep.subr.bf16.mxu0 %v4805
    %5252 = vmatpush1.bf16.msra.mxu0 %v4804
    %5253 = vmatprep.subr.bf16.mxu0 %v4809
    %5254 = vmatpush1.bf16.msra.mxu0 %v4808
    %5255 = vmatprep.subr.bf16.mxu0 %v4813
    %5256 = vmatpush1.bf16.msra.mxu0 %v4812
    %5257 = vmatprep.subr.bf16.mxu0 %v4817
    %5258 = vmatpush1.bf16.msra.mxu0 %v4816
    %5259 = vmatprep.subr.bf16.mxu0 %v4821
    %5260 = vmatpush1.bf16.msra.mxu0 %v4820
    %5261 = vmatprep.subr.bf16.mxu0 %v4825
    %5262 = vmatpush1.bf16.msra.mxu0 %v4824
    %5263 = vmatprep.subr.bf16.mxu0 %v4829
    %5264 = vmatpush1.bf16.msra.mxu0 %v4828
    %5265 = vmatprep.subr.bf16.mxu0 %v4833
    %5266 = vmatpush1.bf16.msra.mxu0 %v4832
    %5267 = vmatprep.subr.bf16.mxu0 %v4837
    %5268 = vmatpush1.bf16.msra.mxu0 %v4836
    %5269 = vmatprep.subr.bf16.mxu0 %v4841
    %5270 = vmatpush1.bf16.msra.mxu0 %v4840
    %5271 = vmatprep.mubr.bf16.mxu0 %v3859
    %5272 = vmatmul.mubr.bf16.gmra.mrb[0].mxu0 %v3858
    %v5273 = vpop.f32.mrb[0].mxu0
    %v5274 = vadd.f32 %v5233, %v5273
    %v5275 = vpop.f32.mrb[0].mxu0
    %v5276 = vadd.f32 %v5235, %v5275
    %v5277 = vpop.f32.mrb[0].mxu0
    %v5278 = vpop.f32.mrb[0].mxu0
    %5279 = vdwg.mxu0
    %5280 = vst [vmem:[%s10] sm:$0xff] %v5151
    %5281 = vst [vmem:[%s10 + $0x8] sm:$0xff] %v5153
    %5282 = vst [vmem:[%s10 + $0x10] sm:$0xff] %v5274
    %5283 = vst [vmem:[%s10 + $0x18] sm:$0xff] %v5276
    %v5284 = vld [vmem:[#allocation4] sm:$0xff]
    %v5285 = vmul.f32 %v5284, 0.0625
    %v5286 = vpack.c.bf16 %v5285, %v5285
    %v5287 = vld [vmem:[%s3] sm:$0xff]
    %v5288 = vld [vmem:[%s3 + $0x8] sm:$0xff]
    %v5289 = vld [vmem:[%s3 + $0x10] sm:$0xff]
    %v5290 = vld [vmem:[%s3 + $0x18] sm:$0xff]
    %v5291 = vld [vmem:[%s3 + $0x20] sm:$0xff]
    %v5292 = vld [vmem:[%s3 + $0x28] sm:$0xff]
    %v5293 = vld [vmem:[%s3 + $0x30] sm:$0xff]
    %v5294 = vld [vmem:[%s3 + $0x38] sm:$0xff]
    %v5295 = vld [vmem:[%s3 + $0x40] sm:$0xff]
    %v5296 = vld [vmem:[%s3 + $0x48] sm:$0xff]
    %v5297 = vld [vmem:[%s3 + $0x50] sm:$0xff]
    %v5298 = vld [vmem:[%s3 + $0x58] sm:$0xff]
    %v5299 = vld [vmem:[%s3 + $0x60] sm:$0xff]
    %v5300 = vld [vmem:[%s3 + $0x68] sm:$0xff]
    %v5301 = vld [vmem:[%s3 + $0x70] sm:$0xff]
    %v5302 = vld [vmem:[%s3 + $0x78] sm:$0xff]
    %v5303 = vld [vmem:[%s3 + $0x80] sm:$0xff]
    %v5304 = vld [vmem:[%s3 + $0x88] sm:$0xff]
    %v5305 = vld [vmem:[%s4] sm:$0x3f]
    %v5307 = vlaneseq
    %v5308 = vshrl.u32 %v5307, 7
    %v5309 = vsub.s32 0, %v5308
    %v5310 = vrot.slane %v5305, %v5309
    %v5311 = vlaneseq
    %v5312 = vshrl.u32 %v5311, 7
    %v5313 = vsub.s32 1, %v5312
    %v5314 = vrot.slane %v5305, %v5313
    %v5315 = vlaneseq
    %v5316 = vshrl.u32 %v5315, 7
    %v5317 = vsub.s32 2, %v5316
    %v5318 = vrot.slane %v5305, %v5317
    %v5319 = vlaneseq
    %v5320 = vshrl.u32 %v5319, 7
    %v5321 = vsub.s32 3, %v5320
    %v5322 = vrot.slane %v5305, %v5321
    %v5323 = vlaneseq
    %v5324 = vshrl.u32 %v5323, 7
    %v5325 = vsub.s32 4, %v5324
    %v5326 = vrot.slane %v5305, %v5325
    %v5327 = vlaneseq
    %v5328 = vshrl.u32 %v5327, 7
    %v5329 = vsub.s32 5, %v5328
    %v5330 = vrot.slane %v5305, %v5329
    %v5355 = vunpack.c.l.b16 %v5287
    %v5356 = vunpack.c.h.b16 %v5287
    %v5357 = vunpack.c.l.b16 %v5288
    %v5358 = vunpack.c.h.b16 %v5288
    %v5359 = vunpack.c.l.b16 %v5289
    %v5360 = vunpack.c.h.b16 %v5289
    %v5361 = vunpack.c.l.b16 %v5290
    %v5362 = vunpack.c.h.b16 %v5290
    %v5363 = vunpack.c.l.b16 %v5291
    %v5364 = vunpack.c.h.b16 %v5291
    %v5365 = vunpack.c.l.b16 %v5292
    %v5366 = vunpack.c.h.b16 %v5292
    %v5367 = vunpack.c.l.b16 %v5293
    %v5368 = vunpack.c.h.b16 %v5293
    %v5369 = vunpack.c.l.b16 %v5294
    %v5370 = vunpack.c.h.b16 %v5294
    %v5371 = vunpack.c.l.b16 %v5295
    %v5372 = vunpack.c.h.b16 %v5295
    %v5373 = vunpack.c.l.b16 %v5296
    %v5374 = vunpack.c.h.b16 %v5296
    %v5375 = vunpack.c.l.b16 %v5297
    %v5376 = vunpack.c.h.b16 %v5297
    %v5377 = vunpack.c.l.b16 %v5298
    %v5378 = vunpack.c.h.b16 %v5298
    %v5379 = vunpack.c.l.b16 %v5299
    %v5380 = vunpack.c.h.b16 %v5299
    %v5381 = vunpack.c.l.b16 %v5300
    %v5382 = vunpack.c.h.b16 %v5300
    %v5383 = vunpack.c.l.b16 %v5301
    %v5384 = vunpack.c.h.b16 %v5301
    %v5385 = vunpack.c.l.b16 %v5302
    %v5386 = vunpack.c.h.b16 %v5302
    %v5387 = vunpack.c.l.b16 %v5303
    %v5388 = vunpack.c.h.b16 %v5303
    %v5389 = vunpack.c.l.b16 %v5304
    %v5390 = vunpack.c.h.b16 %v5304
    %v5391 = vpack.c.b16 %v5361, %v5355
    %v5392 = vpack.c.b16 %v5362, %v5356
    %v5393 = vpack.c.b16 %v5363, %v5357
    %v5394 = vpack.c.b16 %v5364, %v5358
    %v5395 = vpack.c.b16 %v5365, %v5359
    %v5396 = vpack.c.b16 %v5366, %v5360
    %v5397 = vpack.c.b16 %v5373, %v5367
    %v5398 = vpack.c.b16 %v5374, %v5368
    %v5399 = vpack.c.b16 %v5375, %v5369
    %v5400 = vpack.c.b16 %v5376, %v5370
    %v5401 = vpack.c.b16 %v5377, %v5371
    %v5402 = vpack.c.b16 %v5378, %v5372
    %v5403 = vpack.c.b16 %v5385, %v5379
    %v5404 = vpack.c.b16 %v5386, %v5380
    %v5405 = vpack.c.b16 %v5387, %v5381
    %v5406 = vpack.c.b16 %v5388, %v5382
    %v5407 = vpack.c.b16 %v5389, %v5383
    %v5408 = vpack.c.b16 %v5390, %v5384
    %v5428 = vsel %vm594, %v5286, 0
    %5430 = vmatprep.subr.bf16.mxu0 %v5392
    %5431 = vmatpush1.bf16.msra.mxu0 %v5391
    %5432 = vmatprep.subr.bf16.mxu0 %v5398
    %5433 = vmatpush1.bf16.msra.mxu0 %v5397
    %5434 = vmatprep.subr.bf16.mxu0 %v5404
    %5435 = vmatpush1.bf16.msra.mxu0 %v5403
    %5436 = vmatprep.subr.bf16.mxu0 0
    %5437 = vmatpush1.bf16.msra.mxu0 0
    %5438 = vmatprep.subr.bf16.mxu0 0
    %5439 = vmatpush1.bf16.msra.mxu0 0
    %5440 = vmatprep.subr.bf16.mxu0 0
    %5441 = vmatpush1.bf16.msra.mxu0 0
    %5442 = vmatprep.subr.bf16.mxu0 0
    %5443 = vmatpush1.bf16.msra.mxu0 0
    %5444 = vmatprep.subr.bf16.mxu0 0
    %5445 = vmatpush1.bf16.msra.mxu0 0
    %5446 = vmatprep.subr.bf16.mxu0 0
    %5447 = vmatpush1.bf16.msra.mxu0 0
    %5448 = vmatprep.subr.bf16.mxu0 0
    %5449 = vmatpush1.bf16.msra.mxu0 0
    %5450 = vmatprep.subr.bf16.mxu0 0
    %5451 = vmatpush1.bf16.msra.mxu0 0
    %5452 = vmatprep.subr.bf16.mxu0 0
    %5453 = vmatpush1.bf16.msra.mxu0 0
    %5454 = vmatprep.subr.bf16.mxu0 0
    %5455 = vmatpush1.bf16.msra.mxu0 0
    %5456 = vmatprep.subr.bf16.mxu0 0
    %5457 = vmatpush1.bf16.msra.mxu0 0
    %5458 = vmatprep.subr.bf16.mxu0 0
    %5459 = vmatpush1.bf16.msra.mxu0 0
    %5460 = vmatprep.subr.bf16.mxu0 0
    %5461 = vmatpush1.bf16.msra.mxu0 0
    %5462 = vmatprep.mubr.bf16.mxu0 0
    %5463 = vmatmul.mubr.bf16.gmra.mrb[0].mxu0 %v5428
    %v5464 = vpop.f32.mrb[0].mxu0
    %v5465 = vadd.f32 %v5310, %v5464
    %v5466 = vpop.f32.mrb[0].mxu0
    %v5467 = vadd.f32 %v5314, %v5466
    %v5468 = vpop.f32.mrb[0].mxu0
    %v5469 = vpop.f32.mrb[0].mxu0
    %5470 = vdwg.mxu0
    %5471 = vmatprep.subr.bf16.mxu0 %v5394
    %5472 = vmatpush1.bf16.msra.mxu0 %v5393
    %5473 = vmatprep.subr.bf16.mxu0 %v5400
    %5474 = vmatpush1.bf16.msra.mxu0 %v5399
    %5475 = vmatprep.subr.bf16.mxu0 %v5406
    %5476 = vmatpush1.bf16.msra.mxu0 %v5405
    %5477 = vmatprep.subr.bf16.mxu0 0
    %5478 = vmatpush1.bf16.msra.mxu0 0
    %5479 = vmatprep.subr.bf16.mxu0 0
    %5480 = vmatpush1.bf16.msra.mxu0 0
    %5481 = vmatprep.subr.bf16.mxu0 0
    %5482 = vmatpush1.bf16.msra.mxu0 0
    %5483 = vmatprep.subr.bf16.mxu0 0
    %5484 = vmatpush1.bf16.msra.mxu0 0
    %5485 = vmatprep.subr.bf16.mxu0 0
    %5486 = vmatpush1.bf16.msra.mxu0 0
    %5487 = vmatprep.subr.bf16.mxu0 0
    %5488 = vmatpush1.bf16.msra.mxu0 0
    %5489 = vmatprep.subr.bf16.mxu0 0
    %5490 = vmatpush1.bf16.msra.mxu0 0
    %5491 = vmatprep.subr.bf16.mxu0 0
    %5492 = vmatpush1.bf16.msra.mxu0 0
    %5493 = vmatprep.subr.bf16.mxu0 0
    %5494 = vmatpush1.bf16.msra.mxu0 0
    %5495 = vmatprep.subr.bf16.mxu0 0
    %5496 = vmatpush1.bf16.msra.mxu0 0
    %5497 = vmatprep.subr.bf16.mxu0 0
    %5498 = vmatpush1.bf16.msra.mxu0 0
    %5499 = vmatprep.subr.bf16.mxu0 0
    %5500 = vmatpush1.bf16.msra.mxu0 0
    %5501 = vmatprep.subr.bf16.mxu0 0
    %5502 = vmatpush1.bf16.msra.mxu0 0
    %5503 = vmatprep.mubr.bf16.mxu0 0
    %5504 = vmatmul.mubr.bf16.gmra.mrb[0].mxu0 %v5428
    %v5505 = vpop.f32.mrb[0].mxu0
    %v5506 = vadd.f32 %v5318, %v5505
    %v5507 = vpop.f32.mrb[0].mxu0
    %v5508 = vadd.f32 %v5322, %v5507
    %v5509 = vpop.f32.mrb[0].mxu0
    %v5510 = vpop.f32.mrb[0].mxu0
    %5511 = vdwg.mxu0
    %5512 = vmatprep.subr.bf16.mxu0 %v5396
    %5513 = vmatpush1.bf16.msra.mxu0 %v5395
    %5514 = vmatprep.subr.bf16.mxu0 %v5402
    %5515 = vmatpush1.bf16.msra.mxu0 %v5401
    %5516 = vmatprep.subr.bf16.mxu0 %v5408
    %5517 = vmatpush1.bf16.msra.mxu0 %v5407
    %5518 = vmatprep.subr.bf16.mxu0 0
    %5519 = vmatpush1.bf16.msra.mxu0 0
    %5520 = vmatprep.subr.bf16.mxu0 0
    %5521 = vmatpush1.bf16.msra.mxu0 0
    %5522 = vmatprep.subr.bf16.mxu0 0
    %5523 = vmatpush1.bf16.msra.mxu0 0
    %5524 = vmatprep.subr.bf16.mxu0 0
    %5525 = vmatpush1.bf16.msra.mxu0 0
    %5526 = vmatprep.subr.bf16.mxu0 0
    %5527 = vmatpush1.bf16.msra.mxu0 0
    %5528 = vmatprep.subr.bf16.mxu0 0
    %5529 = vmatpush1.bf16.msra.mxu0 0
    %5530 = vmatprep.subr.bf16.mxu0 0
    %5531 = vmatpush1.bf16.msra.mxu0 0
    %5532 = vmatprep.subr.bf16.mxu0 0
    %5533 = vmatpush1.bf16.msra.mxu0 0
    %5534 = vmatprep.subr.bf16.mxu0 0
    %5535 = vmatpush1.bf16.msra.mxu0 0
    %5536 = vmatprep.subr.bf16.mxu0 0
    %5537 = vmatpush1.bf16.msra.mxu0 0
    %5538 = vmatprep.subr.bf16.mxu0 0
    %5539 = vmatpush1.bf16.msra.mxu0 0
    %5540 = vmatprep.subr.bf16.mxu0 0
    %5541 = vmatpush1.bf16.msra.mxu0 0
    %5542 = vmatprep.subr.bf16.mxu0 0
    %5543 = vmatpush1.bf16.msra.mxu0 0
    %5544 = vmatprep.mubr.bf16.mxu0 0
    %5545 = vmatmul.mubr.bf16.gmra.mrb[0].mxu0 %v5428
    %v5546 = vpop.f32.mrb[0].mxu0
    %v5547 = vadd.f32 %v5326, %v5546
    %v5548 = vpop.f32.mrb[0].mxu0
    %v5549 = vadd.f32 %v5330, %v5548
    %v5550 = vpop.f32.mrb[0].mxu0
    %v5551 = vpop.f32.mrb[0].mxu0
    %5552 = vdwg.mxu0
    %v5553 = vadd.f32 %v5465, %v5467
    %v5554 = vadd.f32 %v5553, %v5506
    %v5555 = vadd.f32 %v5554, %v5508
    %v5556 = vadd.f32 %v5555, %v5547
    %v5557 = vadd.f32 %v5556, %v5549
    %5558 = vadd.xlane.f32.xlu0 %v5557
    %v5559 = vpop.xlane.xlu0 %5558
    %v5560 = vmul.f32 %v5559, %v1937
    %v5561 = vsub.f32 %v5465, %v5560
    %v5562 = vsub.f32 %v5467, %v5560
    %v5563 = vsub.f32 %v5506, %v5560
    %v5564 = vsub.f32 %v5508, %v5560
    %v5565 = vsub.f32 %v5547, %v5560
    %v5566 = vsub.f32 %v5549, %v5560
    %v5567 = vmul.f32 %v5561, %v5561
    %v5568 = vmul.f32 %v5562, %v5562
    %v5569 = vmul.f32 %v5563, %v5563
    %v5570 = vmul.f32 %v5564, %v5564
    %v5571 = vmul.f32 %v5565, %v5565
    %v5572 = vmul.f32 %v5566, %v5566
    %v5573 = vadd.f32 %v5567, %v5568
    %v5574 = vadd.f32 %v5573, %v5569
    %v5575 = vadd.f32 %v5574, %v5570
    %v5576 = vadd.f32 %v5575, %v5571
    %v5577 = vadd.f32 %v5576, %v5572
    %5578 = vadd.xlane.f32.xlu0 %v5577
    %v5579 = vpop.xlane.xlu0 %5578
    %v5580 = vmul.f32 %v5579, %v1937
    %v5581 = vadd.f32 %v5580, 1e-05
    %v5582 = vrsqrt.pop %v5581
    %v5583 = vmul.f32 %v5561, %v5582
    %v5584 = vmul.f32 %v5562, %v5582
    %v5585 = vmul.f32 %v5563, %v5582
    %v5586 = vmul.f32 %v5564, %v5582
    %v5587 = vmul.f32 %v5565, %v5582
    %v5588 = vmul.f32 %v5566, %v5582
    %v5589 = vld [vmem:[%s5] sm:$0x3f]
    %v5591 = vlaneseq
    %v5592 = vshrl.u32 %v5591, 7
    %v5593 = vsub.s32 0, %v5592
    %v5594 = vrot.slane %v5589, %v5593
    %v5595 = vlaneseq
    %v5596 = vshrl.u32 %v5595, 7
    %v5597 = vsub.s32 1, %v5596
    %v5598 = vrot.slane %v5589, %v5597
    %v5599 = vlaneseq
    %v5600 = vshrl.u32 %v5599, 7
    %v5601 = vsub.s32 2, %v5600
    %v5602 = vrot.slane %v5589, %v5601
    %v5603 = vlaneseq
    %v5604 = vshrl.u32 %v5603, 7
    %v5605 = vsub.s32 3, %v5604
    %v5606 = vrot.slane %v5589, %v5605
    %v5607 = vlaneseq
    %v5608 = vshrl.u32 %v5607, 7
    %v5609 = vsub.s32 4, %v5608
    %v5610 = vrot.slane %v5589, %v5609
    %v5611 = vlaneseq
    %v5612 = vshrl.u32 %v5611, 7
    %v5613 = vsub.s32 5, %v5612
    %v5614 = vrot.slane %v5589, %v5613
    %v5621 = vmul.f32 %v5583, %v5594
    %v5622 = vmul.f32 %v5584, %v5598
    %v5623 = vmul.f32 %v5585, %v5602
    %v5624 = vmul.f32 %v5586, %v5606
    %v5625 = vmul.f32 %v5587, %v5610
    %v5626 = vmul.f32 %v5588, %v5614
    %v5627 = vld [vmem:[%s6] sm:$0x3f]
    %v5629 = vlaneseq
    %v5630 = vshrl.u32 %v5629, 7
    %v5631 = vsub.s32 0, %v5630
    %v5632 = vrot.slane %v5627, %v5631
    %v5633 = vlaneseq
    %v5634 = vshrl.u32 %v5633, 7
    %v5635 = vsub.s32 1, %v5634
    %v5636 = vrot.slane %v5627, %v5635
    %v5637 = vlaneseq
    %v5638 = vshrl.u32 %v5637, 7
    %v5639 = vsub.s32 2, %v5638
    %v5640 = vrot.slane %v5627, %v5639
    %v5641 = vlaneseq
    %v5642 = vshrl.u32 %v5641, 7
    %v5643 = vsub.s32 3, %v5642
    %v5644 = vrot.slane %v5627, %v5643
    %v5645 = vlaneseq
    %v5646 = vshrl.u32 %v5645, 7
    %v5647 = vsub.s32 4, %v5646
    %v5648 = vrot.slane %v5627, %v5647
    %v5649 = vlaneseq
    %v5650 = vshrl.u32 %v5649, 7
    %v5651 = vsub.s32 5, %v5650
    %v5652 = vrot.slane %v5627, %v5651
    %v5659 = vadd.f32 %v5621, %v5632
    %v5660 = vadd.f32 %v5622, %v5636
    %v5661 = vadd.f32 %v5623, %v5640
    %v5662 = vadd.f32 %v5624, %v5644
    %v5663 = vadd.f32 %v5625, %v5648
    %v5664 = vadd.f32 %v5626, %v5652
    %v5665 = vpack.c.bf16 %v5659, %v5659
    %v5666 = vpack.c.bf16 %v5660, %v5660
    %v5667 = vpack.c.bf16 %v5661, %v5661
    %v5668 = vpack.c.bf16 %v5662, %v5662
    %v5669 = vpack.c.bf16 %v5663, %v5663
    %v5670 = vpack.c.bf16 %v5664, %v5664
    %v5671 = vld [vmem:[%s7] sm:$0xff]
    %v5672 = vld [vmem:[%s7 + $0x8] sm:$0xff]
    %v5673 = vld [vmem:[%s7 + $0x10] sm:$0xff]
    %v5674 = vld [vmem:[%s7 + $0x18] sm:$0xff]
    %v5675 = vld [vmem:[%s7 + $0x20] sm:$0xff]
    %v5676 = vld [vmem:[%s7 + $0x28] sm:$0xff]
    %v5677 = vld [vmem:[%s7 + $0x30] sm:$0xff]
    %v5678 = vld [vmem:[%s7 + $0x38] sm:$0xff]
    %v5679 = vld [vmem:[%s7 + $0x40] sm:$0xff]
    %v5680 = vld [vmem:[%s7 + $0x48] sm:$0xff]
    %v5681 = vld [vmem:[%s7 + $0x50] sm:$0xff]
    %v5682 = vld [vmem:[%s7 + $0x58] sm:$0xff]
    %v5683 = vld [vmem:[%s7 + $0x60] sm:$0xff]
    %v5684 = vld [vmem:[%s7 + $0x68] sm:$0xff]
    %v5685 = vld [vmem:[%s7 + $0x70] sm:$0xff]
    %v5686 = vld [vmem:[%s7 + $0x78] sm:$0xff]
    %v5687 = vld [vmem:[%s7 + $0x80] sm:$0xff]
    %v5688 = vld [vmem:[%s7 + $0x88] sm:$0xff]
    %v5689 = vld [vmem:[%s7 + $0x90] sm:$0xff]
    %v5690 = vld [vmem:[%s7 + $0x98] sm:$0xff]
    %v5691 = vld [vmem:[%s7 + $0xa0] sm:$0xff]
    %v5692 = vld [vmem:[%s7 + $0xa8] sm:$0xff]
    %v5693 = vld [vmem:[%s7 + $0xb0] sm:$0xff]
    %v5694 = vld [vmem:[%s7 + $0xb8] sm:$0xff]
    %v5695 = vld [vmem:[%s7 + $0xc0] sm:$0xff]
    %v5696 = vld [vmem:[%s7 + $0xc8] sm:$0xff]
    %v5697 = vld [vmem:[%s7 + $0xd0] sm:$0xff]
    %v5698 = vld [vmem:[%s7 + $0xd8] sm:$0xff]
    %v5699 = vld [vmem:[%s7 + $0xe0] sm:$0xff]
    %v5700 = vld [vmem:[%s7 + $0xe8] sm:$0xff]
    %v5701 = vld [vmem:[%s7 + $0xf0] sm:$0xff]
    %v5702 = vld [vmem:[%s7 + $0xf8] sm:$0xff]
    %v5703 = vld [vmem:[%s7 + $0x100] sm:$0xff]
    %v5704 = vld [vmem:[%s7 + $0x108] sm:$0xff]
    %v5705 = vld [vmem:[%s7 + $0x110] sm:$0xff]
    %v5706 = vld [vmem:[%s7 + $0x118] sm:$0xff]
    %v5707 = vld [vmem:[%s7 + $0x120] sm:$0xff]
    %v5708 = vld [vmem:[%s7 + $0x128] sm:$0xff]
    %v5709 = vld [vmem:[%s7 + $0x130] sm:$0xff]
    %v5710 = vld [vmem:[%s7 + $0x138] sm:$0xff]
    %v5711 = vld [vmem:[%s7 + $0x140] sm:$0xff]
    %v5712 = vld [vmem:[%s7 + $0x148] sm:$0xff]
    %v5713 = vld [vmem:[%s7 + $0x150] sm:$0xff]
    %v5714 = vld [vmem:[%s7 + $0x158] sm:$0xff]
    %v5715 = vld [vmem:[%s7 + $0x160] sm:$0xff]
    %v5716 = vld [vmem:[%s7 + $0x168] sm:$0xff]
    %v5717 = vld [vmem:[%s7 + $0x170] sm:$0xff]
    %v5718 = vld [vmem:[%s7 + $0x178] sm:$0xff]
    %v5719 = vld [vmem:[%s7 + $0x180] sm:$0xff]
    %v5720 = vld [vmem:[%s7 + $0x188] sm:$0xff]
    %v5721 = vld [vmem:[%s7 + $0x190] sm:$0xff]
    %v5722 = vld [vmem:[%s7 + $0x198] sm:$0xff]
    %v5723 = vld [vmem:[%s7 + $0x1a0] sm:$0xff]
    %v5724 = vld [vmem:[%s7 + $0x1a8] sm:$0xff]
    %v5725 = vld [vmem:[%s7 + $0x1b0] sm:$0xff]
    %v5726 = vld [vmem:[%s7 + $0x1b8] sm:$0xff]
    %v5727 = vld [vmem:[%s7 + $0x1c0] sm:$0xff]
    %v5728 = vld [vmem:[%s7 + $0x1c8] sm:$0xff]
    %v5729 = vld [vmem:[%s7 + $0x1d0] sm:$0xff]
    %v5730 = vld [vmem:[%s7 + $0x1d8] sm:$0xff]
    %v5731 = vld [vmem:[%s7 + $0x1e0] sm:$0xff]
    %v5732 = vld [vmem:[%s7 + $0x1e8] sm:$0xff]
    %v5733 = vld [vmem:[%s7 + $0x1f0] sm:$0xff]
    %v5734 = vld [vmem:[%s7 + $0x1f8] sm:$0xff]
    %v5735 = vld [vmem:[%s7 + $0x200] sm:$0xff]
    %v5736 = vld [vmem:[%s7 + $0x208] sm:$0xff]
    %v5737 = vld [vmem:[%s7 + $0x210] sm:$0xff]
    %v5738 = vld [vmem:[%s7 + $0x218] sm:$0xff]
    %v5739 = vld [vmem:[%s7 + $0x220] sm:$0xff]
    %v5740 = vld [vmem:[%s7 + $0x228] sm:$0xff]
    %v5741 = vld [vmem:[%s7 + $0x230] sm:$0xff]
    %v5742 = vld [vmem:[%s7 + $0x238] sm:$0xff]
    %v5743 = vld [vmem:[%s7 + $0x240] sm:$0xff]
    %v5744 = vld [vmem:[%s7 + $0x248] sm:$0xff]
    %v5745 = vld [vmem:[%s7 + $0x250] sm:$0xff]
    %v5746 = vld [vmem:[%s7 + $0x258] sm:$0xff]
    %v5747 = vld [vmem:[%s7 + $0x260] sm:$0xff]
    %v5748 = vld [vmem:[%s7 + $0x268] sm:$0xff]
    %v5749 = vld [vmem:[%s7 + $0x270] sm:$0xff]
    %v5750 = vld [vmem:[%s7 + $0x278] sm:$0xff]
    %v5751 = vld [vmem:[%s7 + $0x280] sm:$0xff]
    %v5752 = vld [vmem:[%s7 + $0x288] sm:$0xff]
    %v5753 = vld [vmem:[%s7 + $0x290] sm:$0xff]
    %v5754 = vld [vmem:[%s7 + $0x298] sm:$0xff]
    %v5755 = vld [vmem:[%s7 + $0x2a0] sm:$0xff]
    %v5756 = vld [vmem:[%s7 + $0x2a8] sm:$0xff]
    %v5757 = vld [vmem:[%s7 + $0x2b0] sm:$0xff]
    %v5758 = vld [vmem:[%s7 + $0x2b8] sm:$0xff]
    %v5759 = vld [vmem:[%s7 + $0x2c0] sm:$0xff]
    %v5760 = vld [vmem:[%s7 + $0x2c8] sm:$0xff]
    %v5761 = vld [vmem:[%s7 + $0x2d0] sm:$0xff]
    %v5762 = vld [vmem:[%s7 + $0x2d8] sm:$0xff]
    %v5763 = vld [vmem:[%s7 + $0x2e0] sm:$0xff]
    %v5764 = vld [vmem:[%s7 + $0x2e8] sm:$0xff]
    %v5765 = vld [vmem:[%s7 + $0x2f0] sm:$0xff]
    %v5766 = vld [vmem:[%s7 + $0x2f8] sm:$0xff]
    %v5767 = vld [vmem:[%s7 + $0x300] sm:$0xff]
    %v5768 = vld [vmem:[%s7 + $0x308] sm:$0xff]
    %v5769 = vld [vmem:[%s7 + $0x310] sm:$0xff]
    %v5770 = vld [vmem:[%s7 + $0x318] sm:$0xff]
    %v5771 = vld [vmem:[%s7 + $0x320] sm:$0xff]
    %v5772 = vld [vmem:[%s7 + $0x328] sm:$0xff]
    %v5773 = vld [vmem:[%s7 + $0x330] sm:$0xff]
    %v5774 = vld [vmem:[%s7 + $0x338] sm:$0xff]
    %v5775 = vld [vmem:[%s7 + $0x340] sm:$0xff]
    %v5776 = vld [vmem:[%s7 + $0x348] sm:$0xff]
    %v5777 = vld [vmem:[%s7 + $0x350] sm:$0xff]
    %v5778 = vld [vmem:[%s7 + $0x358] sm:$0xff]
    %v5779 = vld [vmem:[%s7 + $0x360] sm:$0xff]
    %v5780 = vld [vmem:[%s7 + $0x368] sm:$0xff]
    %v5781 = vld [vmem:[%s7 + $0x370] sm:$0xff]
    %v5782 = vld [vmem:[%s7 + $0x378] sm:$0xff]
    %v5783 = vld [vmem:[%s7 + $0x380] sm:$0xff]
    %v5784 = vld [vmem:[%s7 + $0x388] sm:$0xff]
    %v5785 = vld [vmem:[%s7 + $0x390] sm:$0xff]
    %v5786 = vld [vmem:[%s7 + $0x398] sm:$0xff]
    %v5787 = vld [vmem:[%s7 + $0x3a0] sm:$0xff]
    %v5788 = vld [vmem:[%s7 + $0x3a8] sm:$0xff]
    %v5789 = vld [vmem:[%s7 + $0x3b0] sm:$0xff]
    %v5790 = vld [vmem:[%s7 + $0x3b8] sm:$0xff]
    %v5791 = vld [vmem:[%s7 + $0x3c0] sm:$0xff]
    %v5792 = vld [vmem:[%s7 + $0x3c8] sm:$0xff]
    %v5793 = vld [vmem:[%s7 + $0x3d0] sm:$0xff]
    %v5794 = vld [vmem:[%s7 + $0x3d8] sm:$0xff]
    %v5795 = vld [vmem:[%s7 + $0x3e0] sm:$0xff]
    %v5796 = vld [vmem:[%s7 + $0x3e8] sm:$0xff]
    %v5797 = vld [vmem:[%s7 + $0x3f0] sm:$0xff]
    %v5798 = vld [vmem:[%s7 + $0x3f8] sm:$0xff]
    %v5799 = vld [vmem:[%s7 + $0x400] sm:$0xff]
    %v5800 = vld [vmem:[%s7 + $0x408] sm:$0xff]
    %v5801 = vld [vmem:[%s7 + $0x410] sm:$0xff]
    %v5802 = vld [vmem:[%s7 + $0x418] sm:$0xff]
    %v5803 = vld [vmem:[%s7 + $0x420] sm:$0xff]
    %v5804 = vld [vmem:[%s7 + $0x428] sm:$0xff]
    %v5805 = vld [vmem:[%s7 + $0x430] sm:$0xff]
    %v5806 = vld [vmem:[%s7 + $0x438] sm:$0xff]
    %v5807 = vld [vmem:[%s7 + $0x440] sm:$0xff]
    %v5808 = vld [vmem:[%s7 + $0x448] sm:$0xff]
    %v5809 = vld [vmem:[%s7 + $0x450] sm:$0xff]
    %v5810 = vld [vmem:[%s7 + $0x458] sm:$0xff]
    %v5811 = vld [vmem:[%s7 + $0x460] sm:$0xff]
    %v5812 = vld [vmem:[%s7 + $0x468] sm:$0xff]
    %v5813 = vld [vmem:[%s7 + $0x470] sm:$0xff]
    %v5814 = vld [vmem:[%s7 + $0x478] sm:$0xff]
    %v5815 = vld [vmem:[%s7 + $0x480] sm:$0xff]
    %v5816 = vld [vmem:[%s7 + $0x488] sm:$0xff]
    %v5817 = vld [vmem:[%s7 + $0x490] sm:$0xff]
    %v5818 = vld [vmem:[%s7 + $0x498] sm:$0xff]
    %v5819 = vld [vmem:[%s7 + $0x4a0] sm:$0xff]
    %v5820 = vld [vmem:[%s7 + $0x4a8] sm:$0xff]
    %v5821 = vld [vmem:[%s7 + $0x4b0] sm:$0xff]
    %v5822 = vld [vmem:[%s7 + $0x4b8] sm:$0xff]
    %v5823 = vld [vmem:[%s7 + $0x4c0] sm:$0xff]
    %v5824 = vld [vmem:[%s7 + $0x4c8] sm:$0xff]
    %v5825 = vld [vmem:[%s7 + $0x4d0] sm:$0xff]
    %v5826 = vld [vmem:[%s7 + $0x4d8] sm:$0xff]
    %v5827 = vld [vmem:[%s7 + $0x4e0] sm:$0xff]
    %v5828 = vld [vmem:[%s7 + $0x4e8] sm:$0xff]
    %v5829 = vld [vmem:[%s7 + $0x4f0] sm:$0xff]
    %v5830 = vld [vmem:[%s7 + $0x4f8] sm:$0xff]
    %v5831 = vld [vmem:[%s7 + $0x500] sm:$0xff]
    %v5832 = vld [vmem:[%s7 + $0x508] sm:$0xff]
    %v5833 = vld [vmem:[%s7 + $0x510] sm:$0xff]
    %v5834 = vld [vmem:[%s7 + $0x518] sm:$0xff]
    %v5835 = vld [vmem:[%s7 + $0x520] sm:$0xff]
    %v5836 = vld [vmem:[%s7 + $0x528] sm:$0xff]
    %v5837 = vld [vmem:[%s7 + $0x530] sm:$0xff]
    %v5838 = vld [vmem:[%s7 + $0x538] sm:$0xff]
    %v5839 = vld [vmem:[%s7 + $0x540] sm:$0xff]
    %v5840 = vld [vmem:[%s7 + $0x548] sm:$0xff]
    %v5841 = vld [vmem:[%s7 + $0x550] sm:$0xff]
    %v5842 = vld [vmem:[%s7 + $0x558] sm:$0xff]
    %v5843 = vld [vmem:[%s7 + $0x560] sm:$0xff]
    %v5844 = vld [vmem:[%s7 + $0x568] sm:$0xff]
    %v5845 = vld [vmem:[%s7 + $0x570] sm:$0xff]
    %v5846 = vld [vmem:[%s7 + $0x578] sm:$0xff]
    %v5847 = vld [vmem:[%s7 + $0x580] sm:$0xff]
    %v5848 = vld [vmem:[%s7 + $0x588] sm:$0xff]
    %v5849 = vld [vmem:[%s7 + $0x590] sm:$0xff]
    %v5850 = vld [vmem:[%s7 + $0x598] sm:$0xff]
    %v5851 = vld [vmem:[%s7 + $0x5a0] sm:$0xff]
    %v5852 = vld [vmem:[%s7 + $0x5a8] sm:$0xff]
    %v5853 = vld [vmem:[%s7 + $0x5b0] sm:$0xff]
    %v5854 = vld [vmem:[%s7 + $0x5b8] sm:$0xff]
    %v5855 = vld [vmem:[%s7 + $0x5c0] sm:$0xff]
    %v5856 = vld [vmem:[%s7 + $0x5c8] sm:$0xff]
    %v5857 = vld [vmem:[%s7 + $0x5d0] sm:$0xff]
    %v5858 = vld [vmem:[%s7 + $0x5d8] sm:$0xff]
    %v5859 = vld [vmem:[%s7 + $0x5e0] sm:$0xff]
    %v5860 = vld [vmem:[%s7 + $0x5e8] sm:$0xff]
    %v5861 = vld [vmem:[%s7 + $0x5f0] sm:$0xff]
    %v5862 = vld [vmem:[%s7 + $0x5f8] sm:$0xff]
    %v5863 = vld [vmem:[%s8] sm:$0xf]
    %v5865 = vlaneseq
    %v5866 = vshrl.u32 %v5865, 7
    %v5867 = vsub.s32 0, %v5866
    %v5868 = vrot.slane %v5863, %v5867
    %v5869 = vlaneseq
    %v5870 = vshrl.u32 %v5869, 7
    %v5871 = vsub.s32 1, %v5870
    %v5872 = vrot.slane %v5863, %v5871
    %v5873 = vlaneseq
    %v5874 = vshrl.u32 %v5873, 7
    %v5875 = vsub.s32 2, %v5874
    %v5876 = vrot.slane %v5863, %v5875
    %v5877 = vlaneseq
    %v5878 = vshrl.u32 %v5877, 7
    %v5879 = vsub.s32 3, %v5878
    %v5880 = vrot.slane %v5863, %v5879
    %v6077 = vunpack.c.l.b16 %v5671
    %v6078 = vunpack.c.h.b16 %v5671
    %v6079 = vunpack.c.l.b16 %v5672
    %v6080 = vunpack.c.h.b16 %v5672
    %v6081 = vunpack.c.l.b16 %v5673
    %v6082 = vunpack.c.h.b16 %v5673
    %v6083 = vunpack.c.l.b16 %v5674
    %v6084 = vunpack.c.h.b16 %v5674
    %v6085 = vunpack.c.l.b16 %v5675
    %v6086 = vunpack.c.h.b16 %v5675
    %v6087 = vunpack.c.l.b16 %v5676
    %v6088 = vunpack.c.h.b16 %v5676
    %v6089 = vunpack.c.l.b16 %v5677
    %v6090 = vunpack.c.h.b16 %v5677
    %v6091 = vunpack.c.l.b16 %v5678
    %v6092 = vunpack.c.h.b16 %v5678
    %v6093 = vunpack.c.l.b16 %v5679
    %v6094 = vunpack.c.h.b16 %v5679
    %v6095 = vunpack.c.l.b16 %v5680
    %v6096 = vunpack.c.h.b16 %v5680
    %v6097 = vunpack.c.l.b16 %v5681
    %v6098 = vunpack.c.h.b16 %v5681
    %v6099 = vunpack.c.l.b16 %v5682
    %v6100 = vunpack.c.h.b16 %v5682
    %v6101 = vunpack.c.l.b16 %v5683
    %v6102 = vunpack.c.h.b16 %v5683
    %v6103 = vunpack.c.l.b16 %v5684
    %v6104 = vunpack.c.h.b16 %v5684
    %v6105 = vunpack.c.l.b16 %v5685
    %v6106 = vunpack.c.h.b16 %v5685
    %v6107 = vunpack.c.l.b16 %v5686
    %v6108 = vunpack.c.h.b16 %v5686
    %v6109 = vunpack.c.l.b16 %v5687
    %v6110 = vunpack.c.h.b16 %v5687
    %v6111 = vunpack.c.l.b16 %v5688
    %v6112 = vunpack.c.h.b16 %v5688
    %v6113 = vunpack.c.l.b16 %v5689
    %v6114 = vunpack.c.h.b16 %v5689
    %v6115 = vunpack.c.l.b16 %v5690
    %v6116 = vunpack.c.h.b16 %v5690
    %v6117 = vunpack.c.l.b16 %v5691
    %v6118 = vunpack.c.h.b16 %v5691
    %v6119 = vunpack.c.l.b16 %v5692
    %v6120 = vunpack.c.h.b16 %v5692
    %v6121 = vunpack.c.l.b16 %v5693
    %v6122 = vunpack.c.h.b16 %v5693
    %v6123 = vunpack.c.l.b16 %v5694
    %v6124 = vunpack.c.h.b16 %v5694
    %v6125 = vunpack.c.l.b16 %v5695
    %v6126 = vunpack.c.h.b16 %v5695
    %v6127 = vunpack.c.l.b16 %v5696
    %v6128 = vunpack.c.h.b16 %v5696
    %v6129 = vunpack.c.l.b16 %v5697
    %v6130 = vunpack.c.h.b16 %v5697
    %v6131 = vunpack.c.l.b16 %v5698
    %v6132 = vunpack.c.h.b16 %v5698
    %v6133 = vunpack.c.l.b16 %v5699
    %v6134 = vunpack.c.h.b16 %v5699
    %v6135 = vunpack.c.l.b16 %v5700
    %v6136 = vunpack.c.h.b16 %v5700
    %v6137 = vunpack.c.l.b16 %v5701
    %v6138 = vunpack.c.h.b16 %v5701
    %v6139 = vunpack.c.l.b16 %v5702
    %v6140 = vunpack.c.h.b16 %v5702
    %v6141 = vunpack.c.l.b16 %v5703
    %v6142 = vunpack.c.h.b16 %v5703
    %v6143 = vunpack.c.l.b16 %v5704
    %v6144 = vunpack.c.h.b16 %v5704
    %v6145 = vunpack.c.l.b16 %v5705
    %v6146 = vunpack.c.h.b16 %v5705
    %v6147 = vunpack.c.l.b16 %v5706
    %v6148 = vunpack.c.h.b16 %v5706
    %v6149 = vunpack.c.l.b16 %v5707
    %v6150 = vunpack.c.h.b16 %v5707
    %v6151 = vunpack.c.l.b16 %v5708
    %v6152 = vunpack.c.h.b16 %v5708
    %v6153 = vunpack.c.l.b16 %v5709
    %v6154 = vunpack.c.h.b16 %v5709
    %v6155 = vunpack.c.l.b16 %v5710
    %v6156 = vunpack.c.h.b16 %v5710
    %v6157 = vunpack.c.l.b16 %v5711
    %v6158 = vunpack.c.h.b16 %v5711
    %v6159 = vunpack.c.l.b16 %v5712
    %v6160 = vunpack.c.h.b16 %v5712
    %v6161 = vunpack.c.l.b16 %v5713
    %v6162 = vunpack.c.h.b16 %v5713
    %v6163 = vunpack.c.l.b16 %v5714
    %v6164 = vunpack.c.h.b16 %v5714
    %v6165 = vunpack.c.l.b16 %v5715
    %v6166 = vunpack.c.h.b16 %v5715
    %v6167 = vunpack.c.l.b16 %v5716
    %v6168 = vunpack.c.h.b16 %v5716
    %v6169 = vunpack.c.l.b16 %v5717
    %v6170 = vunpack.c.h.b16 %v5717
    %v6171 = vunpack.c.l.b16 %v5718
    %v6172 = vunpack.c.h.b16 %v5718
    %v6173 = vunpack.c.l.b16 %v5719
    %v6174 = vunpack.c.h.b16 %v5719
    %v6175 = vunpack.c.l.b16 %v5720
    %v6176 = vunpack.c.h.b16 %v5720
    %v6177 = vunpack.c.l.b16 %v5721
    %v6178 = vunpack.c.h.b16 %v5721
    %v6179 = vunpack.c.l.b16 %v5722
    %v6180 = vunpack.c.h.b16 %v5722
    %v6181 = vunpack.c.l.b16 %v5723
    %v6182 = vunpack.c.h.b16 %v5723
    %v6183 = vunpack.c.l.b16 %v5724
    %v6184 = vunpack.c.h.b16 %v5724
    %v6185 = vunpack.c.l.b16 %v5725
    %v6186 = vunpack.c.h.b16 %v5725
    %v6187 = vunpack.c.l.b16 %v5726
    %v6188 = vunpack.c.h.b16 %v5726
    %v6189 = vunpack.c.l.b16 %v5727
    %v6190 = vunpack.c.h.b16 %v5727
    %v6191 = vunpack.c.l.b16 %v5728
    %v6192 = vunpack.c.h.b16 %v5728
    %v6193 = vunpack.c.l.b16 %v5729
    %v6194 = vunpack.c.h.b16 %v5729
    %v6195 = vunpack.c.l.b16 %v5730
    %v6196 = vunpack.c.h.b16 %v5730
    %v6197 = vunpack.c.l.b16 %v5731
    %v6198 = vunpack.c.h.b16 %v5731
    %v6199 = vunpack.c.l.b16 %v5732
    %v6200 = vunpack.c.h.b16 %v5732
    %v6201 = vunpack.c.l.b16 %v5733
    %v6202 = vunpack.c.h.b16 %v5733
    %v6203 = vunpack.c.l.b16 %v5734
    %v6204 = vunpack.c.h.b16 %v5734
    %v6205 = vunpack.c.l.b16 %v5735
    %v6206 = vunpack.c.h.b16 %v5735
    %v6207 = vunpack.c.l.b16 %v5736
    %v6208 = vunpack.c.h.b16 %v5736
    %v6209 = vunpack.c.l.b16 %v5737
    %v6210 = vunpack.c.h.b16 %v5737
    %v6211 = vunpack.c.l.b16 %v5738
    %v6212 = vunpack.c.h.b16 %v5738
    %v6213 = vunpack.c.l.b16 %v5739
    %v6214 = vunpack.c.h.b16 %v5739
    %v6215 = vunpack.c.l.b16 %v5740
    %v6216 = vunpack.c.h.b16 %v5740
    %v6217 = vunpack.c.l.b16 %v5741
    %v6218 = vunpack.c.h.b16 %v5741
    %v6219 = vunpack.c.l.b16 %v5742
    %v6220 = vunpack.c.h.b16 %v5742
    %v6221 = vunpack.c.l.b16 %v5743
    %v6222 = vunpack.c.h.b16 %v5743
    %v6223 = vunpack.c.l.b16 %v5744
    %v6224 = vunpack.c.h.b16 %v5744
    %v6225 = vunpack.c.l.b16 %v5745
    %v6226 = vunpack.c.h.b16 %v5745
    %v6227 = vunpack.c.l.b16 %v5746
    %v6228 = vunpack.c.h.b16 %v5746
    %v6229 = vunpack.c.l.b16 %v5747
    %v6230 = vunpack.c.h.b16 %v5747
    %v6231 = vunpack.c.l.b16 %v5748
    %v6232 = vunpack.c.h.b16 %v5748
    %v6233 = vunpack.c.l.b16 %v5749
    %v6234 = vunpack.c.h.b16 %v5749
    %v6235 = vunpack.c.l.b16 %v5750
    %v6236 = vunpack.c.h.b16 %v5750
    %v6237 = vunpack.c.l.b16 %v5751
    %v6238 = vunpack.c.h.b16 %v5751
    %v6239 = vunpack.c.l.b16 %v5752
    %v6240 = vunpack.c.h.b16 %v5752
    %v6241 = vunpack.c.l.b16 %v5753
    %v6242 = vunpack.c.h.b16 %v5753
    %v6243 = vunpack.c.l.b16 %v5754
    %v6244 = vunpack.c.h.b16 %v5754
    %v6245 = vunpack.c.l.b16 %v5755
    %v6246 = vunpack.c.h.b16 %v5755
    %v6247 = vunpack.c.l.b16 %v5756
    %v6248 = vunpack.c.h.b16 %v5756
    %v6249 = vunpack.c.l.b16 %v5757
    %v6250 = vunpack.c.h.b16 %v5757
    %v6251 = vunpack.c.l.b16 %v5758
    %v6252 = vunpack.c.h.b16 %v5758
    %v6253 = vunpack.c.l.b16 %v5759
    %v6254 = vunpack.c.h.b16 %v5759
    %v6255 = vunpack.c.l.b16 %v5760
    %v6256 = vunpack.c.h.b16 %v5760
    %v6257 = vunpack.c.l.b16 %v5761
    %v6258 = vunpack.c.h.b16 %v5761
    %v6259 = vunpack.c.l.b16 %v5762
    %v6260 = vunpack.c.h.b16 %v5762
    %v6261 = vunpack.c.l.b16 %v5763
    %v6262 = vunpack.c.h.b16 %v5763
    %v6263 = vunpack.c.l.b16 %v5764
    %v6264 = vunpack.c.h.b16 %v5764
    %v6265 = vunpack.c.l.b16 %v5765
    %v6266 = vunpack.c.h.b16 %v5765
    %v6267 = vunpack.c.l.b16 %v5766
    %v6268 = vunpack.c.h.b16 %v5766
    %v6269 = vunpack.c.l.b16 %v5767
    %v6270 = vunpack.c.h.b16 %v5767
    %v6271 = vunpack.c.l.b16 %v5768
    %v6272 = vunpack.c.h.b16 %v5768
    %v6273 = vunpack.c.l.b16 %v5769
    %v6274 = vunpack.c.h.b16 %v5769
    %v6275 = vunpack.c.l.b16 %v5770
    %v6276 = vunpack.c.h.b16 %v5770
    %v6277 = vunpack.c.l.b16 %v5771
    %v6278 = vunpack.c.h.b16 %v5771
    %v6279 = vunpack.c.l.b16 %v5772
    %v6280 = vunpack.c.h.b16 %v5772
    %v6281 = vunpack.c.l.b16 %v5773
    %v6282 = vunpack.c.h.b16 %v5773
    %v6283 = vunpack.c.l.b16 %v5774
    %v6284 = vunpack.c.h.b16 %v5774
    %v6285 = vunpack.c.l.b16 %v5775
    %v6286 = vunpack.c.h.b16 %v5775
    %v6287 = vunpack.c.l.b16 %v5776
    %v6288 = vunpack.c.h.b16 %v5776
    %v6289 = vunpack.c.l.b16 %v5777
    %v6290 = vunpack.c.h.b16 %v5777
    %v6291 = vunpack.c.l.b16 %v5778
    %v6292 = vunpack.c.h.b16 %v5778
    %v6293 = vunpack.c.l.b16 %v5779
    %v6294 = vunpack.c.h.b16 %v5779
    %v6295 = vunpack.c.l.b16 %v5780
    %v6296 = vunpack.c.h.b16 %v5780
    %v6297 = vunpack.c.l.b16 %v5781
    %v6298 = vunpack.c.h.b16 %v5781
    %v6299 = vunpack.c.l.b16 %v5782
    %v6300 = vunpack.c.h.b16 %v5782
    %v6301 = vunpack.c.l.b16 %v5783
    %v6302 = vunpack.c.h.b16 %v5783
    %v6303 = vunpack.c.l.b16 %v5784
    %v6304 = vunpack.c.h.b16 %v5784
    %v6305 = vunpack.c.l.b16 %v5785
    %v6306 = vunpack.c.h.b16 %v5785
    %v6307 = vunpack.c.l.b16 %v5786
    %v6308 = vunpack.c.h.b16 %v5786
    %v6309 = vunpack.c.l.b16 %v5787
    %v6310 = vunpack.c.h.b16 %v5787
    %v6311 = vunpack.c.l.b16 %v5788
    %v6312 = vunpack.c.h.b16 %v5788
    %v6313 = vunpack.c.l.b16 %v5789
    %v6314 = vunpack.c.h.b16 %v5789
    %v6315 = vunpack.c.l.b16 %v5790
    %v6316 = vunpack.c.h.b16 %v5790
    %v6317 = vunpack.c.l.b16 %v5791
    %v6318 = vunpack.c.h.b16 %v5791
    %v6319 = vunpack.c.l.b16 %v5792
    %v6320 = vunpack.c.h.b16 %v5792
    %v6321 = vunpack.c.l.b16 %v5793
    %v6322 = vunpack.c.h.b16 %v5793
    %v6323 = vunpack.c.l.b16 %v5794
    %v6324 = vunpack.c.h.b16 %v5794
    %v6325 = vunpack.c.l.b16 %v5795
    %v6326 = vunpack.c.h.b16 %v5795
    %v6327 = vunpack.c.l.b16 %v5796
    %v6328 = vunpack.c.h.b16 %v5796
    %v6329 = vunpack.c.l.b16 %v5797
    %v6330 = vunpack.c.h.b16 %v5797
    %v6331 = vunpack.c.l.b16 %v5798
    %v6332 = vunpack.c.h.b16 %v5798
    %v6333 = vunpack.c.l.b16 %v5799
    %v6334 = vunpack.c.h.b16 %v5799
    %v6335 = vunpack.c.l.b16 %v5800
    %v6336 = vunpack.c.h.b16 %v5800
    %v6337 = vunpack.c.l.b16 %v5801
    %v6338 = vunpack.c.h.b16 %v5801
    %v6339 = vunpack.c.l.b16 %v5802
    %v6340 = vunpack.c.h.b16 %v5802
    %v6341 = vunpack.c.l.b16 %v5803
    %v6342 = vunpack.c.h.b16 %v5803
    %v6343 = vunpack.c.l.b16 %v5804
    %v6344 = vunpack.c.h.b16 %v5804
    %v6345 = vunpack.c.l.b16 %v5805
    %v6346 = vunpack.c.h.b16 %v5805
    %v6347 = vunpack.c.l.b16 %v5806
    %v6348 = vunpack.c.h.b16 %v5806
    %v6349 = vunpack.c.l.b16 %v5807
    %v6350 = vunpack.c.h.b16 %v5807
    %v6351 = vunpack.c.l.b16 %v5808
    %v6352 = vunpack.c.h.b16 %v5808
    %v6353 = vunpack.c.l.b16 %v5809
    %v6354 = vunpack.c.h.b16 %v5809
    %v6355 = vunpack.c.l.b16 %v5810
    %v6356 = vunpack.c.h.b16 %v5810
    %v6357 = vunpack.c.l.b16 %v5811
    %v6358 = vunpack.c.h.b16 %v5811
    %v6359 = vunpack.c.l.b16 %v5812
    %v6360 = vunpack.c.h.b16 %v5812
    %v6361 = vunpack.c.l.b16 %v5813
    %v6362 = vunpack.c.h.b16 %v5813
    %v6363 = vunpack.c.l.b16 %v5814
    %v6364 = vunpack.c.h.b16 %v5814
    %v6365 = vunpack.c.l.b16 %v5815
    %v6366 = vunpack.c.h.b16 %v5815
    %v6367 = vunpack.c.l.b16 %v5816
    %v6368 = vunpack.c.h.b16 %v5816
    %v6369 = vunpack.c.l.b16 %v5817
    %v6370 = vunpack.c.h.b16 %v5817
    %v6371 = vunpack.c.l.b16 %v5818
    %v6372 = vunpack.c.h.b16 %v5818
    %v6373 = vunpack.c.l.b16 %v5819
    %v6374 = vunpack.c.h.b16 %v5819
    %v6375 = vunpack.c.l.b16 %v5820
    %v6376 = vunpack.c.h.b16 %v5820
    %v6377 = vunpack.c.l.b16 %v5821
    %v6378 = vunpack.c.h.b16 %v5821
    %v6379 = vunpack.c.l.b16 %v5822
    %v6380 = vunpack.c.h.b16 %v5822
    %v6381 = vunpack.c.l.b16 %v5823
    %v6382 = vunpack.c.h.b16 %v5823
    %v6383 = vunpack.c.l.b16 %v5824
    %v6384 = vunpack.c.h.b16 %v5824
    %v6385 = vunpack.c.l.b16 %v5825
    %v6386 = vunpack.c.h.b16 %v5825
    %v6387 = vunpack.c.l.b16 %v5826
    %v6388 = vunpack.c.h.b16 %v5826
    %v6389 = vunpack.c.l.b16 %v5827
    %v6390 = vunpack.c.h.b16 %v5827
    %v6391 = vunpack.c.l.b16 %v5828
    %v6392 = vunpack.c.h.b16 %v5828
    %v6393 = vunpack.c.l.b16 %v5829
    %v6394 = vunpack.c.h.b16 %v5829
    %v6395 = vunpack.c.l.b16 %v5830
    %v6396 = vunpack.c.h.b16 %v5830
    %v6397 = vunpack.c.l.b16 %v5831
    %v6398 = vunpack.c.h.b16 %v5831
    %v6399 = vunpack.c.l.b16 %v5832
    %v6400 = vunpack.c.h.b16 %v5832
    %v6401 = vunpack.c.l.b16 %v5833
    %v6402 = vunpack.c.h.b16 %v5833
    %v6403 = vunpack.c.l.b16 %v5834
    %v6404 = vunpack.c.h.b16 %v5834
    %v6405 = vunpack.c.l.b16 %v5835
    %v6406 = vunpack.c.h.b16 %v5835
    %v6407 = vunpack.c.l.b16 %v5836
    %v6408 = vunpack.c.h.b16 %v5836
    %v6409 = vunpack.c.l.b16 %v5837
    %v6410 = vunpack.c.h.b16 %v5837
    %v6411 = vunpack.c.l.b16 %v5838
    %v6412 = vunpack.c.h.b16 %v5838
    %v6413 = vunpack.c.l.b16 %v5839
    %v6414 = vunpack.c.h.b16 %v5839
    %v6415 = vunpack.c.l.b16 %v5840
    %v6416 = vunpack.c.h.b16 %v5840
    %v6417 = vunpack.c.l.b16 %v5841
    %v6418 = vunpack.c.h.b16 %v5841
    %v6419 = vunpack.c.l.b16 %v5842
    %v6420 = vunpack.c.h.b16 %v5842
    %v6421 = vunpack.c.l.b16 %v5843
    %v6422 = vunpack.c.h.b16 %v5843
    %v6423 = vunpack.c.l.b16 %v5844
    %v6424 = vunpack.c.h.b16 %v5844
    %v6425 = vunpack.c.l.b16 %v5845
    %v6426 = vunpack.c.h.b16 %v5845
    %v6427 = vunpack.c.l.b16 %v5846
    %v6428 = vunpack.c.h.b16 %v5846
    %v6429 = vunpack.c.l.b16 %v5847
    %v6430 = vunpack.c.h.b16 %v5847
    %v6431 = vunpack.c.l.b16 %v5848
    %v6432 = vunpack.c.h.b16 %v5848
    %v6433 = vunpack.c.l.b16 %v5849
    %v6434 = vunpack.c.h.b16 %v5849
    %v6435 = vunpack.c.l.b16 %v5850
    %v6436 = vunpack.c.h.b16 %v5850
    %v6437 = vunpack.c.l.b16 %v5851
    %v6438 = vunpack.c.h.b16 %v5851
    %v6439 = vunpack.c.l.b16 %v5852
    %v6440 = vunpack.c.h.b16 %v5852
    %v6441 = vunpack.c.l.b16 %v5853
    %v6442 = vunpack.c.h.b16 %v5853
    %v6443 = vunpack.c.l.b16 %v5854
    %v6444 = vunpack.c.h.b16 %v5854
    %v6445 = vunpack.c.l.b16 %v5855
    %v6446 = vunpack.c.h.b16 %v5855
    %v6447 = vunpack.c.l.b16 %v5856
    %v6448 = vunpack.c.h.b16 %v5856
    %v6449 = vunpack.c.l.b16 %v5857
    %v6450 = vunpack.c.h.b16 %v5857
    %v6451 = vunpack.c.l.b16 %v5858
    %v6452 = vunpack.c.h.b16 %v5858
    %v6453 = vunpack.c.l.b16 %v5859
    %v6454 = vunpack.c.h.b16 %v5859
    %v6455 = vunpack.c.l.b16 %v5860
    %v6456 = vunpack.c.h.b16 %v5860
    %v6457 = vunpack.c.l.b16 %v5861
    %v6458 = vunpack.c.h.b16 %v5861
    %v6459 = vunpack.c.l.b16 %v5862
    %v6460 = vunpack.c.h.b16 %v5862
    %v6461 = vpack.c.b16 %v6081, %v6077
    %v6462 = vpack.c.b16 %v6082, %v6078
    %v6463 = vpack.c.b16 %v6083, %v6079
    %v6464 = vpack.c.b16 %v6084, %v6080
    %v6465 = vpack.c.b16 %v6089, %v6085
    %v6466 = vpack.c.b16 %v6090, %v6086
    %v6467 = vpack.c.b16 %v6091, %v6087
    %v6468 = vpack.c.b16 %v6092, %v6088
    %v6469 = vpack.c.b16 %v6097, %v6093
    %v6470 = vpack.c.b16 %v6098, %v6094
    %v6471 = vpack.c.b16 %v6099, %v6095
    %v6472 = vpack.c.b16 %v6100, %v6096
    %v6473 = vpack.c.b16 %v6105, %v6101
    %v6474 = vpack.c.b16 %v6106, %v6102
    %v6475 = vpack.c.b16 %v6107, %v6103
    %v6476 = vpack.c.b16 %v6108, %v6104
    %v6477 = vpack.c.b16 %v6113, %v6109
    %v6478 = vpack.c.b16 %v6114, %v6110
    %v6479 = vpack.c.b16 %v6115, %v6111
    %v6480 = vpack.c.b16 %v6116, %v6112
    %v6481 = vpack.c.b16 %v6121, %v6117
    %v6482 = vpack.c.b16 %v6122, %v6118
    %v6483 = vpack.c.b16 %v6123, %v6119
    %v6484 = vpack.c.b16 %v6124, %v6120
    %v6485 = vpack.c.b16 %v6129, %v6125
    %v6486 = vpack.c.b16 %v6130, %v6126
    %v6487 = vpack.c.b16 %v6131, %v6127
    %v6488 = vpack.c.b16 %v6132, %v6128
    %v6489 = vpack.c.b16 %v6137, %v6133
    %v6490 = vpack.c.b16 %v6138, %v6134
    %v6491 = vpack.c.b16 %v6139, %v6135
    %v6492 = vpack.c.b16 %v6140, %v6136
    %v6493 = vpack.c.b16 %v6145, %v6141
    %v6494 = vpack.c.b16 %v6146, %v6142
    %v6495 = vpack.c.b16 %v6147, %v6143
    %v6496 = vpack.c.b16 %v6148, %v6144
    %v6497 = vpack.c.b16 %v6153, %v6149
    %v6498 = vpack.c.b16 %v6154, %v6150
    %v6499 = vpack.c.b16 %v6155, %v6151
    %v6500 = vpack.c.b16 %v6156, %v6152
    %v6501 = vpack.c.b16 %v6161, %v6157
    %v6502 = vpack.c.b16 %v6162, %v6158
    %v6503 = vpack.c.b16 %v6163, %v6159
    %v6504 = vpack.c.b16 %v6164, %v6160
    %v6505 = vpack.c.b16 %v6169, %v6165
    %v6506 = vpack.c.b16 %v6170, %v6166
    %v6507 = vpack.c.b16 %v6171, %v6167
    %v6508 = vpack.c.b16 %v6172, %v6168
    %v6509 = vpack.c.b16 %v6177, %v6173
    %v6510 = vpack.c.b16 %v6178, %v6174
    %v6511 = vpack.c.b16 %v6179, %v6175
    %v6512 = vpack.c.b16 %v6180, %v6176
    %v6513 = vpack.c.b16 %v6185, %v6181
    %v6514 = vpack.c.b16 %v6186, %v6182
    %v6515 = vpack.c.b16 %v6187, %v6183
    %v6516 = vpack.c.b16 %v6188, %v6184
    %v6517 = vpack.c.b16 %v6193, %v6189
    %v6518 = vpack.c.b16 %v6194, %v6190
    %v6519 = vpack.c.b16 %v6195, %v6191
    %v6520 = vpack.c.b16 %v6196, %v6192
    %v6521 = vpack.c.b16 %v6201, %v6197
    %v6522 = vpack.c.b16 %v6202, %v6198
    %v6523 = vpack.c.b16 %v6203, %v6199
    %v6524 = vpack.c.b16 %v6204, %v6200
    %v6525 = vpack.c.b16 %v6209, %v6205
    %v6526 = vpack.c.b16 %v6210, %v6206
    %v6527 = vpack.c.b16 %v6211, %v6207
    %v6528 = vpack.c.b16 %v6212, %v6208
    %v6529 = vpack.c.b16 %v6217, %v6213
    %v6530 = vpack.c.b16 %v6218, %v6214
    %v6531 = vpack.c.b16 %v6219, %v6215
    %v6532 = vpack.c.b16 %v6220, %v6216
    %v6533 = vpack.c.b16 %v6225, %v6221
    %v6534 = vpack.c.b16 %v6226, %v6222
    %v6535 = vpack.c.b16 %v6227, %v6223
    %v6536 = vpack.c.b16 %v6228, %v6224
    %v6537 = vpack.c.b16 %v6233, %v6229
    %v6538 = vpack.c.b16 %v6234, %v6230
    %v6539 = vpack.c.b16 %v6235, %v6231
    %v6540 = vpack.c.b16 %v6236, %v6232
    %v6541 = vpack.c.b16 %v6241, %v6237
    %v6542 = vpack.c.b16 %v6242, %v6238
    %v6543 = vpack.c.b16 %v6243, %v6239
    %v6544 = vpack.c.b16 %v6244, %v6240
    %v6545 = vpack.c.b16 %v6249, %v6245
    %v6546 = vpack.c.b16 %v6250, %v6246
    %v6547 = vpack.c.b16 %v6251, %v6247
    %v6548 = vpack.c.b16 %v6252, %v6248
    %v6549 = vpack.c.b16 %v6257, %v6253
    %v6550 = vpack.c.b16 %v6258, %v6254
    %v6551 = vpack.c.b16 %v6259, %v6255
    %v6552 = vpack.c.b16 %v6260, %v6256
    %v6553 = vpack.c.b16 %v6265, %v6261
    %v6554 = vpack.c.b16 %v6266, %v6262
    %v6555 = vpack.c.b16 %v6267, %v6263
    %v6556 = vpack.c.b16 %v6268, %v6264
    %v6557 = vpack.c.b16 %v6273, %v6269
    %v6558 = vpack.c.b16 %v6274, %v6270
    %v6559 = vpack.c.b16 %v6275, %v6271
    %v6560 = vpack.c.b16 %v6276, %v6272
    %v6561 = vpack.c.b16 %v6281, %v6277
    %v6562 = vpack.c.b16 %v6282, %v6278
    %v6563 = vpack.c.b16 %v6283, %v6279
    %v6564 = vpack.c.b16 %v6284, %v6280
    %v6565 = vpack.c.b16 %v6289, %v6285
    %v6566 = vpack.c.b16 %v6290, %v6286
    %v6567 = vpack.c.b16 %v6291, %v6287
    %v6568 = vpack.c.b16 %v6292, %v6288
    %v6569 = vpack.c.b16 %v6297, %v6293
    %v6570 = vpack.c.b16 %v6298, %v6294
    %v6571 = vpack.c.b16 %v6299, %v6295
    %v6572 = vpack.c.b16 %v6300, %v6296
    %v6573 = vpack.c.b16 %v6305, %v6301
    %v6574 = vpack.c.b16 %v6306, %v6302
    %v6575 = vpack.c.b16 %v6307, %v6303
    %v6576 = vpack.c.b16 %v6308, %v6304
    %v6577 = vpack.c.b16 %v6313, %v6309
    %v6578 = vpack.c.b16 %v6314, %v6310
    %v6579 = vpack.c.b16 %v6315, %v6311
    %v6580 = vpack.c.b16 %v6316, %v6312
    %v6581 = vpack.c.b16 %v6321, %v6317
    %v6582 = vpack.c.b16 %v6322, %v6318
    %v6583 = vpack.c.b16 %v6323, %v6319
    %v6584 = vpack.c.b16 %v6324, %v6320
    %v6585 = vpack.c.b16 %v6329, %v6325
    %v6586 = vpack.c.b16 %v6330, %v6326
    %v6587 = vpack.c.b16 %v6331, %v6327
    %v6588 = vpack.c.b16 %v6332, %v6328
    %v6589 = vpack.c.b16 %v6337, %v6333
    %v6590 = vpack.c.b16 %v6338, %v6334
    %v6591 = vpack.c.b16 %v6339, %v6335
    %v6592 = vpack.c.b16 %v6340, %v6336
    %v6593 = vpack.c.b16 %v6345, %v6341
    %v6594 = vpack.c.b16 %v6346, %v6342
    %v6595 = vpack.c.b16 %v6347, %v6343
    %v6596 = vpack.c.b16 %v6348, %v6344
    %v6597 = vpack.c.b16 %v6353, %v6349
    %v6598 = vpack.c.b16 %v6354, %v6350
    %v6599 = vpack.c.b16 %v6355, %v6351
    %v6600 = vpack.c.b16 %v6356, %v6352
    %v6601 = vpack.c.b16 %v6361, %v6357
    %v6602 = vpack.c.b16 %v6362, %v6358
    %v6603 = vpack.c.b16 %v6363, %v6359
    %v6604 = vpack.c.b16 %v6364, %v6360
    %v6605 = vpack.c.b16 %v6369, %v6365
    %v6606 = vpack.c.b16 %v6370, %v6366
    %v6607 = vpack.c.b16 %v6371, %v6367
    %v6608 = vpack.c.b16 %v6372, %v6368
    %v6609 = vpack.c.b16 %v6377, %v6373
    %v6610 = vpack.c.b16 %v6378, %v6374
    %v6611 = vpack.c.b16 %v6379, %v6375
    %v6612 = vpack.c.b16 %v6380, %v6376
    %v6613 = vpack.c.b16 %v6385, %v6381
    %v6614 = vpack.c.b16 %v6386, %v6382
    %v6615 = vpack.c.b16 %v6387, %v6383
    %v6616 = vpack.c.b16 %v6388, %v6384
    %v6617 = vpack.c.b16 %v6393, %v6389
    %v6618 = vpack.c.b16 %v6394, %v6390
    %v6619 = vpack.c.b16 %v6395, %v6391
    %v6620 = vpack.c.b16 %v6396, %v6392
    %v6621 = vpack.c.b16 %v6401, %v6397
    %v6622 = vpack.c.b16 %v6402, %v6398
    %v6623 = vpack.c.b16 %v6403, %v6399
    %v6624 = vpack.c.b16 %v6404, %v6400
    %v6625 = vpack.c.b16 %v6409, %v6405
    %v6626 = vpack.c.b16 %v6410, %v6406
    %v6627 = vpack.c.b16 %v6411, %v6407
    %v6628 = vpack.c.b16 %v6412, %v6408
    %v6629 = vpack.c.b16 %v6417, %v6413
    %v6630 = vpack.c.b16 %v6418, %v6414
    %v6631 = vpack.c.b16 %v6419, %v6415
    %v6632 = vpack.c.b16 %v6420, %v6416
    %v6633 = vpack.c.b16 %v6425, %v6421
    %v6634 = vpack.c.b16 %v6426, %v6422
    %v6635 = vpack.c.b16 %v6427, %v6423
    %v6636 = vpack.c.b16 %v6428, %v6424
    %v6637 = vpack.c.b16 %v6433, %v6429
    %v6638 = vpack.c.b16 %v6434, %v6430
    %v6639 = vpack.c.b16 %v6435, %v6431
    %v6640 = vpack.c.b16 %v6436, %v6432
    %v6641 = vpack.c.b16 %v6441, %v6437
    %v6642 = vpack.c.b16 %v6442, %v6438
    %v6643 = vpack.c.b16 %v6443, %v6439
    %v6644 = vpack.c.b16 %v6444, %v6440
    %v6645 = vpack.c.b16 %v6449, %v6445
    %v6646 = vpack.c.b16 %v6450, %v6446
    %v6647 = vpack.c.b16 %v6451, %v6447
    %v6648 = vpack.c.b16 %v6452, %v6448
    %v6649 = vpack.c.b16 %v6457, %v6453
    %v6650 = vpack.c.b16 %v6458, %v6454
    %v6651 = vpack.c.b16 %v6459, %v6455
    %v6652 = vpack.c.b16 %v6460, %v6456
    %6845 = vmatprep.subr.bf16.mxu0 %v6462
    %6846 = vmatpush1.bf16.msra.mxu0 %v6461
    %6847 = vmatprep.subr.bf16.mxu0 %v6466
    %6848 = vmatpush1.bf16.msra.mxu0 %v6465
    %6849 = vmatprep.subr.bf16.mxu0 %v6470
    %6850 = vmatpush1.bf16.msra.mxu0 %v6469
    %6851 = vmatprep.subr.bf16.mxu0 %v6474
    %6852 = vmatpush1.bf16.msra.mxu0 %v6473
    %6853 = vmatprep.subr.bf16.mxu0 %v6478
    %6854 = vmatpush1.bf16.msra.mxu0 %v6477
    %6855 = vmatprep.subr.bf16.mxu0 %v6482
    %6856 = vmatpush1.bf16.msra.mxu0 %v6481
    %6857 = vmatprep.subr.bf16.mxu0 %v6486
    %6858 = vmatpush1.bf16.msra.mxu0 %v6485
    %6859 = vmatprep.subr.bf16.mxu0 %v6490
    %6860 = vmatpush1.bf16.msra.mxu0 %v6489
    %6861 = vmatprep.subr.bf16.mxu0 %v6494
    %6862 = vmatpush1.bf16.msra.mxu0 %v6493
    %6863 = vmatprep.subr.bf16.mxu0 %v6498
    %6864 = vmatpush1.bf16.msra.mxu0 %v6497
    %6865 = vmatprep.subr.bf16.mxu0 %v6502
    %6866 = vmatpush1.bf16.msra.mxu0 %v6501
    %6867 = vmatprep.subr.bf16.mxu0 %v6506
    %6868 = vmatpush1.bf16.msra.mxu0 %v6505
    %6869 = vmatprep.subr.bf16.mxu0 %v6510
    %6870 = vmatpush1.bf16.msra.mxu0 %v6509
    %6871 = vmatprep.subr.bf16.mxu0 %v6514
    %6872 = vmatpush1.bf16.msra.mxu0 %v6513
    %6873 = vmatprep.subr.bf16.mxu0 %v6518
    %6874 = vmatpush1.bf16.msra.mxu0 %v6517
    %6875 = vmatprep.subr.bf16.mxu0 %v6522
    %6876 = vmatpush1.bf16.msra.mxu0 %v6521
    %6877 = vmatprep.mubr.bf16.mxu0 %v5666
    %6878 = vmatmul.mubr.bf16.gmra.mrb[0].mxu0 %v5665
    %v6879 = vpop.f32.mrb[0].mxu0
    %v6880 = vadd.f32 %v5868, %v6879
    %v6881 = vpop.f32.mrb[0].mxu0
    %v6882 = vadd.f32 %v5872, %v6881
    %v6883 = vpop.f32.mrb[0].mxu0
    %v6884 = vpop.f32.mrb[0].mxu0
    %6885 = vdwg.mxu0
    %6886 = vmatprep.subr.bf16.mxu0 %v6526
    %6887 = vmatpush1.bf16.msra.mxu0 %v6525
    %6888 = vmatprep.subr.bf16.mxu0 %v6530
    %6889 = vmatpush1.bf16.msra.mxu0 %v6529
    %6890 = vmatprep.subr.bf16.mxu0 %v6534
    %6891 = vmatpush1.bf16.msra.mxu0 %v6533
    %6892 = vmatprep.subr.bf16.mxu0 %v6538
    %6893 = vmatpush1.bf16.msra.mxu0 %v6537
    %6894 = vmatprep.subr.bf16.mxu0 %v6542
    %6895 = vmatpush1.bf16.msra.mxu0 %v6541
    %6896 = vmatprep.subr.bf16.mxu0 %v6546
    %6897 = vmatpush1.bf16.msra.mxu0 %v6545
    %6898 = vmatprep.subr.bf16.mxu0 %v6550
    %6899 = vmatpush1.bf16.msra.mxu0 %v6549
    %6900 = vmatprep.subr.bf16.mxu0 %v6554
    %6901 = vmatpush1.bf16.msra.mxu0 %v6553
    %6902 = vmatprep.subr.bf16.mxu0 %v6558
    %6903 = vmatpush1.bf16.msra.mxu0 %v6557
    %6904 = vmatprep.subr.bf16.mxu0 %v6562
    %6905 = vmatpush1.bf16.msra.mxu0 %v6561
    %6906 = vmatprep.subr.bf16.mxu0 %v6566
    %6907 = vmatpush1.bf16.msra.mxu0 %v6565
    %6908 = vmatprep.subr.bf16.mxu0 %v6570
    %6909 = vmatpush1.bf16.msra.mxu0 %v6569
    %6910 = vmatprep.subr.bf16.mxu0 %v6574
    %6911 = vmatpush1.bf16.msra.mxu0 %v6573
    %6912 = vmatprep.subr.bf16.mxu0 %v6578
    %6913 = vmatpush1.bf16.msra.mxu0 %v6577
    %6914 = vmatprep.subr.bf16.mxu0 %v6582
    %6915 = vmatpush1.bf16.msra.mxu0 %v6581
    %6916 = vmatprep.subr.bf16.mxu0 %v6586
    %6917 = vmatpush1.bf16.msra.mxu0 %v6585
    %6918 = vmatprep.mubr.bf16.mxu0 %v5668
    %6919 = vmatmul.mubr.bf16.gmra.mrb[0].mxu0 %v5667
    %v6920 = vpop.f32.mrb[0].mxu0
    %v6921 = vadd.f32 %v6880, %v6920
    %v6922 = vpop.f32.mrb[0].mxu0
    %v6923 = vadd.f32 %v6882, %v6922
    %v6924 = vpop.f32.mrb[0].mxu0
    %v6925 = vpop.f32.mrb[0].mxu0
    %6926 = vdwg.mxu0
    %6927 = vmatprep.subr.bf16.mxu0 %v6590
    %6928 = vmatpush1.bf16.msra.mxu0 %v6589
    %6929 = vmatprep.subr.bf16.mxu0 %v6594
    %6930 = vmatpush1.bf16.msra.mxu0 %v6593
    %6931 = vmatprep.subr.bf16.mxu0 %v6598
    %6932 = vmatpush1.bf16.msra.mxu0 %v6597
    %6933 = vmatprep.subr.bf16.mxu0 %v6602
    %6934 = vmatpush1.bf16.msra.mxu0 %v6601
    %6935 = vmatprep.subr.bf16.mxu0 %v6606
    %6936 = vmatpush1.bf16.msra.mxu0 %v6605
    %6937 = vmatprep.subr.bf16.mxu0 %v6610
    %6938 = vmatpush1.bf16.msra.mxu0 %v6609
    %6939 = vmatprep.subr.bf16.mxu0 %v6614
    %6940 = vmatpush1.bf16.msra.mxu0 %v6613
    %6941 = vmatprep.subr.bf16.mxu0 %v6618
    %6942 = vmatpush1.bf16.msra.mxu0 %v6617
    %6943 = vmatprep.subr.bf16.mxu0 %v6622
    %6944 = vmatpush1.bf16.msra.mxu0 %v6621
    %6945 = vmatprep.subr.bf16.mxu0 %v6626
    %6946 = vmatpush1.bf16.msra.mxu0 %v6625
    %6947 = vmatprep.subr.bf16.mxu0 %v6630
    %6948 = vmatpush1.bf16.msra.mxu0 %v6629
    %6949 = vmatprep.subr.bf16.mxu0 %v6634
    %6950 = vmatpush1.bf16.msra.mxu0 %v6633
    %6951 = vmatprep.subr.bf16.mxu0 %v6638
    %6952 = vmatpush1.bf16.msra.mxu0 %v6637
    %6953 = vmatprep.subr.bf16.mxu0 %v6642
    %6954 = vmatpush1.bf16.msra.mxu0 %v6641
    %6955 = vmatprep.subr.bf16.mxu0 %v6646
    %6956 = vmatpush1.bf16.msra.mxu0 %v6645
    %6957 = vmatprep.subr.bf16.mxu0 %v6650
    %6958 = vmatpush1.bf16.msra.mxu0 %v6649
    %6959 = vmatprep.mubr.bf16.mxu0 %v5670
    %6960 = vmatmul.mubr.bf16.gmra.mrb[0].mxu0 %v5669
    %v6961 = vpop.f32.mrb[0].mxu0
    %v6962 = vadd.f32 %v6921, %v6961
    %v6963 = vpop.f32.mrb[0].mxu0
    %v6964 = vadd.f32 %v6923, %v6963
    %v6965 = vpop.f32.mrb[0].mxu0
    %v6966 = vpop.f32.mrb[0].mxu0
    %6967 = vdwg.mxu0
    %6968 = vmatprep.subr.bf16.mxu0 %v6464
    %6969 = vmatpush1.bf16.msra.mxu0 %v6463
    %6970 = vmatprep.subr.bf16.mxu0 %v6468
    %6971 = vmatpush1.bf16.msra.mxu0 %v6467
    %6972 = vmatprep.subr.bf16.mxu0 %v6472
    %6973 = vmatpush1.bf16.msra.mxu0 %v6471
    %6974 = vmatprep.subr.bf16.mxu0 %v6476
    %6975 = vmatpush1.bf16.msra.mxu0 %v6475
    %6976 = vmatprep.subr.bf16.mxu0 %v6480
    %6977 = vmatpush1.bf16.msra.mxu0 %v6479
    %6978 = vmatprep.subr.bf16.mxu0 %v6484
    %6979 = vmatpush1.bf16.msra.mxu0 %v6483
    %6980 = vmatprep.subr.bf16.mxu0 %v6488
    %6981 = vmatpush1.bf16.msra.mxu0 %v6487
    %6982 = vmatprep.subr.bf16.mxu0 %v6492
    %6983 = vmatpush1.bf16.msra.mxu0 %v6491
    %6984 = vmatprep.subr.bf16.mxu0 %v6496
    %6985 = vmatpush1.bf16.msra.mxu0 %v6495
    %6986 = vmatprep.subr.bf16.mxu0 %v6500
    %6987 = vmatpush1.bf16.msra.mxu0 %v6499
    %6988 = vmatprep.subr.bf16.mxu0 %v6504
    %6989 = vmatpush1.bf16.msra.mxu0 %v6503
    %6990 = vmatprep.subr.bf16.mxu0 %v6508
    %6991 = vmatpush1.bf16.msra.mxu0 %v6507
    %6992 = vmatprep.subr.bf16.mxu0 %v6512
    %6993 = vmatpush1.bf16.msra.mxu0 %v6511
    %6994 = vmatprep.subr.bf16.mxu0 %v6516
    %6995 = vmatpush1.bf16.msra.mxu0 %v6515
    %6996 = vmatprep.subr.bf16.mxu0 %v6520
    %6997 = vmatpush1.bf16.msra.mxu0 %v6519
    %6998 = vmatprep.subr.bf16.mxu0 %v6524
    %6999 = vmatpush1.bf16.msra.mxu0 %v6523
    %7000 = vmatprep.mubr.bf16.mxu0 %v5666
    %7001 = vmatmul.mubr.bf16.gmra.mrb[0].mxu0 %v5665
    %v7002 = vpop.f32.mrb[0].mxu0
    %v7003 = vadd.f32 %v5876, %v7002
    %v7004 = vpop.f32.mrb[0].mxu0
    %v7005 = vadd.f32 %v5880, %v7004
    %v7006 = vpop.f32.mrb[0].mxu0
    %v7007 = vpop.f32.mrb[0].mxu0
    %7008 = vdwg.mxu0
    %7009 = vmatprep.subr.bf16.mxu0 %v6528
    %7010 = vmatpush1.bf16.msra.mxu0 %v6527
    %7011 = vmatprep.subr.bf16.mxu0 %v6532
    %7012 = vmatpush1.bf16.msra.mxu0 %v6531
    %7013 = vmatprep.subr.bf16.mxu0 %v6536
    %7014 = vmatpush1.bf16.msra.mxu0 %v6535
    %7015 = vmatprep.subr.bf16.mxu0 %v6540
    %7016 = vmatpush1.bf16.msra.mxu0 %v6539
    %7017 = vmatprep.subr.bf16.mxu0 %v6544
    %7018 = vmatpush1.bf16.msra.mxu0 %v6543
    %7019 = vmatprep.subr.bf16.mxu0 %v6548
    %7020 = vmatpush1.bf16.msra.mxu0 %v6547
    %7021 = vmatprep.subr.bf16.mxu0 %v6552
    %7022 = vmatpush1.bf16.msra.mxu0 %v6551
    %7023 = vmatprep.subr.bf16.mxu0 %v6556
    %7024 = vmatpush1.bf16.msra.mxu0 %v6555
    %7025 = vmatprep.subr.bf16.mxu0 %v6560
    %7026 = vmatpush1.bf16.msra.mxu0 %v6559
    %7027 = vmatprep.subr.bf16.mxu0 %v6564
    %7028 = vmatpush1.bf16.msra.mxu0 %v6563
    %7029 = vmatprep.subr.bf16.mxu0 %v6568
    %7030 = vmatpush1.bf16.msra.mxu0 %v6567
    %7031 = vmatprep.subr.bf16.mxu0 %v6572
    %7032 = vmatpush1.bf16.msra.mxu0 %v6571
    %7033 = vmatprep.subr.bf16.mxu0 %v6576
    %7034 = vmatpush1.bf16.msra.mxu0 %v6575
    %7035 = vmatprep.subr.bf16.mxu0 %v6580
    %7036 = vmatpush1.bf16.msra.mxu0 %v6579
    %7037 = vmatprep.subr.bf16.mxu0 %v6584
    %7038 = vmatpush1.bf16.msra.mxu0 %v6583
    %7039 = vmatprep.subr.bf16.mxu0 %v6588
    %7040 = vmatpush1.bf16.msra.mxu0 %v6587
    %7041 = vmatprep.mubr.bf16.mxu0 %v5668
    %7042 = vmatmul.mubr.bf16.gmra.mrb[0].mxu0 %v5667
    %v7043 = vpop.f32.mrb[0].mxu0
    %v7044 = vadd.f32 %v7003, %v7043
    %v7045 = vpop.f32.mrb[0].mxu0
    %v7046 = vadd.f32 %v7005, %v7045
    %v7047 = vpop.f32.mrb[0].mxu0
    %v7048 = vpop.f32.mrb[0].mxu0
    %7049 = vdwg.mxu0
    %7050 = vmatprep.subr.bf16.mxu0 %v6592
    %7051 = vmatpush1.bf16.msra.mxu0 %v6591
    %7052 = vmatprep.subr.bf16.mxu0 %v6596
    %7053 = vmatpush1.bf16.msra.mxu0 %v6595
    %7054 = vmatprep.subr.bf16.mxu0 %v6600
    %7055 = vmatpush1.bf16.msra.mxu0 %v6599
    %7056 = vmatprep.subr.bf16.mxu0 %v6604
    %7057 = vmatpush1.bf16.msra.mxu0 %v6603
    %7058 = vmatprep.subr.bf16.mxu0 %v6608
    %7059 = vmatpush1.bf16.msra.mxu0 %v6607
    %7060 = vmatprep.subr.bf16.mxu0 %v6612
    %7061 = vmatpush1.bf16.msra.mxu0 %v6611
    %7062 = vmatprep.subr.bf16.mxu0 %v6616
    %7063 = vmatpush1.bf16.msra.mxu0 %v6615
    %7064 = vmatprep.subr.bf16.mxu0 %v6620
    %7065 = vmatpush1.bf16.msra.mxu0 %v6619
    %7066 = vmatprep.subr.bf16.mxu0 %v6624
    %7067 = vmatpush1.bf16.msra.mxu0 %v6623
    %7068 = vmatprep.subr.bf16.mxu0 %v6628
    %7069 = vmatpush1.bf16.msra.mxu0 %v6627
    %7070 = vmatprep.subr.bf16.mxu0 %v6632
    %7071 = vmatpush1.bf16.msra.mxu0 %v6631
    %7072 = vmatprep.subr.bf16.mxu0 %v6636
    %7073 = vmatpush1.bf16.msra.mxu0 %v6635
    %7074 = vmatprep.subr.bf16.mxu0 %v6640
    %7075 = vmatpush1.bf16.msra.mxu0 %v6639
    %7076 = vmatprep.subr.bf16.mxu0 %v6644
    %7077 = vmatpush1.bf16.msra.mxu0 %v6643
    %7078 = vmatprep.subr.bf16.mxu0 %v6648
    %7079 = vmatpush1.bf16.msra.mxu0 %v6647
    %7080 = vmatprep.subr.bf16.mxu0 %v6652
    %7081 = vmatpush1.bf16.msra.mxu0 %v6651
    %7082 = vmatprep.mubr.bf16.mxu0 %v5670
    %7083 = vmatmul.mubr.bf16.gmra.mrb[0].mxu0 %v5669
    %v7084 = vpop.f32.mrb[0].mxu0
    %v7085 = vadd.f32 %v7044, %v7084
    %v7086 = vpop.f32.mrb[0].mxu0
    %v7087 = vadd.f32 %v7046, %v7086
    %v7088 = vpop.f32.mrb[0].mxu0
    %v7089 = vpop.f32.mrb[0].mxu0
    %7090 = vdwg.mxu0
    %7091 = vst [vmem:[%s11] sm:$0xff] %v6962
    %7092 = vst [vmem:[%s11 + $0x8] sm:$0xff] %v6964
    %7093 = vst [vmem:[%s11 + $0x10] sm:$0xff] %v7085
    %7094 = vst [vmem:[%s11 + $0x18] sm:$0xff] %v7087
  $region45: #{_lambda_.1} parent=0 // pred_fallthru
    _
  // Predicated region
  $region46: #{_lambda_.1} parent=0 // pred_check
    _
  $region47: #{_lambda_.1} parent=0 // pred_check_branch
    %7096 = sbr.rel (0) target = $region49
  $region48: #{_lambda_.1} parent=0 // pred_region
    _
  $region49: #{_lambda_.1} parent=0 // pred_fallthru
    _
  // Predicated region
  $region50: #{_lambda_.1} parent=0 // pred_check
    _
  $region51: #{_lambda_.1} parent=0 // pred_check_branch
    %7098 = sbr.rel (0) target = $region53
  $region52: #{_lambda_.1} parent=0 // pred_region
    _
  $region53: #{_lambda_.1} parent=0 // pred_fallthru
    _
  // Predicated region
  $region54: #{_lambda_.1} parent=0 // pred_check
    _
  $region55: #{_lambda_.1} parent=0 // pred_check_branch
    %7100 = sbr.rel (0) target = $region57
  $region56: #{_lambda_.1} parent=0 // pred_region
    _
  $region57: #{_lambda_.1} parent=0 // pred_fallthru
    _
  // Predicated region
  $region58: #{_lambda_.1} parent=0 // pred_check
    _
  $region59: #{_lambda_.1} parent=0 // pred_check_branch
    %7102 = sbr.rel (0) target = $region61
  $region60: #{_lambda_.1} parent=0 // pred_region
    _
  $region61: #{_lambda_.1} parent=0 // pred_fallthru
    _
  // Predicated region
  $region62: #{_lambda_.1} parent=0 // pred_check
    _
  $region63: #{_lambda_.1} parent=0 // pred_check_branch
    %7104 = sbr.rel (0) target = $region65
  $region64: #{_lambda_.1} parent=0 // pred_region
    _
  $region65: #{_lambda_.1} parent=0 // pred_fallthru
    _
  // Predicated region
  $region66: #{_lambda_.1} parent=0 // pred_check
    _
  $region67: #{_lambda_.1} parent=0 // pred_check_branch
    %7106 = sbr.rel (0) target = $region69
  $region68: #{_lambda_.1} parent=0 // pred_region
    _
  $region69: #{_lambda_.1} parent=0 // pred_fallthru
    _

</llo_original>
